<compile_context>
chip_gen: v7x
topology: tpu7x:2x2x1
jax: 0.10.0
libtpu: 0.0.40
codegen_flags: <defaults>
</compile_context>

<pallas_src>
import math

import jax
import jax.numpy as jnp
from jax.experimental import pallas as pl
from jax.experimental.pallas import tpu as pltpu

NUM_HEADS = 8


def _make_mha_kernel(tb: int, seq_len: int, embed_dim: int):
    """Builds a kernel that processes `tb` batch elements per grid step."""
    H = NUM_HEADS
    E = embed_dim
    Dh = E // H
    M = tb * seq_len                    # MXU rows per step (batch folded into M)
    scale = 1.0 / math.sqrt(Dh)

    def kernel(x_ref, wqkv_ref, bqkv_ref, wo_ref, bo_ref, o_ref, attn_ref):
        # x_ref    : (TB, L, E)   activation tile (matmul dtype)
        # wqkv_ref : (E, 3E)      fused, pre-transposed QKV weight (resident)
        # bqkv_ref : (1, 3E)      fused QKV bias, f32
        # wo_ref   : (E, E)       pre-transposed output-proj weight (resident)
        # bo_ref   : (1, E)       output-proj bias, f32
        # o_ref    : (TB, L, E)   output tile
        # attn_ref : (TB*L, E)    f32 VMEM scratch: reassembled head outputs
        mm_dt = wqkv_ref.dtype

        # Fold the batch tile into the MXU row dim: one wide QKV matmul
        # (M = TB*L rows, N = 3E cols), f32 accumulation, one bias add.
        x2d = x_ref[...].reshape(M, E)
        qkv = jnp.dot(x2d, wqkv_ref[...],
                      preferred_element_type=jnp.float32) + bqkv_ref[...]

        # Per-head attention: static Dh-wide slices of qkv feed batched
        # (over TB) matmuls directly -- no stacked (H, ...) Q/K/V tensors,
        # no (H, L, E) projection intermediate.
        for h in range(H):
            q_h = qkv[:, h * Dh:(h + 1) * Dh].reshape(tb, seq_len, Dh).astype(mm_dt)
            k_h = qkv[:, E + h * Dh:E + (h + 1) * Dh].reshape(tb, seq_len, Dh).astype(mm_dt)
            v_h = qkv[:, 2 * E + h * Dh:2 * E + (h + 1) * Dh].reshape(tb, seq_len, Dh).astype(mm_dt)

            s = jnp.einsum("bqd,bkd->bqk", q_h, k_h,
                           preferred_element_type=jnp.float32) * scale     # (TB, L, L)
            s = s - jnp.max(s, axis=-1, keepdims=True)
            p = jnp.exp(s)
            denom = jnp.sum(p, axis=-1, keepdims=True)
            p = p * pl.reciprocal(denom, approx=True)     # EUP slot, not a VPU divide

            a_h = jnp.einsum("bqk,bkd->bqd", p.astype(mm_dt), v_h,
                             preferred_element_type=jnp.float32)            # (TB, L, Dh)
            # Place this head's columns of the reassembled output.
            attn_ref[:, h * Dh:(h + 1) * Dh] = a_h.reshape(M, Dh)

        # Single output projection with K = E (replaces 8 K=Dh matmuls + sum).
        out = jnp.dot(attn_ref[...].astype(mm_dt), wo_ref[...],
                      preferred_element_type=jnp.float32) + bo_ref[...]
        o_ref[...] = out.reshape(tb, seq_len, E).astype(o_ref.dtype)

    return kernel


def _pick_batch_block(batch: int, seq_len: int, target_rows: int = 256) -> int:
    """Largest divisor of `batch` with TB*L ~ target MXU rows per step.

    With real batch sizes this still leaves B//TB >= several grid steps, so the
    'parallel' axis feeds both v7x TensorCores and the pipeline has depth.
    """
    cap = max(1, target_rows // max(seq_len, 1))
    tb = 1
    for cand in range(1, min(batch, cap) + 1):
        if batch % cand == 0:
            tb = cand
    return tb


def decoder_mha(x, in_proj_w, in_proj_b, out_w, out_b, *, matmul_dtype=None):
    """Self-attention forward matching nn.MultiheadAttention(batch_first=True).

    x          : (B, L, E) float32
    in_proj_w  : (3E, E)   (in_proj_weight)
    in_proj_b  : (3E,)
    out_w      : (E, E)    (out_proj.weight)
    out_b      : (E,)      (out_proj.bias)
    """
    B, L, E = x.shape
    assert E % NUM_HEADS == 0

    if matmul_dtype is None:
        # bf16 MXU inputs pay off at real CLIP widths (E >= 512 on v6e/v7x);
        # keep f32 at tiny/test widths for exact parity with the reference.
        matmul_dtype = jnp.bfloat16 if E >= 128 else jnp.float32
    out_dtype = x.dtype

    # One-time host-side weight prep: fuse + pre-transpose so the kernel never
    # transposes; biases stay f32 (added to the f32 accumulators).
    w_qkv = in_proj_w.T.astype(matmul_dtype)            # (E, 3E) = [Wq^T|Wk^T|Wv^T]
    b_qkv = in_proj_b.reshape(1, 3 * E).astype(jnp.float32)
    w_o = out_w.T.astype(matmul_dtype)                  # (E, E)
    b_o = out_b.reshape(1, E).astype(jnp.float32)
    x_in = x.astype(matmul_dtype)

    tb = _pick_batch_block(B, L)
    grid = (B // tb,)

    const2d = lambda b: (0, 0)

    return pl.pallas_call(
        _make_mha_kernel(tb, L, E),
        out_shape=jax.ShapeDtypeStruct((B, L, E), out_dtype),
        grid_spec=pltpu.PrefetchScalarGridSpec(
            num_scalar_prefetch=0,
            grid=grid,
            in_specs=[
                pl.BlockSpec((tb, L, E), lambda b: (b, 0, 0)),   # x batch tile
                pl.BlockSpec((E, 3 * E), const2d),               # fused W_qkv^T (resident)
                pl.BlockSpec((1, 3 * E), const2d),               # fused QKV bias
                pl.BlockSpec((E, E), const2d),                   # W_o^T (resident)
                pl.BlockSpec((1, E), const2d),                   # output bias
            ],
            out_specs=pl.BlockSpec((tb, L, E), lambda b: (b, 0, 0)),
            scratch_shapes=[pltpu.VMEM((tb * L, E), jnp.float32)],
        ),
        compiler_params=pltpu.CompilerParams(
            dimension_semantics=("parallel",)),
    )(x_in, w_qkv, b_qkv, w_o, b_o)


def _reference_mha(x, in_proj_w, in_proj_b, out_w, out_b):
    """Plain-JAX reference matching torch.nn.MultiheadAttention(batch_first=True)."""
    B, L, E = x.shape
    Dh = E // NUM_HEADS
    scale = 1.0 / math.sqrt(Dh)
    wq, wk, wv = in_proj_w[:E], in_proj_w[E:2 * E], in_proj_w[2 * E:]
    bq, bk, bv = in_proj_b[:E], in_proj_b[E:2 * E], in_proj_b[2 * E:]
    q = x @ wq.T + bq
    k = x @ wk.T + bk
    v = x @ wv.T + bv
    q = q.reshape(B, L, NUM_HEADS, Dh).transpose(0, 2, 1, 3)
    k = k.reshape(B, L, NUM_HEADS, Dh).transpose(0, 2, 1, 3)
    v = v.reshape(B, L, NUM_HEADS, Dh).transpose(0, 2, 1, 3)
    s = jnp.einsum("bhqd,bhkd->bhqk", q, k) * scale
    p = jax.nn.softmax(s, axis=-1)
    o = jnp.einsum("bhqk,bhkd->bhqd", p, v)
    o = o.transpose(0, 2, 1, 3).reshape(B, L, E)
    return o @ out_w.T + out_b


if __name__ == "__main__":
    # Small MHA-compatible shapes: embed dim must be divisible by 8 heads.
    B = 2        # batch
    clip_l = 8   # sequence length
    clip_d = 32  # embedding dim

    key = jax.random.PRNGKey(0)
    kx, kin, kbin, kwo, kbo = jax.random.split(key, 5)

    x = jax.random.normal(kx, (B, clip_l, clip_d), dtype=jnp.float32)

    # PyTorch-shaped parameters: in_proj (3E, E)/(3E,), out_proj (E, E)/(E,).
    in_proj_w = jax.random.normal(kin, (3 * clip_d, clip_d), dtype=jnp.float32) * 0.1
    in_proj_b = jax.random.normal(kbin, (3 * clip_d,), dtype=jnp.float32) * 0.1
    out_w = jax.random.normal(kwo, (clip_d, clip_d), dtype=jnp.float32) * 0.1
    out_b = jax.random.normal(kbo, (clip_d,), dtype=jnp.float32) * 0.1

    out = decoder_mha(x, in_proj_w, in_proj_b, out_w, out_b)
    out = jax.block_until_ready(out)

    ref = _reference_mha(x, in_proj_w, in_proj_b, out_w, out_b)
    assert out.shape == (B, clip_l, clip_d)
    # Tolerance loosened slightly because the softmax denominator uses the
    # EUP approximate reciprocal (pl.reciprocal(..., approx=True)).
    assert jnp.allclose(out, ref, atol=1e-2, rtol=1e-2), "mismatch vs reference"

    print("KERNEL_OK")
</pallas_src>

<mosaic_0001>
module attributes {stable_mosaic.version = 11 : i64} {
  func.func @kernel(%arg0: i32, %arg1: memref<2x8x32xf32, #tpu.memory_space<vmem>>, %arg2: memref<32x96xf32, #tpu.memory_space<vmem>>, %arg3: memref<1x96xf32, #tpu.memory_space<vmem>>, %arg4: memref<32x32xf32, #tpu.memory_space<vmem>>, %arg5: memref<1x32xf32, #tpu.memory_space<vmem>>, %arg6: memref<2x8x32xf32, #tpu.memory_space<vmem>>, %arg7: memref<16x32xf32, #tpu.memory_space<vmem>>) attributes {dimension_semantics = [#tpu.dimension_semantics<parallel>], iteration_bounds = array<i64: 1>, scalar_prefetch = 0 : i64, scratch_operands = 1 : i64, tpu.core_type = #tpu.core_type<tc>, window_params = [{transform_indices = @transform_0, window_bounds = array<i64: 2, 8, 32>}, {pipeline_mode = #tpu.pipeline_mode<synchronous>, transform_indices = @transform_1, window_bounds = array<i64: 32, 96>}, {pipeline_mode = #tpu.pipeline_mode<synchronous>, transform_indices = @transform_2, window_bounds = array<i64: 1, 96>}, {pipeline_mode = #tpu.pipeline_mode<synchronous>, transform_indices = @transform_3, window_bounds = array<i64: 32, 32>}, {pipeline_mode = #tpu.pipeline_mode<synchronous>, transform_indices = @transform_4, window_bounds = array<i64: 1, 32>}, {transform_indices = @transform_5, window_bounds = array<i64: 2, 8, 32>}]} {
    %c0 = arith.constant 0 : index
    %c0_0 = arith.constant 0 : index
    %c0_1 = arith.constant 0 : index
    %0 = vector.load %arg1[%c0, %c0_0, %c0_1] : memref<2x8x32xf32, #tpu.memory_space<vmem>>, vector<2x8x32xf32>
    %1 = vector.shape_cast %0 : vector<2x8x32xf32> to vector<16x32xf32>
    %c0_2 = arith.constant 0 : index
    %c0_3 = arith.constant 0 : index
    %2 = vector.load %arg2[%c0_2, %c0_3] : memref<32x96xf32, #tpu.memory_space<vmem>>, vector<32x96xf32>
    %cst = arith.constant dense<0.000000e+00> : vector<16x96xf32>
    %3 = tpu.matmul %1, %2, %cst {dimension_numbers = #tpu.dot_dimension_numbers<[1], [0], [0], [1], [0, 0, 1, 1], [], []>} : vector<16x32xf32>, vector<32x96xf32>, vector<16x96xf32> -> vector<16x96xf32>
    %c0_4 = arith.constant 0 : index
    %c0_5 = arith.constant 0 : index
    %4 = vector.load %arg3[%c0_4, %c0_5] : memref<1x96xf32, #tpu.memory_space<vmem>>, vector<1x96xf32>
    %5 = vector.broadcast %4 : vector<1x96xf32> to vector<16x96xf32>
    %6 = arith.addf %3, %5 : vector<16x96xf32>
    %7 = vector.extract_strided_slice %6 {offsets = [0, 0], sizes = [16, 4], strides = [1, 1]} : vector<16x96xf32> to vector<16x4xf32>
    %8 = vector.shape_cast %7 : vector<16x4xf32> to vector<2x8x4xf32>
    %9 = vector.extract_strided_slice %6 {offsets = [0, 32], sizes = [16, 4], strides = [1, 1]} : vector<16x96xf32> to vector<16x4xf32>
    %10 = vector.shape_cast %9 : vector<16x4xf32> to vector<2x8x4xf32>
    %11 = vector.extract_strided_slice %6 {offsets = [0, 64], sizes = [16, 4], strides = [1, 1]} : vector<16x96xf32> to vector<16x4xf32>
    %12 = vector.shape_cast %11 : vector<16x4xf32> to vector<2x8x4xf32>
    "tpu.trace_start"() <{level = 10 : i32, message = "bqd,bkd->bqk"}> : () -> ()
    %cst_6 = arith.constant dense<0.000000e+00> : vector<2x8x8xf32>
    %13 = tpu.matmul %8, %10, %cst_6 {dimension_numbers = #tpu.dot_dimension_numbers<[2], [2], [1], [1], [0, 0, 0, 1, 1, 1], [0], [0]>} : vector<2x8x4xf32>, vector<2x8x4xf32>, vector<2x8x8xf32> -> vector<2x8x8xf32>
    "tpu.trace_stop"() : () -> ()
    %cst_7 = arith.constant 5.000000e-01 : f32
    %14 = vector.broadcast %cst_7 : f32 to vector<2x8x8xf32>
    %15 = arith.mulf %13, %14 : vector<2x8x8xf32>
    %cst_8 = arith.constant dense<0xFF800000> : vector<2x8xf32>
    %16 = vector.multi_reduction <maximumf>, %15, %cst_8 [2] : vector<2x8x8xf32> to vector<2x8xf32>
    %17 = vector.shape_cast %16 : vector<2x8xf32> to vector<2x8x1xf32>
    %18 = vector.broadcast %17 : vector<2x8x1xf32> to vector<2x8x8xf32>
    %19 = arith.subf %15, %18 : vector<2x8x8xf32>
    %20 = math.exp %19 : vector<2x8x8xf32>
    %cst_9 = arith.constant dense<0.000000e+00> : vector<2x8xf32>
    %21 = vector.multi_reduction <add>, %20, %cst_9 [2] : vector<2x8x8xf32> to vector<2x8xf32>
    %22 = vector.shape_cast %21 : vector<2x8xf32> to vector<2x8x1xf32>
    %23 = tpu.reciprocal %22 {approx = true} : vector<2x8x1xf32> -> vector<2x8x1xf32>
    %24 = vector.broadcast %23 : vector<2x8x1xf32> to vector<2x8x8xf32>
    %25 = arith.mulf %20, %24 : vector<2x8x8xf32>
    "tpu.trace_start"() <{level = 10 : i32, message = "bqk,bkd->bqd"}> : () -> ()
    %cst_10 = arith.constant dense<0.000000e+00> : vector<2x8x4xf32>
    %26 = tpu.matmul %25, %12, %cst_10 {dimension_numbers = #tpu.dot_dimension_numbers<[2], [1], [1], [2], [0, 0, 0, 1, 1, 2], [0], [0]>} : vector<2x8x8xf32>, vector<2x8x4xf32>, vector<2x8x4xf32> -> vector<2x8x4xf32>
    "tpu.trace_stop"() : () -> ()
    %27 = vector.shape_cast %26 : vector<2x8x4xf32> to vector<16x4xf32>
    %c0_11 = arith.constant 0 : index
    %c0_12 = arith.constant 0 : index
    %28 = vector.load %arg7[%c0_11, %c0_12] : memref<16x32xf32, #tpu.memory_space<vmem>>, vector<16x4xf32>
    tpu.vector_store %arg7[%c0_11, %c0_12], %27 {strides = array<i32>} : memref<16x32xf32, #tpu.memory_space<vmem>>, vector<16x4xf32>,
    %29 = vector.extract_strided_slice %6 {offsets = [0, 4], sizes = [16, 4], strides = [1, 1]} : vector<16x96xf32> to vector<16x4xf32>
    %30 = vector.shape_cast %29 : vector<16x4xf32> to vector<2x8x4xf32>
    %31 = vector.extract_strided_slice %6 {offsets = [0, 36], sizes = [16, 4], strides = [1, 1]} : vector<16x96xf32> to vector<16x4xf32>
    %32 = vector.shape_cast %31 : vector<16x4xf32> to vector<2x8x4xf32>
    %33 = vector.extract_strided_slice %6 {offsets = [0, 68], sizes = [16, 4], strides = [1, 1]} : vector<16x96xf32> to vector<16x4xf32>
    %34 = vector.shape_cast %33 : vector<16x4xf32> to vector<2x8x4xf32>
    "tpu.trace_start"() <{level = 10 : i32, message = "bqd,bkd->bqk"}> : () -> ()
    %cst_13 = arith.constant dense<0.000000e+00> : vector<2x8x8xf32>
    %35 = tpu.matmul %30, %32, %cst_13 {dimension_numbers = #tpu.dot_dimension_numbers<[2], [2], [1], [1], [0, 0, 0, 1, 1, 1], [0], [0]>} : vector<2x8x4xf32>, vector<2x8x4xf32>, vector<2x8x8xf32> -> vector<2x8x8xf32>
    "tpu.trace_stop"() : () -> ()
    %cst_14 = arith.constant 5.000000e-01 : f32
    %36 = vector.broadcast %cst_14 : f32 to vector<2x8x8xf32>
    %37 = arith.mulf %35, %36 : vector<2x8x8xf32>
    %cst_15 = arith.constant dense<0xFF800000> : vector<2x8xf32>
    %38 = vector.multi_reduction <maximumf>, %37, %cst_15 [2] : vector<2x8x8xf32> to vector<2x8xf32>
    %39 = vector.shape_cast %38 : vector<2x8xf32> to vector<2x8x1xf32>
    %40 = vector.broadcast %39 : vector<2x8x1xf32> to vector<2x8x8xf32>
    %41 = arith.subf %37, %40 : vector<2x8x8xf32>
    %42 = math.exp %41 : vector<2x8x8xf32>
    %cst_16 = arith.constant dense<0.000000e+00> : vector<2x8xf32>
    %43 = vector.multi_reduction <add>, %42, %cst_16 [2] : vector<2x8x8xf32> to vector<2x8xf32>
    %44 = vector.shape_cast %43 : vector<2x8xf32> to vector<2x8x1xf32>
    %45 = tpu.reciprocal %44 {approx = true} : vector<2x8x1xf32> -> vector<2x8x1xf32>
    %46 = vector.broadcast %45 : vector<2x8x1xf32> to vector<2x8x8xf32>
    %47 = arith.mulf %42, %46 : vector<2x8x8xf32>
    "tpu.trace_start"() <{level = 10 : i32, message = "bqk,bkd->bqd"}> : () -> ()
    %cst_17 = arith.constant dense<0.000000e+00> : vector<2x8x4xf32>
    %48 = tpu.matmul %47, %34, %cst_17 {dimension_numbers = #tpu.dot_dimension_numbers<[2], [1], [1], [2], [0, 0, 0, 1, 1, 2], [0], [0]>} : vector<2x8x8xf32>, vector<2x8x4xf32>, vector<2x8x4xf32> -> vector<2x8x4xf32>
    "tpu.trace_stop"() : () -> ()
    %49 = vector.shape_cast %48 : vector<2x8x4xf32> to vector<16x4xf32>
    %c0_18 = arith.constant 0 : index
    %c4 = arith.constant 4 : index
    %50 = vector.load %arg7[%c0_18, %c4] : memref<16x32xf32, #tpu.memory_space<vmem>>, vector<16x4xf32>
    tpu.vector_store %arg7[%c0_18, %c4], %49 {strides = array<i32>} : memref<16x32xf32, #tpu.memory_space<vmem>>, vector<16x4xf32>,
    %51 = vector.extract_strided_slice %6 {offsets = [0, 8], sizes = [16, 4], strides = [1, 1]} : vector<16x96xf32> to vector<16x4xf32>
    %52 = vector.shape_cast %51 : vector<16x4xf32> to vector<2x8x4xf32>
    %53 = vector.extract_strided_slice %6 {offsets = [0, 40], sizes = [16, 4], strides = [1, 1]} : vector<16x96xf32> to vector<16x4xf32>
    %54 = vector.shape_cast %53 : vector<16x4xf32> to vector<2x8x4xf32>
    %55 = vector.extract_strided_slice %6 {offsets = [0, 72], sizes = [16, 4], strides = [1, 1]} : vector<16x96xf32> to vector<16x4xf32>
    %56 = vector.shape_cast %55 : vector<16x4xf32> to vector<2x8x4xf32>
    "tpu.trace_start"() <{level = 10 : i32, message = "bqd,bkd->bqk"}> : () -> ()
    %cst_19 = arith.constant dense<0.000000e+00> : vector<2x8x8xf32>
    %57 = tpu.matmul %52, %54, %cst_19 {dimension_numbers = #tpu.dot_dimension_numbers<[2], [2], [1], [1], [0, 0, 0, 1, 1, 1], [0], [0]>} : vector<2x8x4xf32>, vector<2x8x4xf32>, vector<2x8x8xf32> -> vector<2x8x8xf32>
    "tpu.trace_stop"() : () -> ()
    %cst_20 = arith.constant 5.000000e-01 : f32
    %58 = vector.broadcast %cst_20 : f32 to vector<2x8x8xf32>
    %59 = arith.mulf %57, %58 : vector<2x8x8xf32>
    %cst_21 = arith.constant dense<0xFF800000> : vector<2x8xf32>
    %60 = vector.multi_reduction <maximumf>, %59, %cst_21 [2] : vector<2x8x8xf32> to vector<2x8xf32>
    %61 = vector.shape_cast %60 : vector<2x8xf32> to vector<2x8x1xf32>
    %62 = vector.broadcast %61 : vector<2x8x1xf32> to vector<2x8x8xf32>
    %63 = arith.subf %59, %62 : vector<2x8x8xf32>
    %64 = math.exp %63 : vector<2x8x8xf32>
    %cst_22 = arith.constant dense<0.000000e+00> : vector<2x8xf32>
    %65 = vector.multi_reduction <add>, %64, %cst_22 [2] : vector<2x8x8xf32> to vector<2x8xf32>
    %66 = vector.shape_cast %65 : vector<2x8xf32> to vector<2x8x1xf32>
    %67 = tpu.reciprocal %66 {approx = true} : vector<2x8x1xf32> -> vector<2x8x1xf32>
    %68 = vector.broadcast %67 : vector<2x8x1xf32> to vector<2x8x8xf32>
    %69 = arith.mulf %64, %68 : vector<2x8x8xf32>
    "tpu.trace_start"() <{level = 10 : i32, message = "bqk,bkd->bqd"}> : () -> ()
    %cst_23 = arith.constant dense<0.000000e+00> : vector<2x8x4xf32>
    %70 = tpu.matmul %69, %56, %cst_23 {dimension_numbers = #tpu.dot_dimension_numbers<[2], [1], [1], [2], [0, 0, 0, 1, 1, 2], [0], [0]>} : vector<2x8x8xf32>, vector<2x8x4xf32>, vector<2x8x4xf32> -> vector<2x8x4xf32>
    "tpu.trace_stop"() : () -> ()
    %71 = vector.shape_cast %70 : vector<2x8x4xf32> to vector<16x4xf32>
    %c0_24 = arith.constant 0 : index
    %c8 = arith.constant 8 : index
    %72 = vector.load %arg7[%c0_24, %c8] : memref<16x32xf32, #tpu.memory_space<vmem>>, vector<16x4xf32>
    tpu.vector_store %arg7[%c0_24, %c8], %71 {strides = array<i32>} : memref<16x32xf32, #tpu.memory_space<vmem>>, vector<16x4xf32>,
    %73 = vector.extract_strided_slice %6 {offsets = [0, 12], sizes = [16, 4], strides = [1, 1]} : vector<16x96xf32> to vector<16x4xf32>
    %74 = vector.shape_cast %73 : vector<16x4xf32> to vector<2x8x4xf32>
    %75 = vector.extract_strided_slice %6 {offsets = [0, 44], sizes = [16, 4], strides = [1, 1]} : vector<16x96xf32> to vector<16x4xf32>
    %76 = vector.shape_cast %75 : vector<16x4xf32> to vector<2x8x4xf32>
    %77 = vector.extract_strided_slice %6 {offsets = [0, 76], sizes = [16, 4], strides = [1, 1]} : vector<16x96xf32> to vector<16x4xf32>
    %78 = vector.shape_cast %77 : vector<16x4xf32> to vector<2x8x4xf32>
    "tpu.trace_start"() <{level = 10 : i32, message = "bqd,bkd->bqk"}> : () -> ()
    %cst_25 = arith.constant dense<0.000000e+00> : vector<2x8x8xf32>
    %79 = tpu.matmul %74, %76, %cst_25 {dimension_numbers = #tpu.dot_dimension_numbers<[2], [2], [1], [1], [0, 0, 0, 1, 1, 1], [0], [0]>} : vector<2x8x4xf32>, vector<2x8x4xf32>, vector<2x8x8xf32> -> vector<2x8x8xf32>
    "tpu.trace_stop"() : () -> ()
    %cst_26 = arith.constant 5.000000e-01 : f32
    %80 = vector.broadcast %cst_26 : f32 to vector<2x8x8xf32>
    %81 = arith.mulf %79, %80 : vector<2x8x8xf32>
    %cst_27 = arith.constant dense<0xFF800000> : vector<2x8xf32>
    %82 = vector.multi_reduction <maximumf>, %81, %cst_27 [2] : vector<2x8x8xf32> to vector<2x8xf32>
    %83 = vector.shape_cast %82 : vector<2x8xf32> to vector<2x8x1xf32>
    %84 = vector.broadcast %83 : vector<2x8x1xf32> to vector<2x8x8xf32>
    %85 = arith.subf %81, %84 : vector<2x8x8xf32>
    %86 = math.exp %85 : vector<2x8x8xf32>
    %cst_28 = arith.constant dense<0.000000e+00> : vector<2x8xf32>
    %87 = vector.multi_reduction <add>, %86, %cst_28 [2] : vector<2x8x8xf32> to vector<2x8xf32>
    %88 = vector.shape_cast %87 : vector<2x8xf32> to vector<2x8x1xf32>
    %89 = tpu.reciprocal %88 {approx = true} : vector<2x8x1xf32> -> vector<2x8x1xf32>
    %90 = vector.broadcast %89 : vector<2x8x1xf32> to vector<2x8x8xf32>
    %91 = arith.mulf %86, %90 : vector<2x8x8xf32>
    "tpu.trace_start"() <{level = 10 : i32, message = "bqk,bkd->bqd"}> : () -> ()
    %cst_29 = arith.constant dense<0.000000e+00> : vector<2x8x4xf32>
    %92 = tpu.matmul %91, %78, %cst_29 {dimension_numbers = #tpu.dot_dimension_numbers<[2], [1], [1], [2], [0, 0, 0, 1, 1, 2], [0], [0]>} : vector<2x8x8xf32>, vector<2x8x4xf32>, vector<2x8x4xf32> -> vector<2x8x4xf32>
    "tpu.trace_stop"() : () -> ()
    %93 = vector.shape_cast %92 : vector<2x8x4xf32> to vector<16x4xf32>
    %c0_30 = arith.constant 0 : index
    %c12 = arith.constant 12 : index
    %94 = vector.load %arg7[%c0_30, %c12] : memref<16x32xf32, #tpu.memory_space<vmem>>, vector<16x4xf32>
    tpu.vector_store %arg7[%c0_30, %c12], %93 {strides = array<i32>} : memref<16x32xf32, #tpu.memory_space<vmem>>, vector<16x4xf32>,
    %95 = vector.extract_strided_slice %6 {offsets = [0, 16], sizes = [16, 4], strides = [1, 1]} : vector<16x96xf32> to vector<16x4xf32>
    %96 = vector.shape_cast %95 : vector<16x4xf32> to vector<2x8x4xf32>
    %97 = vector.extract_strided_slice %6 {offsets = [0, 48], sizes = [16, 4], strides = [1, 1]} : vector<16x96xf32> to vector<16x4xf32>
    %98 = vector.shape_cast %97 : vector<16x4xf32> to vector<2x8x4xf32>
    %99 = vector.extract_strided_slice %6 {offsets = [0, 80], sizes = [16, 4], strides = [1, 1]} : vector<16x96xf32> to vector<16x4xf32>
    %100 = vector.shape_cast %99 : vector<16x4xf32> to vector<2x8x4xf32>
    "tpu.trace_start"() <{level = 10 : i32, message = "bqd,bkd->bqk"}> : () -> ()
    %cst_31 = arith.constant dense<0.000000e+00> : vector<2x8x8xf32>
    %101 = tpu.matmul %96, %98, %cst_31 {dimension_numbers = #tpu.dot_dimension_numbers<[2], [2], [1], [1], [0, 0, 0, 1, 1, 1], [0], [0]>} : vector<2x8x4xf32>, vector<2x8x4xf32>, vector<2x8x8xf32> -> vector<2x8x8xf32>
    "tpu.trace_stop"() : () -> ()
    %cst_32 = arith.constant 5.000000e-01 : f32
    %102 = vector.broadcast %cst_32 : f32 to vector<2x8x8xf32>
    %103 = arith.mulf %101, %102 : vector<2x8x8xf32>
    %cst_33 = arith.constant dense<0xFF800000> : vector<2x8xf32>
    %104 = vector.multi_reduction <maximumf>, %103, %cst_33 [2] : vector<2x8x8xf32> to vector<2x8xf32>
    %105 = vector.shape_cast %104 : vector<2x8xf32> to vector<2x8x1xf32>
    %106 = vector.broadcast %105 : vector<2x8x1xf32> to vector<2x8x8xf32>
    %107 = arith.subf %103, %106 : vector<2x8x8xf32>
    %108 = math.exp %107 : vector<2x8x8xf32>
    %cst_34 = arith.constant dense<0.000000e+00> : vector<2x8xf32>
    %109 = vector.multi_reduction <add>, %108, %cst_34 [2] : vector<2x8x8xf32> to vector<2x8xf32>
    %110 = vector.shape_cast %109 : vector<2x8xf32> to vector<2x8x1xf32>
    %111 = tpu.reciprocal %110 {approx = true} : vector<2x8x1xf32> -> vector<2x8x1xf32>
    %112 = vector.broadcast %111 : vector<2x8x1xf32> to vector<2x8x8xf32>
    %113 = arith.mulf %108, %112 : vector<2x8x8xf32>
    "tpu.trace_start"() <{level = 10 : i32, message = "bqk,bkd->bqd"}> : () -> ()
    %cst_35 = arith.constant dense<0.000000e+00> : vector<2x8x4xf32>
    %114 = tpu.matmul %113, %100, %cst_35 {dimension_numbers = #tpu.dot_dimension_numbers<[2], [1], [1], [2], [0, 0, 0, 1, 1, 2], [0], [0]>} : vector<2x8x8xf32>, vector<2x8x4xf32>, vector<2x8x4xf32> -> vector<2x8x4xf32>
    "tpu.trace_stop"() : () -> ()
    %115 = vector.shape_cast %114 : vector<2x8x4xf32> to vector<16x4xf32>
    %c0_36 = arith.constant 0 : index
    %c16 = arith.constant 16 : index
    %116 = vector.load %arg7[%c0_36, %c16] : memref<16x32xf32, #tpu.memory_space<vmem>>, vector<16x4xf32>
    tpu.vector_store %arg7[%c0_36, %c16], %115 {strides = array<i32>} : memref<16x32xf32, #tpu.memory_space<vmem>>, vector<16x4xf32>,
    %117 = vector.extract_strided_slice %6 {offsets = [0, 20], sizes = [16, 4], strides = [1, 1]} : vector<16x96xf32> to vector<16x4xf32>
    %118 = vector.shape_cast %117 : vector<16x4xf32> to vector<2x8x4xf32>
    %119 = vector.extract_strided_slice %6 {offsets = [0, 52], sizes = [16, 4], strides = [1, 1]} : vector<16x96xf32> to vector<16x4xf32>
    %120 = vector.shape_cast %119 : vector<16x4xf32> to vector<2x8x4xf32>
    %121 = vector.extract_strided_slice %6 {offsets = [0, 84], sizes = [16, 4], strides = [1, 1]} : vector<16x96xf32> to vector<16x4xf32>
    %122 = vector.shape_cast %121 : vector<16x4xf32> to vector<2x8x4xf32>
    "tpu.trace_start"() <{level = 10 : i32, message = "bqd,bkd->bqk"}> : () -> ()
    %cst_37 = arith.constant dense<0.000000e+00> : vector<2x8x8xf32>
    %123 = tpu.matmul %118, %120, %cst_37 {dimension_numbers = #tpu.dot_dimension_numbers<[2], [2], [1], [1], [0, 0, 0, 1, 1, 1], [0], [0]>} : vector<2x8x4xf32>, vector<2x8x4xf32>, vector<2x8x8xf32> -> vector<2x8x8xf32>
    "tpu.trace_stop"() : () -> ()
    %cst_38 = arith.constant 5.000000e-01 : f32
    %124 = vector.broadcast %cst_38 : f32 to vector<2x8x8xf32>
    %125 = arith.mulf %123, %124 : vector<2x8x8xf32>
    %cst_39 = arith.constant dense<0xFF800000> : vector<2x8xf32>
    %126 = vector.multi_reduction <maximumf>, %125, %cst_39 [2] : vector<2x8x8xf32> to vector<2x8xf32>
    %127 = vector.shape_cast %126 : vector<2x8xf32> to vector<2x8x1xf32>
    %128 = vector.broadcast %127 : vector<2x8x1xf32> to vector<2x8x8xf32>
    %129 = arith.subf %125, %128 : vector<2x8x8xf32>
    %130 = math.exp %129 : vector<2x8x8xf32>
    %cst_40 = arith.constant dense<0.000000e+00> : vector<2x8xf32>
    %131 = vector.multi_reduction <add>, %130, %cst_40 [2] : vector<2x8x8xf32> to vector<2x8xf32>
    %132 = vector.shape_cast %131 : vector<2x8xf32> to vector<2x8x1xf32>
    %133 = tpu.reciprocal %132 {approx = true} : vector<2x8x1xf32> -> vector<2x8x1xf32>
    %134 = vector.broadcast %133 : vector<2x8x1xf32> to vector<2x8x8xf32>
    %135 = arith.mulf %130, %134 : vector<2x8x8xf32>
    "tpu.trace_start"() <{level = 10 : i32, message = "bqk,bkd->bqd"}> : () -> ()
    %cst_41 = arith.constant dense<0.000000e+00> : vector<2x8x4xf32>
    %136 = tpu.matmul %135, %122, %cst_41 {dimension_numbers = #tpu.dot_dimension_numbers<[2], [1], [1], [2], [0, 0, 0, 1, 1, 2], [0], [0]>} : vector<2x8x8xf32>, vector<2x8x4xf32>, vector<2x8x4xf32> -> vector<2x8x4xf32>
    "tpu.trace_stop"() : () -> ()
    %137 = vector.shape_cast %136 : vector<2x8x4xf32> to vector<16x4xf32>
    %c0_42 = arith.constant 0 : index
    %c20 = arith.constant 20 : index
    %138 = vector.load %arg7[%c0_42, %c20] : memref<16x32xf32, #tpu.memory_space<vmem>>, vector<16x4xf32>
    tpu.vector_store %arg7[%c0_42, %c20], %137 {strides = array<i32>} : memref<16x32xf32, #tpu.memory_space<vmem>>, vector<16x4xf32>,
    %139 = vector.extract_strided_slice %6 {offsets = [0, 24], sizes = [16, 4], strides = [1, 1]} : vector<16x96xf32> to vector<16x4xf32>
    %140 = vector.shape_cast %139 : vector<16x4xf32> to vector<2x8x4xf32>
    %141 = vector.extract_strided_slice %6 {offsets = [0, 56], sizes = [16, 4], strides = [1, 1]} : vector<16x96xf32> to vector<16x4xf32>
    %142 = vector.shape_cast %141 : vector<16x4xf32> to vector<2x8x4xf32>
    %143 = vector.extract_strided_slice %6 {offsets = [0, 88], sizes = [16, 4], strides = [1, 1]} : vector<16x96xf32> to vector<16x4xf32>
    %144 = vector.shape_cast %143 : vector<16x4xf32> to vector<2x8x4xf32>
    "tpu.trace_start"() <{level = 10 : i32, message = "bqd,bkd->bqk"}> : () -> ()
    %cst_43 = arith.constant dense<0.000000e+00> : vector<2x8x8xf32>
    %145 = tpu.matmul %140, %142, %cst_43 {dimension_numbers = #tpu.dot_dimension_numbers<[2], [2], [1], [1], [0, 0, 0, 1, 1, 1], [0], [0]>} : vector<2x8x4xf32>, vector<2x8x4xf32>, vector<2x8x8xf32> -> vector<2x8x8xf32>
    "tpu.trace_stop"() : () -> ()
    %cst_44 = arith.constant 5.000000e-01 : f32
    %146 = vector.broadcast %cst_44 : f32 to vector<2x8x8xf32>
    %147 = arith.mulf %145, %146 : vector<2x8x8xf32>
    %cst_45 = arith.constant dense<0xFF800000> : vector<2x8xf32>
    %148 = vector.multi_reduction <maximumf>, %147, %cst_45 [2] : vector<2x8x8xf32> to vector<2x8xf32>
    %149 = vector.shape_cast %148 : vector<2x8xf32> to vector<2x8x1xf32>
    %150 = vector.broadcast %149 : vector<2x8x1xf32> to vector<2x8x8xf32>
    %151 = arith.subf %147, %150 : vector<2x8x8xf32>
    %152 = math.exp %151 : vector<2x8x8xf32>
    %cst_46 = arith.constant dense<0.000000e+00> : vector<2x8xf32>
    %153 = vector.multi_reduction <add>, %152, %cst_46 [2] : vector<2x8x8xf32> to vector<2x8xf32>
    %154 = vector.shape_cast %153 : vector<2x8xf32> to vector<2x8x1xf32>
    %155 = tpu.reciprocal %154 {approx = true} : vector<2x8x1xf32> -> vector<2x8x1xf32>
    %156 = vector.broadcast %155 : vector<2x8x1xf32> to vector<2x8x8xf32>
    %157 = arith.mulf %152, %156 : vector<2x8x8xf32>
    "tpu.trace_start"() <{level = 10 : i32, message = "bqk,bkd->bqd"}> : () -> ()
    %cst_47 = arith.constant dense<0.000000e+00> : vector<2x8x4xf32>
    %158 = tpu.matmul %157, %144, %cst_47 {dimension_numbers = #tpu.dot_dimension_numbers<[2], [1], [1], [2], [0, 0, 0, 1, 1, 2], [0], [0]>} : vector<2x8x8xf32>, vector<2x8x4xf32>, vector<2x8x4xf32> -> vector<2x8x4xf32>
    "tpu.trace_stop"() : () -> ()
    %159 = vector.shape_cast %158 : vector<2x8x4xf32> to vector<16x4xf32>
    %c0_48 = arith.constant 0 : index
    %c24 = arith.constant 24 : index
    %160 = vector.load %arg7[%c0_48, %c24] : memref<16x32xf32, #tpu.memory_space<vmem>>, vector<16x4xf32>
    tpu.vector_store %arg7[%c0_48, %c24], %159 {strides = array<i32>} : memref<16x32xf32, #tpu.memory_space<vmem>>, vector<16x4xf32>,
    %161 = vector.extract_strided_slice %6 {offsets = [0, 28], sizes = [16, 4], strides = [1, 1]} : vector<16x96xf32> to vector<16x4xf32>
    %162 = vector.shape_cast %161 : vector<16x4xf32> to vector<2x8x4xf32>
    %163 = vector.extract_strided_slice %6 {offsets = [0, 60], sizes = [16, 4], strides = [1, 1]} : vector<16x96xf32> to vector<16x4xf32>
    %164 = vector.shape_cast %163 : vector<16x4xf32> to vector<2x8x4xf32>
    %165 = vector.extract_strided_slice %6 {offsets = [0, 92], sizes = [16, 4], strides = [1, 1]} : vector<16x96xf32> to vector<16x4xf32>
    %166 = vector.shape_cast %165 : vector<16x4xf32> to vector<2x8x4xf32>
    "tpu.trace_start"() <{level = 10 : i32, message = "bqd,bkd->bqk"}> : () -> ()
    %cst_49 = arith.constant dense<0.000000e+00> : vector<2x8x8xf32>
    %167 = tpu.matmul %162, %164, %cst_49 {dimension_numbers = #tpu.dot_dimension_numbers<[2], [2], [1], [1], [0, 0, 0, 1, 1, 1], [0], [0]>} : vector<2x8x4xf32>, vector<2x8x4xf32>, vector<2x8x8xf32> -> vector<2x8x8xf32>
    "tpu.trace_stop"() : () -> ()
    %cst_50 = arith.constant 5.000000e-01 : f32
    %168 = vector.broadcast %cst_50 : f32 to vector<2x8x8xf32>
    %169 = arith.mulf %167, %168 : vector<2x8x8xf32>
    %cst_51 = arith.constant dense<0xFF800000> : vector<2x8xf32>
    %170 = vector.multi_reduction <maximumf>, %169, %cst_51 [2] : vector<2x8x8xf32> to vector<2x8xf32>
    %171 = vector.shape_cast %170 : vector<2x8xf32> to vector<2x8x1xf32>
    %172 = vector.broadcast %171 : vector<2x8x1xf32> to vector<2x8x8xf32>
    %173 = arith.subf %169, %172 : vector<2x8x8xf32>
    %174 = math.exp %173 : vector<2x8x8xf32>
    %cst_52 = arith.constant dense<0.000000e+00> : vector<2x8xf32>
    %175 = vector.multi_reduction <add>, %174, %cst_52 [2] : vector<2x8x8xf32> to vector<2x8xf32>
    %176 = vector.shape_cast %175 : vector<2x8xf32> to vector<2x8x1xf32>
    %177 = tpu.reciprocal %176 {approx = true} : vector<2x8x1xf32> -> vector<2x8x1xf32>
    %178 = vector.broadcast %177 : vector<2x8x1xf32> to vector<2x8x8xf32>
    %179 = arith.mulf %174, %178 : vector<2x8x8xf32>
    "tpu.trace_start"() <{level = 10 : i32, message = "bqk,bkd->bqd"}> : () -> ()
    %cst_53 = arith.constant dense<0.000000e+00> : vector<2x8x4xf32>
    %180 = tpu.matmul %179, %166, %cst_53 {dimension_numbers = #tpu.dot_dimension_numbers<[2], [1], [1], [2], [0, 0, 0, 1, 1, 2], [0], [0]>} : vector<2x8x8xf32>, vector<2x8x4xf32>, vector<2x8x4xf32> -> vector<2x8x4xf32>
    "tpu.trace_stop"() : () -> ()
    %181 = vector.shape_cast %180 : vector<2x8x4xf32> to vector<16x4xf32>
    %c0_54 = arith.constant 0 : index
    %c28 = arith.constant 28 : index
    %182 = vector.load %arg7[%c0_54, %c28] : memref<16x32xf32, #tpu.memory_space<vmem>>, vector<16x4xf32>
    tpu.vector_store %arg7[%c0_54, %c28], %181 {strides = array<i32>} : memref<16x32xf32, #tpu.memory_space<vmem>>, vector<16x4xf32>,
    %c0_55 = arith.constant 0 : index
    %c0_56 = arith.constant 0 : index
    %183 = vector.load %arg7[%c0_55, %c0_56] : memref<16x32xf32, #tpu.memory_space<vmem>>, vector<16x32xf32>
    %c0_57 = arith.constant 0 : index
    %c0_58 = arith.constant 0 : index
    %184 = vector.load %arg4[%c0_57, %c0_58] : memref<32x32xf32, #tpu.memory_space<vmem>>, vector<32x32xf32>
    %cst_59 = arith.constant dense<0.000000e+00> : vector<16x32xf32>
    %185 = tpu.matmul %183, %184, %cst_59 {dimension_numbers = #tpu.dot_dimension_numbers<[1], [0], [0], [1], [0, 0, 1, 1], [], []>} : vector<16x32xf32>, vector<32x32xf32>, vector<16x32xf32> -> vector<16x32xf32>
    %c0_60 = arith.constant 0 : index
    %c0_61 = arith.constant 0 : index
    %186 = vector.load %arg5[%c0_60, %c0_61] : memref<1x32xf32, #tpu.memory_space<vmem>>, vector<1x32xf32>
    %187 = vector.broadcast %186 : vector<1x32xf32> to vector<16x32xf32>
    %188 = arith.addf %185, %187 : vector<16x32xf32>
    %189 = vector.shape_cast %188 : vector<16x32xf32> to vector<2x8x32xf32>
    %c0_62 = arith.constant 0 : index
    %c0_63 = arith.constant 0 : index
    %c0_64 = arith.constant 0 : index
    %190 = vector.load %arg6[%c0_62, %c0_63, %c0_64] : memref<2x8x32xf32, #tpu.memory_space<vmem>>, vector<2x8x32xf32>
    tpu.vector_store %arg6[%c0_62, %c0_63, %c0_64], %189 {strides = array<i32>} : memref<2x8x32xf32, #tpu.memory_space<vmem>>, vector<2x8x32xf32>,
    return
  }
  func.func @transform_0(%arg0: i32) -> (i32, i32, i32) {
    %c0_i32 = arith.constant 0 : i32
    %c0_i32_0 = arith.constant 0 : i32
    %c0_i32_1 = arith.constant 0 : i32
    return %arg0, %c0_i32, %c0_i32_0 : i32, i32, i32
  }
  func.func @transform_1(%arg0: i32) -> (i32, i32) {
    %c0_i32 = arith.constant 0 : i32
    %c0_i32_0 = arith.constant 0 : i32
    %c0_i32_1 = arith.constant 0 : i32
    return %c0_i32, %c0_i32_0 : i32, i32
  }
  func.func @transform_2(%arg0: i32) -> (i32, i32) {
    %c0_i32 = arith.constant 0 : i32
    %c0_i32_0 = arith.constant 0 : i32
    %c0_i32_1 = arith.constant 0 : i32
    return %c0_i32, %c0_i32_0 : i32, i32
  }
  func.func @transform_3(%arg0: i32) -> (i32, i32) {
    %c0_i32 = arith.constant 0 : i32
    %c0_i32_0 = arith.constant 0 : i32
    %c0_i32_1 = arith.constant 0 : i32
    return %c0_i32, %c0_i32_0 : i32, i32
  }
  func.func @transform_4(%arg0: i32) -> (i32, i32) {
    %c0_i32 = arith.constant 0 : i32
    %c0_i32_0 = arith.constant 0 : i32
    %c0_i32_1 = arith.constant 0 : i32
    return %c0_i32, %c0_i32_0 : i32, i32
  }
  func.func @transform_5(%arg0: i32) -> (i32, i32, i32) {
    %c0_i32 = arith.constant 0 : i32
    %c0_i32_0 = arith.constant 0 : i32
    %c0_i32_1 = arith.constant 0 : i32
    return %arg0, %c0_i32, %c0_i32_0 : i32, i32, i32
  }
}

</mosaic_0001>

<llo_original>
// kernel: tpu_custom_call.1
$region0: #{tpu_custom_call.1}
  #allocation0 [shape = 'u32[]', space=smem, size = 0x4, offset = 0x4, fixed_abs, tag = 'smem constant byte address 0x4 - core index']
  #allocation1 [shape = 'u32[144,128]{1,0:T(1,128)}', space=vmem, size = 0x12000, scoped, tag = 'internal scratch']
  #allocation2 [shape = 'f32[16,32]{1,0:T(8,128)}', space=vmem, size = 0x2000, scoped, tag = 'scratch operand']
  %s0 = inlined_call_operand.hbm [shape: f32[2,8,32], index: 0, kind: input, shape index: {}]
  %s1 = inlined_call_operand.hbm [shape: f32[32,96], index: 1, kind: input, shape index: {}]
  %s2 = inlined_call_operand.vmem [shape: f32[1,96], index: 2, kind: input, shape index: {}]
  %s3 = inlined_call_operand.hbm [shape: f32[32,32], index: 3, kind: input, shape index: {}]
  %s4 = inlined_call_operand.vmem [shape: f32[1,32], index: 4, kind: input, shape index: {}]
  %s5 = inlined_call_operand.hbm [shape: f32[2,8,32], index: 5, kind: output, shape index: {}]
  %s6 = sld [smem:[#allocation0]]
  $region42: #{tpu_custom_call.1} parent=0
    _
  %s8 = ssub.s32 1, %s6
  %s9 = scalar_select 0, %s8, %s6
  $region1: #{tpu_custom_call.1} parent=0
    #allocation3 [shape = 'u8[8192]{0}', space=vmem, size = 0x2000, scoped, tag = 'input window, operand 0, single buffered']
    #allocation4 [shape = 's32[1]{0}', space=sflag, size = 0x4, scoped, tag = 'scoped memory for tpu_custom_call.1']
    #allocation5 [shape = 's32[1]{0}', space=sflag, size = 0x4, scoped, tag = 'scoped memory for tpu_custom_call.1']
    #allocation6 [shape = 'u8[16384]{0}', space=vmem, size = 0x4000, scoped, tag = 'input window, operand 1, single buffered']
    #allocation7 [shape = 's32[1]{0}', space=sflag, size = 0x4, scoped, tag = 'scoped memory for tpu_custom_call.1']
    #allocation8 [shape = 'u8[16384]{0}', space=vmem, size = 0x4000, scoped, tag = 'input window, operand 3, single buffered']
    #allocation9 [shape = 'u8[8192]{0}', space=vmem, size = 0x2000, scoped, tag = 'output window, operand 0, single buffered']
    %10 = vsyncpa [#allocation4], 0
    %11 = vsyncpa [#allocation7], 0
    %12 = vsyncpa [#allocation5], 0
    // Predicated region
    $region2: #{tpu_custom_call.1} parent=1 // pred_check
      _
    $region3: #{tpu_custom_call.1} parent=1 // pred_check_branch
      %14 = sbr.rel (0) target = $region5
    $region4: #{tpu_custom_call.1} parent=1 // pred_region
      %s16 = ssub.s32 256, 256
      %17 = vsyncadd [#allocation4], %s16
      %s18 = sshll.u32 [#allocation3], 4
      %s19 = int_to_ptr.vmem [resolvable:$true] %s18
      %24 = dma.hbm_to_vmem [thread:$0]  %s0, 256, %s19, [#allocation4], 128, 128, 8
    $region5: #{tpu_custom_call.1} parent=1 // pred_fallthru
      _
    // Predicated region
    $region6: #{tpu_custom_call.1} parent=1 // pred_check
      _
    $region7: #{tpu_custom_call.1} parent=1 // pred_check_branch
      %26 = sbr.rel (0) target = $region9
    $region8: #{tpu_custom_call.1} parent=1 // pred_region
      %s28 = ssub.s32 512, 512
      %29 = vsyncadd [#allocation7], %s28
      %s30 = sshll.u32 [#allocation6], 4
      %s31 = int_to_ptr.vmem [resolvable:$true] %s30
      %36 = dma.hbm_to_vmem [thread:$0]  %s1, 512, %s31, [#allocation7], 128, 128, 8
    $region9: #{tpu_custom_call.1} parent=1 // pred_fallthru
      _
    // Predicated region
    $region10: #{tpu_custom_call.1} parent=1 // pred_check
      _
    $region11: #{tpu_custom_call.1} parent=1 // pred_check_branch
      %38 = sbr.rel (0) target = $region13
    $region12: #{tpu_custom_call.1} parent=1 // pred_region
      _
    $region13: #{tpu_custom_call.1} parent=1 // pred_fallthru
      _
    // Predicated region
    $region14: #{tpu_custom_call.1} parent=1 // pred_check
      _
    $region15: #{tpu_custom_call.1} parent=1 // pred_check_branch
      %40 = sbr.rel (0) target = $region17
    $region16: #{tpu_custom_call.1} parent=1 // pred_region
      %s42 = ssub.s32 512, 512
      %43 = vsyncadd [#allocation7], %s42
      %s44 = sshll.u32 [#allocation8], 4
      %s45 = int_to_ptr.vmem [resolvable:$true] %s44
      %50 = dma.hbm_to_vmem [thread:$0]  %s3, 512, %s45, [#allocation7], 128, 128, 8
    $region17: #{tpu_custom_call.1} parent=1 // pred_fallthru
      _
    // Predicated region
    $region18: #{tpu_custom_call.1} parent=1 // pred_check
      _
    $region19: #{tpu_custom_call.1} parent=1 // pred_check_branch
      %52 = sbr.rel (0) target = $region21
    $region20: #{tpu_custom_call.1} parent=1 // pred_region
      _
    $region21: #{tpu_custom_call.1} parent=1 // pred_fallthru
      _
    // Predicated region
    $region22: #{tpu_custom_call.1} parent=1 // pred_check
      _
    $region23: #{tpu_custom_call.1} parent=1 // pred_check_branch
      %54 = sbr.rel (0) target = $region25
    $region24: #{tpu_custom_call.1} parent=1 // pred_region
      %55 = dma.done [#allocation4], 256
    $region25: #{tpu_custom_call.1} parent=1 // pred_fallthru
      _
    // Predicated region
    $region26: #{tpu_custom_call.1} parent=1 // pred_check
      _
    $region27: #{tpu_custom_call.1} parent=1 // pred_check_branch
      %57 = sbr.rel (0) target = $region29
    $region28: #{tpu_custom_call.1} parent=1 // pred_region
      %58 = dma.done [#allocation7], 512
    $region29: #{tpu_custom_call.1} parent=1 // pred_fallthru
      _
    // Predicated region
    $region30: #{tpu_custom_call.1} parent=1 // pred_check
      _
    $region31: #{tpu_custom_call.1} parent=1 // pred_check_branch
      %60 = sbr.rel (0) target = $region33
    $region32: #{tpu_custom_call.1} parent=1 // pred_region
      %61 = dma.done [#allocation7], 512
    $region33: #{tpu_custom_call.1} parent=1 // pred_fallthru
      _
    %v62 = vld [vmem:[#allocation3] sm:$0xff]
    %v63 = vld [vmem:[#allocation3 + $0x8] sm:$0xff]
    %v64 = vld [vmem:[#allocation6] sm:$0xff]
    %v65 = vld [vmem:[#allocation6 + $0x8] sm:$0xff]
    %v66 = vld [vmem:[#allocation6 + $0x10] sm:$0xff]
    %v67 = vld [vmem:[#allocation6 + $0x18] sm:$0xff]
    %v68 = vld [vmem:[%s2] sm:$0x1]
    %v70 = vlaneseq
    %v71 = vshrl.u32 %v70, 7
    %v72 = vsub.s32 0, %v71
    %v73 = vrot.slane %v68, %v72
    %vm75 = vcmask 261120
    %v77 = vsel %vm75, %v62, 0
    %v80 = vsel %vm75, %v63, 0
    %82 = vmatprep.subr.mxu0 0.0
    %83 = vmatpush1.msra.mxu0 %v64
    %84 = vmatprep.subr.mxu0 0.0
    %85 = vmatpush1.msra.mxu0 %v65
    %86 = vmatprep.subr.mxu0 0.0
    %87 = vmatpush1.msra.mxu0 %v66
    %88 = vmatprep.subr.mxu0 0.0
    %89 = vmatpush1.msra.mxu0 %v67
    %90 = vmatprep.subr.mxu0 0.0
    %91 = vmatpush1.msra.mxu0 0.0
    %92 = vmatprep.subr.mxu0 0.0
    %93 = vmatpush1.msra.mxu0 0.0
    %94 = vmatprep.subr.mxu0 0.0
    %95 = vmatpush1.msra.mxu0 0.0
    %96 = vmatprep.subr.mxu0 0.0
    %97 = vmatpush1.msra.mxu0 0.0
    %98 = vmatprep.subr.mxu0 0.0
    %99 = vmatpush1.msra.mxu0 0.0
    %100 = vmatprep.subr.mxu0 0.0
    %101 = vmatpush1.msra.mxu0 0.0
    %102 = vmatprep.subr.mxu0 0.0
    %103 = vmatpush1.msra.mxu0 0.0
    %104 = vmatprep.subr.mxu0 0.0
    %105 = vmatpush1.msra.mxu0 0.0
    %106 = vmatprep.subr.mxu0 0.0
    %107 = vmatpush1.msra.mxu0 0.0
    %108 = vmatprep.subr.mxu0 0.0
    %109 = vmatpush1.msra.mxu0 0.0
    %110 = vmatprep.subr.mxu0 0.0
    %111 = vmatpush1.msra.mxu0 0.0
    %112 = vmatprep.subr.mxu0 0.0
    %113 = vmatpush1.msra.mxu0 0.0
    %114 = vmatprep.subr.mxu0 0.0
    %115 = vmatpush1.msra.mxu0 0.0
    %116 = vmatprep.subr.mxu0 0.0
    %117 = vmatpush1.msra.mxu0 0.0
    %118 = vmatprep.subr.mxu0 0.0
    %119 = vmatpush1.msra.mxu0 0.0
    %120 = vmatprep.subr.mxu0 0.0
    %121 = vmatpush1.msra.mxu0 0.0
    %122 = vmatprep.subr.mxu0 0.0
    %123 = vmatpush1.msra.mxu0 0.0
    %124 = vmatprep.subr.mxu0 0.0
    %125 = vmatpush1.msra.mxu0 0.0
    %126 = vmatprep.subr.mxu0 0.0
    %127 = vmatpush1.msra.mxu0 0.0
    %128 = vmatprep.subr.mxu0 0.0
    %129 = vmatpush1.msra.mxu0 0.0
    %130 = vmatprep.subr.mxu0 0.0
    %131 = vmatpush1.msra.mxu0 0.0
    %132 = vmatprep.subr.mxu0 0.0
    %133 = vmatpush1.msra.mxu0 0.0
    %134 = vmatprep.subr.mxu0 0.0
    %135 = vmatpush1.msra.mxu0 0.0
    %136 = vmatprep.subr.mxu0 0.0
    %137 = vmatpush1.msra.mxu0 0.0
    %138 = vmatprep.subr.mxu0 0.0
    %139 = vmatpush1.msra.mxu0 0.0
    %140 = vmatprep.subr.mxu0 0.0
    %141 = vmatpush1.msra.mxu0 0.0
    %142 = vmatprep.subr.mxu0 0.0
    %143 = vmatpush1.msra.mxu0 0.0
    %144 = vmatprep.subr.mxu0 0.0
    %145 = vmatpush1.msra.mxu0 0.0
    %146 = vmatprep.mubr.f32.mxu0 0.0
    %147 = vmatmul.mubr.f32.gmra.mrb[0].mxu0 %v77
    %v148 = vpop.f32.mrb[0].mxu0
    %v149 = vadd.f32 %v73, %v148
    %v150 = vpop.f32.mrb[0].mxu0
    %151 = vmatprep.mubr.f32.mxu0 0.0
    %152 = vmatmul.mubr.f32.gmra.mrb[0].mxu0 %v80
    %v153 = vpop.f32.mrb[0].mxu0
    %v154 = vadd.f32 %v73, %v153
    %v155 = vpop.f32.mrb[0].mxu0
    %156 = vdwg.mxu0
    %158 = vrot.lane.b32.xlu0 %v149, 96
    %v159 = vpop.permute.xlu0 %158
    %vm160 = vcmask 31744
    %v161 = vsel %vm160, %v149, 0
    %v163 = vsel %vm160, %v159, 0
    %165 = vmatprep.subr.mxu0 0.0
    %166 = vmatpush1.xpose.msra.mxu0 %v163
    %167 = vmatprep.subr.mxu0 0.0
    %168 = vmatpush1.xpose.msra.mxu0 0.0
    %169 = vmatprep.subr.mxu0 0.0
    %170 = vmatpush1.xpose.msra.mxu0 0.0
    %171 = vmatprep.subr.mxu0 0.0
    %172 = vmatpush1.xpose.msra.mxu0 0.0
    %173 = vmatprep.subr.mxu0 0.0
    %174 = vmatpush1.xpose.msra.mxu0 0.0
    %175 = vmatprep.subr.mxu0 0.0
    %176 = vmatpush1.xpose.msra.mxu0 0.0
    %177 = vmatprep.subr.mxu0 0.0
    %178 = vmatpush1.xpose.msra.mxu0 0.0
    %179 = vmatprep.subr.mxu0 0.0
    %180 = vmatpush1.xpose.msra.mxu0 0.0
    %181 = vmatprep.subr.mxu0 0.0
    %182 = vmatpush1.xpose.msra.mxu0 0.0
    %183 = vmatprep.subr.mxu0 0.0
    %184 = vmatpush1.xpose.msra.mxu0 0.0
    %185 = vmatprep.subr.mxu0 0.0
    %186 = vmatpush1.xpose.msra.mxu0 0.0
    %187 = vmatprep.subr.mxu0 0.0
    %188 = vmatpush1.xpose.msra.mxu0 0.0
    %189 = vmatprep.subr.mxu0 0.0
    %190 = vmatpush1.xpose.msra.mxu0 0.0
    %191 = vmatprep.subr.mxu0 0.0
    %192 = vmatpush1.xpose.msra.mxu0 0.0
    %193 = vmatprep.subr.mxu0 0.0
    %194 = vmatpush1.xpose.msra.mxu0 0.0
    %195 = vmatprep.subr.mxu0 0.0
    %196 = vmatpush1.xpose.msra.mxu0 0.0
    %197 = vmatprep.subr.mxu0 0.0
    %198 = vmatpush1.xpose.msra.mxu0 0.0
    %199 = vmatprep.subr.mxu0 0.0
    %200 = vmatpush1.xpose.msra.mxu0 0.0
    %201 = vmatprep.subr.mxu0 0.0
    %202 = vmatpush1.xpose.msra.mxu0 0.0
    %203 = vmatprep.subr.mxu0 0.0
    %204 = vmatpush1.xpose.msra.mxu0 0.0
    %205 = vmatprep.subr.mxu0 0.0
    %206 = vmatpush1.xpose.msra.mxu0 0.0
    %207 = vmatprep.subr.mxu0 0.0
    %208 = vmatpush1.xpose.msra.mxu0 0.0
    %209 = vmatprep.subr.mxu0 0.0
    %210 = vmatpush1.xpose.msra.mxu0 0.0
    %211 = vmatprep.subr.mxu0 0.0
    %212 = vmatpush1.xpose.msra.mxu0 0.0
    %213 = vmatprep.subr.mxu0 0.0
    %214 = vmatpush1.xpose.msra.mxu0 0.0
    %215 = vmatprep.subr.mxu0 0.0
    %216 = vmatpush1.xpose.msra.mxu0 0.0
    %217 = vmatprep.subr.mxu0 0.0
    %218 = vmatpush1.xpose.msra.mxu0 0.0
    %219 = vmatprep.subr.mxu0 0.0
    %220 = vmatpush1.xpose.msra.mxu0 0.0
    %221 = vmatprep.subr.mxu0 0.0
    %222 = vmatpush1.xpose.msra.mxu0 0.0
    %223 = vmatprep.subr.mxu0 0.0
    %224 = vmatpush1.xpose.msra.mxu0 0.0
    %225 = vmatprep.subr.mxu0 0.0
    %226 = vmatpush1.xpose.msra.mxu0 0.0
    %227 = vmatprep.subr.mxu0 0.0
    %228 = vmatpush1.xpose.msra.mxu0 0.0
    %229 = vmatprep.mubr.f32.mxu0 0.0
    %230 = vmatmul.mubr.f32.gmra.mrb[0].mxu0 %v161
    %v231 = vpop.f32.mrb[0].mxu0
    %v232 = vadd.f32 0.0, %v231
    %v233 = vpop.f32.mrb[0].mxu0
    %234 = vdwg.mxu0
    %236 = vrot.lane.b32.xlu0 %v154, 96
    %v237 = vpop.permute.xlu0 %236
    %v238 = vsel %vm160, %v154, 0
    %v240 = vsel %vm160, %v237, 0
    %242 = vmatprep.subr.mxu0 0.0
    %243 = vmatpush1.xpose.msra.mxu0 %v240
    %244 = vmatprep.subr.mxu0 0.0
    %245 = vmatpush1.xpose.msra.mxu0 0.0
    %246 = vmatprep.subr.mxu0 0.0
    %247 = vmatpush1.xpose.msra.mxu0 0.0
    %248 = vmatprep.subr.mxu0 0.0
    %249 = vmatpush1.xpose.msra.mxu0 0.0
    %250 = vmatprep.subr.mxu0 0.0
    %251 = vmatpush1.xpose.msra.mxu0 0.0
    %252 = vmatprep.subr.mxu0 0.0
    %253 = vmatpush1.xpose.msra.mxu0 0.0
    %254 = vmatprep.subr.mxu0 0.0
    %255 = vmatpush1.xpose.msra.mxu0 0.0
    %256 = vmatprep.subr.mxu0 0.0
    %257 = vmatpush1.xpose.msra.mxu0 0.0
    %258 = vmatprep.subr.mxu0 0.0
    %259 = vmatpush1.xpose.msra.mxu0 0.0
    %260 = vmatprep.subr.mxu0 0.0
    %261 = vmatpush1.xpose.msra.mxu0 0.0
    %262 = vmatprep.subr.mxu0 0.0
    %263 = vmatpush1.xpose.msra.mxu0 0.0
    %264 = vmatprep.subr.mxu0 0.0
    %265 = vmatpush1.xpose.msra.mxu0 0.0
    %266 = vmatprep.subr.mxu0 0.0
    %267 = vmatpush1.xpose.msra.mxu0 0.0
    %268 = vmatprep.subr.mxu0 0.0
    %269 = vmatpush1.xpose.msra.mxu0 0.0
    %270 = vmatprep.subr.mxu0 0.0
    %271 = vmatpush1.xpose.msra.mxu0 0.0
    %272 = vmatprep.subr.mxu0 0.0
    %273 = vmatpush1.xpose.msra.mxu0 0.0
    %274 = vmatprep.subr.mxu0 0.0
    %275 = vmatpush1.xpose.msra.mxu0 0.0
    %276 = vmatprep.subr.mxu0 0.0
    %277 = vmatpush1.xpose.msra.mxu0 0.0
    %278 = vmatprep.subr.mxu0 0.0
    %279 = vmatpush1.xpose.msra.mxu0 0.0
    %280 = vmatprep.subr.mxu0 0.0
    %281 = vmatpush1.xpose.msra.mxu0 0.0
    %282 = vmatprep.subr.mxu0 0.0
    %283 = vmatpush1.xpose.msra.mxu0 0.0
    %284 = vmatprep.subr.mxu0 0.0
    %285 = vmatpush1.xpose.msra.mxu0 0.0
    %286 = vmatprep.subr.mxu0 0.0
    %287 = vmatpush1.xpose.msra.mxu0 0.0
    %288 = vmatprep.subr.mxu0 0.0
    %289 = vmatpush1.xpose.msra.mxu0 0.0
    %290 = vmatprep.subr.mxu0 0.0
    %291 = vmatpush1.xpose.msra.mxu0 0.0
    %292 = vmatprep.subr.mxu0 0.0
    %293 = vmatpush1.xpose.msra.mxu0 0.0
    %294 = vmatprep.subr.mxu0 0.0
    %295 = vmatpush1.xpose.msra.mxu0 0.0
    %296 = vmatprep.subr.mxu0 0.0
    %297 = vmatpush1.xpose.msra.mxu0 0.0
    %298 = vmatprep.subr.mxu0 0.0
    %299 = vmatpush1.xpose.msra.mxu0 0.0
    %300 = vmatprep.subr.mxu0 0.0
    %301 = vmatpush1.xpose.msra.mxu0 0.0
    %302 = vmatprep.subr.mxu0 0.0
    %303 = vmatpush1.xpose.msra.mxu0 0.0
    %304 = vmatprep.subr.mxu0 0.0
    %305 = vmatpush1.xpose.msra.mxu0 0.0
    %306 = vmatprep.mubr.f32.mxu0 0.0
    %307 = vmatmul.mubr.f32.gmra.mrb[0].mxu0 %v238
    %v308 = vpop.f32.mrb[0].mxu0
    %v309 = vadd.f32 0.0, %v308
    %v310 = vpop.f32.mrb[0].mxu0
    %311 = vdwg.mxu0
    %v312 = vmul.f32 %v232, 0.5
    %v313 = vmul.f32 %v309, 0.5
    %vm314 = vcmask 64512
    %v315 = vsel %vm314, %v312, -inf
    %316 = vmax.xlane.f32.xlu0 %v315
    %v317 = vpop.xlane.xlu0 %316
    %v318 = vsel %vm314, %v313, -inf
    %319 = vmax.xlane.f32.xlu0 %v318
    %v320 = vpop.xlane.xlu0 %319
    %v321 = vsub.f32 %v312, %v317
    %v322 = vsub.f32 %v313, %v320
    %v323 = vmul.f32 %v321, 1.442695
    %v324 = vpow.pop %v323
    %v325 = vmul.f32 %v322, 1.442695
    %v326 = vpow.pop %v325
    %v327 = vsel %vm314, %v324, 0.0
    %328 = vadd.xlane.f32.xlu0 %v327
    %v329 = vpop.xlane.xlu0 %328
    %v330 = vsel %vm314, %v326, 0.0
    %331 = vadd.xlane.f32.xlu0 %v330
    %v332 = vpop.xlane.xlu0 %331
    %v333 = vrcp.pop %v329
    %v334 = vrcp.pop %v332
    %v335 = vmul.f32 %v324, %v333
    %v336 = vmul.f32 %v326, %v334
    %337 = vrot.lane.b32.xlu0 %v149, 64
    %v338 = vpop.permute.xlu0 %337
    %v341 = vsel %vm314, %v335, 0
    %343 = vmatprep.subr.mxu0 0.0
    %344 = vmatpush1.msra.mxu0 %v338
    %345 = vmatprep.subr.mxu0 0.0
    %346 = vmatpush1.msra.mxu0 0.0
    %347 = vmatprep.subr.mxu0 0.0
    %348 = vmatpush1.msra.mxu0 0.0
    %349 = vmatprep.subr.mxu0 0.0
    %350 = vmatpush1.msra.mxu0 0.0
    %351 = vmatprep.subr.mxu0 0.0
    %352 = vmatpush1.msra.mxu0 0.0
    %353 = vmatprep.subr.mxu0 0.0
    %354 = vmatpush1.msra.mxu0 0.0
    %355 = vmatprep.subr.mxu0 0.0
    %356 = vmatpush1.msra.mxu0 0.0
    %357 = vmatprep.subr.mxu0 0.0
    %358 = vmatpush1.msra.mxu0 0.0
    %359 = vmatprep.subr.mxu0 0.0
    %360 = vmatpush1.msra.mxu0 0.0
    %361 = vmatprep.subr.mxu0 0.0
    %362 = vmatpush1.msra.mxu0 0.0
    %363 = vmatprep.subr.mxu0 0.0
    %364 = vmatpush1.msra.mxu0 0.0
    %365 = vmatprep.subr.mxu0 0.0
    %366 = vmatpush1.msra.mxu0 0.0
    %367 = vmatprep.subr.mxu0 0.0
    %368 = vmatpush1.msra.mxu0 0.0
    %369 = vmatprep.subr.mxu0 0.0
    %370 = vmatpush1.msra.mxu0 0.0
    %371 = vmatprep.subr.mxu0 0.0
    %372 = vmatpush1.msra.mxu0 0.0
    %373 = vmatprep.subr.mxu0 0.0
    %374 = vmatpush1.msra.mxu0 0.0
    %375 = vmatprep.subr.mxu0 0.0
    %376 = vmatpush1.msra.mxu0 0.0
    %377 = vmatprep.subr.mxu0 0.0
    %378 = vmatpush1.msra.mxu0 0.0
    %379 = vmatprep.subr.mxu0 0.0
    %380 = vmatpush1.msra.mxu0 0.0
    %381 = vmatprep.subr.mxu0 0.0
    %382 = vmatpush1.msra.mxu0 0.0
    %383 = vmatprep.subr.mxu0 0.0
    %384 = vmatpush1.msra.mxu0 0.0
    %385 = vmatprep.subr.mxu0 0.0
    %386 = vmatpush1.msra.mxu0 0.0
    %387 = vmatprep.subr.mxu0 0.0
    %388 = vmatpush1.msra.mxu0 0.0
    %389 = vmatprep.subr.mxu0 0.0
    %390 = vmatpush1.msra.mxu0 0.0
    %391 = vmatprep.subr.mxu0 0.0
    %392 = vmatpush1.msra.mxu0 0.0
    %393 = vmatprep.subr.mxu0 0.0
    %394 = vmatpush1.msra.mxu0 0.0
    %395 = vmatprep.subr.mxu0 0.0
    %396 = vmatpush1.msra.mxu0 0.0
    %397 = vmatprep.subr.mxu0 0.0
    %398 = vmatpush1.msra.mxu0 0.0
    %399 = vmatprep.subr.mxu0 0.0
    %400 = vmatpush1.msra.mxu0 0.0
    %401 = vmatprep.subr.mxu0 0.0
    %402 = vmatpush1.msra.mxu0 0.0
    %403 = vmatprep.subr.mxu0 0.0
    %404 = vmatpush1.msra.mxu0 0.0
    %405 = vmatprep.subr.mxu0 0.0
    %406 = vmatpush1.msra.mxu0 0.0
    %407 = vmatprep.mubr.f32.mxu0 0.0
    %408 = vmatmul.mubr.f32.gmra.mrb[0].mxu0 %v341
    %v409 = vpop.f32.mrb[0].mxu0
    %v410 = vadd.f32 0.0, %v409
    %v411 = vpop.f32.mrb[0].mxu0
    %412 = vdwg.mxu0
    %413 = vrot.lane.b32.xlu0 %v154, 64
    %v414 = vpop.permute.xlu0 %413
    %v417 = vsel %vm314, %v336, 0
    %419 = vmatprep.subr.mxu0 0.0
    %420 = vmatpush1.msra.mxu0 %v414
    %421 = vmatprep.subr.mxu0 0.0
    %422 = vmatpush1.msra.mxu0 0.0
    %423 = vmatprep.subr.mxu0 0.0
    %424 = vmatpush1.msra.mxu0 0.0
    %425 = vmatprep.subr.mxu0 0.0
    %426 = vmatpush1.msra.mxu0 0.0
    %427 = vmatprep.subr.mxu0 0.0
    %428 = vmatpush1.msra.mxu0 0.0
    %429 = vmatprep.subr.mxu0 0.0
    %430 = vmatpush1.msra.mxu0 0.0
    %431 = vmatprep.subr.mxu0 0.0
    %432 = vmatpush1.msra.mxu0 0.0
    %433 = vmatprep.subr.mxu0 0.0
    %434 = vmatpush1.msra.mxu0 0.0
    %435 = vmatprep.subr.mxu0 0.0
    %436 = vmatpush1.msra.mxu0 0.0
    %437 = vmatprep.subr.mxu0 0.0
    %438 = vmatpush1.msra.mxu0 0.0
    %439 = vmatprep.subr.mxu0 0.0
    %440 = vmatpush1.msra.mxu0 0.0
    %441 = vmatprep.subr.mxu0 0.0
    %442 = vmatpush1.msra.mxu0 0.0
    %443 = vmatprep.subr.mxu0 0.0
    %444 = vmatpush1.msra.mxu0 0.0
    %445 = vmatprep.subr.mxu0 0.0
    %446 = vmatpush1.msra.mxu0 0.0
    %447 = vmatprep.subr.mxu0 0.0
    %448 = vmatpush1.msra.mxu0 0.0
    %449 = vmatprep.subr.mxu0 0.0
    %450 = vmatpush1.msra.mxu0 0.0
    %451 = vmatprep.subr.mxu0 0.0
    %452 = vmatpush1.msra.mxu0 0.0
    %453 = vmatprep.subr.mxu0 0.0
    %454 = vmatpush1.msra.mxu0 0.0
    %455 = vmatprep.subr.mxu0 0.0
    %456 = vmatpush1.msra.mxu0 0.0
    %457 = vmatprep.subr.mxu0 0.0
    %458 = vmatpush1.msra.mxu0 0.0
    %459 = vmatprep.subr.mxu0 0.0
    %460 = vmatpush1.msra.mxu0 0.0
    %461 = vmatprep.subr.mxu0 0.0
    %462 = vmatpush1.msra.mxu0 0.0
    %463 = vmatprep.subr.mxu0 0.0
    %464 = vmatpush1.msra.mxu0 0.0
    %465 = vmatprep.subr.mxu0 0.0
    %466 = vmatpush1.msra.mxu0 0.0
    %467 = vmatprep.subr.mxu0 0.0
    %468 = vmatpush1.msra.mxu0 0.0
    %469 = vmatprep.subr.mxu0 0.0
    %470 = vmatpush1.msra.mxu0 0.0
    %471 = vmatprep.subr.mxu0 0.0
    %472 = vmatpush1.msra.mxu0 0.0
    %473 = vmatprep.subr.mxu0 0.0
    %474 = vmatpush1.msra.mxu0 0.0
    %475 = vmatprep.subr.mxu0 0.0
    %476 = vmatpush1.msra.mxu0 0.0
    %477 = vmatprep.subr.mxu0 0.0
    %478 = vmatpush1.msra.mxu0 0.0
    %479 = vmatprep.subr.mxu0 0.0
    %480 = vmatpush1.msra.mxu0 0.0
    %481 = vmatprep.subr.mxu0 0.0
    %482 = vmatpush1.msra.mxu0 0.0
    %483 = vmatprep.mubr.f32.mxu0 0.0
    %484 = vmatmul.mubr.f32.gmra.mrb[0].mxu0 %v417
    %v485 = vpop.f32.mrb[0].mxu0
    %v486 = vadd.f32 0.0, %v485
    %v487 = vpop.f32.mrb[0].mxu0
    %488 = vdwg.mxu0
    %489 = vst.msk [vmem:[#allocation2] sm:$0xff] %vm160, %v410
    %490 = vst.msk [vmem:[#allocation2 + $0x8] sm:$0xff] %vm160, %v486
    %491 = vrot.lane.b32.xlu0 %v149, 124
    %v492 = vpop.permute.xlu0 %491
    %493 = vrot.lane.b32.xlu0 %v149, 92
    %v494 = vpop.permute.xlu0 %493
    %v495 = vsel %vm160, %v492, 0
    %v497 = vsel %vm160, %v494, 0
    %499 = vmatprep.subr.mxu0 0.0
    %500 = vmatpush1.xpose.msra.mxu0 %v497
    %501 = vmatprep.subr.mxu0 0.0
    %502 = vmatpush1.xpose.msra.mxu0 0.0
    %503 = vmatprep.subr.mxu0 0.0
    %504 = vmatpush1.xpose.msra.mxu0 0.0
    %505 = vmatprep.subr.mxu0 0.0
    %506 = vmatpush1.xpose.msra.mxu0 0.0
    %507 = vmatprep.subr.mxu0 0.0
    %508 = vmatpush1.xpose.msra.mxu0 0.0
    %509 = vmatprep.subr.mxu0 0.0
    %510 = vmatpush1.xpose.msra.mxu0 0.0
    %511 = vmatprep.subr.mxu0 0.0
    %512 = vmatpush1.xpose.msra.mxu0 0.0
    %513 = vmatprep.subr.mxu0 0.0
    %514 = vmatpush1.xpose.msra.mxu0 0.0
    %515 = vmatprep.subr.mxu0 0.0
    %516 = vmatpush1.xpose.msra.mxu0 0.0
    %517 = vmatprep.subr.mxu0 0.0
    %518 = vmatpush1.xpose.msra.mxu0 0.0
    %519 = vmatprep.subr.mxu0 0.0
    %520 = vmatpush1.xpose.msra.mxu0 0.0
    %521 = vmatprep.subr.mxu0 0.0
    %522 = vmatpush1.xpose.msra.mxu0 0.0
    %523 = vmatprep.subr.mxu0 0.0
    %524 = vmatpush1.xpose.msra.mxu0 0.0
    %525 = vmatprep.subr.mxu0 0.0
    %526 = vmatpush1.xpose.msra.mxu0 0.0
    %527 = vmatprep.subr.mxu0 0.0
    %528 = vmatpush1.xpose.msra.mxu0 0.0
    %529 = vmatprep.subr.mxu0 0.0
    %530 = vmatpush1.xpose.msra.mxu0 0.0
    %531 = vmatprep.subr.mxu0 0.0
    %532 = vmatpush1.xpose.msra.mxu0 0.0
    %533 = vmatprep.subr.mxu0 0.0
    %534 = vmatpush1.xpose.msra.mxu0 0.0
    %535 = vmatprep.subr.mxu0 0.0
    %536 = vmatpush1.xpose.msra.mxu0 0.0
    %537 = vmatprep.subr.mxu0 0.0
    %538 = vmatpush1.xpose.msra.mxu0 0.0
    %539 = vmatprep.subr.mxu0 0.0
    %540 = vmatpush1.xpose.msra.mxu0 0.0
    %541 = vmatprep.subr.mxu0 0.0
    %542 = vmatpush1.xpose.msra.mxu0 0.0
    %543 = vmatprep.subr.mxu0 0.0
    %544 = vmatpush1.xpose.msra.mxu0 0.0
    %545 = vmatprep.subr.mxu0 0.0
    %546 = vmatpush1.xpose.msra.mxu0 0.0
    %547 = vmatprep.subr.mxu0 0.0
    %548 = vmatpush1.xpose.msra.mxu0 0.0
    %549 = vmatprep.subr.mxu0 0.0
    %550 = vmatpush1.xpose.msra.mxu0 0.0
    %551 = vmatprep.subr.mxu0 0.0
    %552 = vmatpush1.xpose.msra.mxu0 0.0
    %553 = vmatprep.subr.mxu0 0.0
    %554 = vmatpush1.xpose.msra.mxu0 0.0
    %555 = vmatprep.subr.mxu0 0.0
    %556 = vmatpush1.xpose.msra.mxu0 0.0
    %557 = vmatprep.subr.mxu0 0.0
    %558 = vmatpush1.xpose.msra.mxu0 0.0
    %559 = vmatprep.subr.mxu0 0.0
    %560 = vmatpush1.xpose.msra.mxu0 0.0
    %561 = vmatprep.subr.mxu0 0.0
    %562 = vmatpush1.xpose.msra.mxu0 0.0
    %563 = vmatprep.mubr.f32.mxu0 0.0
    %564 = vmatmul.mubr.f32.gmra.mrb[0].mxu0 %v495
    %v565 = vpop.f32.mrb[0].mxu0
    %v566 = vadd.f32 0.0, %v565
    %v567 = vpop.f32.mrb[0].mxu0
    %568 = vdwg.mxu0
    %569 = vrot.lane.b32.xlu0 %v154, 124
    %v570 = vpop.permute.xlu0 %569
    %571 = vrot.lane.b32.xlu0 %v154, 92
    %v572 = vpop.permute.xlu0 %571
    %v573 = vsel %vm160, %v570, 0
    %v575 = vsel %vm160, %v572, 0
    %577 = vmatprep.subr.mxu0 0.0
    %578 = vmatpush1.xpose.msra.mxu0 %v575
    %579 = vmatprep.subr.mxu0 0.0
    %580 = vmatpush1.xpose.msra.mxu0 0.0
    %581 = vmatprep.subr.mxu0 0.0
    %582 = vmatpush1.xpose.msra.mxu0 0.0
    %583 = vmatprep.subr.mxu0 0.0
    %584 = vmatpush1.xpose.msra.mxu0 0.0
    %585 = vmatprep.subr.mxu0 0.0
    %586 = vmatpush1.xpose.msra.mxu0 0.0
    %587 = vmatprep.subr.mxu0 0.0
    %588 = vmatpush1.xpose.msra.mxu0 0.0
    %589 = vmatprep.subr.mxu0 0.0
    %590 = vmatpush1.xpose.msra.mxu0 0.0
    %591 = vmatprep.subr.mxu0 0.0
    %592 = vmatpush1.xpose.msra.mxu0 0.0
    %593 = vmatprep.subr.mxu0 0.0
    %594 = vmatpush1.xpose.msra.mxu0 0.0
    %595 = vmatprep.subr.mxu0 0.0
    %596 = vmatpush1.xpose.msra.mxu0 0.0
    %597 = vmatprep.subr.mxu0 0.0
    %598 = vmatpush1.xpose.msra.mxu0 0.0
    %599 = vmatprep.subr.mxu0 0.0
    %600 = vmatpush1.xpose.msra.mxu0 0.0
    %601 = vmatprep.subr.mxu0 0.0
    %602 = vmatpush1.xpose.msra.mxu0 0.0
    %603 = vmatprep.subr.mxu0 0.0
    %604 = vmatpush1.xpose.msra.mxu0 0.0
    %605 = vmatprep.subr.mxu0 0.0
    %606 = vmatpush1.xpose.msra.mxu0 0.0
    %607 = vmatprep.subr.mxu0 0.0
    %608 = vmatpush1.xpose.msra.mxu0 0.0
    %609 = vmatprep.subr.mxu0 0.0
    %610 = vmatpush1.xpose.msra.mxu0 0.0
    %611 = vmatprep.subr.mxu0 0.0
    %612 = vmatpush1.xpose.msra.mxu0 0.0
    %613 = vmatprep.subr.mxu0 0.0
    %614 = vmatpush1.xpose.msra.mxu0 0.0
    %615 = vmatprep.subr.mxu0 0.0
    %616 = vmatpush1.xpose.msra.mxu0 0.0
    %617 = vmatprep.subr.mxu0 0.0
    %618 = vmatpush1.xpose.msra.mxu0 0.0
    %619 = vmatprep.subr.mxu0 0.0
    %620 = vmatpush1.xpose.msra.mxu0 0.0
    %621 = vmatprep.subr.mxu0 0.0
    %622 = vmatpush1.xpose.msra.mxu0 0.0
    %623 = vmatprep.subr.mxu0 0.0
    %624 = vmatpush1.xpose.msra.mxu0 0.0
    %625 = vmatprep.subr.mxu0 0.0
    %626 = vmatpush1.xpose.msra.mxu0 0.0
    %627 = vmatprep.subr.mxu0 0.0
    %628 = vmatpush1.xpose.msra.mxu0 0.0
    %629 = vmatprep.subr.mxu0 0.0
    %630 = vmatpush1.xpose.msra.mxu0 0.0
    %631 = vmatprep.subr.mxu0 0.0
    %632 = vmatpush1.xpose.msra.mxu0 0.0
    %633 = vmatprep.subr.mxu0 0.0
    %634 = vmatpush1.xpose.msra.mxu0 0.0
    %635 = vmatprep.subr.mxu0 0.0
    %636 = vmatpush1.xpose.msra.mxu0 0.0
    %637 = vmatprep.subr.mxu0 0.0
    %638 = vmatpush1.xpose.msra.mxu0 0.0
    %639 = vmatprep.subr.mxu0 0.0
    %640 = vmatpush1.xpose.msra.mxu0 0.0
    %641 = vmatprep.mubr.f32.mxu0 0.0
    %642 = vmatmul.mubr.f32.gmra.mrb[0].mxu0 %v573
    %v643 = vpop.f32.mrb[0].mxu0
    %v644 = vadd.f32 0.0, %v643
    %v645 = vpop.f32.mrb[0].mxu0
    %646 = vdwg.mxu0
    %v647 = vmul.f32 %v566, 0.5
    %v648 = vmul.f32 %v644, 0.5
    %v649 = vsel %vm314, %v647, -inf
    %650 = vmax.xlane.f32.xlu0 %v649
    %v651 = vpop.xlane.xlu0 %650
    %v652 = vsel %vm314, %v648, -inf
    %653 = vmax.xlane.f32.xlu0 %v652
    %v654 = vpop.xlane.xlu0 %653
    %v655 = vsub.f32 %v647, %v651
    %v656 = vsub.f32 %v648, %v654
    %v657 = vmul.f32 %v655, 1.442695
    %v658 = vpow.pop %v657
    %v659 = vmul.f32 %v656, 1.442695
    %v660 = vpow.pop %v659
    %v661 = vsel %vm314, %v658, 0.0
    %662 = vadd.xlane.f32.xlu0 %v661
    %v663 = vpop.xlane.xlu0 %662
    %v664 = vsel %vm314, %v660, 0.0
    %665 = vadd.xlane.f32.xlu0 %v664
    %v666 = vpop.xlane.xlu0 %665
    %v667 = vrcp.pop %v663
    %v668 = vrcp.pop %v666
    %v669 = vmul.f32 %v658, %v667
    %v670 = vmul.f32 %v660, %v668
    %671 = vrot.lane.b32.xlu0 %v149, 60
    %v672 = vpop.permute.xlu0 %671
    %v675 = vsel %vm314, %v669, 0
    %677 = vmatprep.subr.mxu0 0.0
    %678 = vmatpush1.msra.mxu0 %v672
    %679 = vmatprep.subr.mxu0 0.0
    %680 = vmatpush1.msra.mxu0 0.0
    %681 = vmatprep.subr.mxu0 0.0
    %682 = vmatpush1.msra.mxu0 0.0
    %683 = vmatprep.subr.mxu0 0.0
    %684 = vmatpush1.msra.mxu0 0.0
    %685 = vmatprep.subr.mxu0 0.0
    %686 = vmatpush1.msra.mxu0 0.0
    %687 = vmatprep.subr.mxu0 0.0
    %688 = vmatpush1.msra.mxu0 0.0
    %689 = vmatprep.subr.mxu0 0.0
    %690 = vmatpush1.msra.mxu0 0.0
    %691 = vmatprep.subr.mxu0 0.0
    %692 = vmatpush1.msra.mxu0 0.0
    %693 = vmatprep.subr.mxu0 0.0
    %694 = vmatpush1.msra.mxu0 0.0
    %695 = vmatprep.subr.mxu0 0.0
    %696 = vmatpush1.msra.mxu0 0.0
    %697 = vmatprep.subr.mxu0 0.0
    %698 = vmatpush1.msra.mxu0 0.0
    %699 = vmatprep.subr.mxu0 0.0
    %700 = vmatpush1.msra.mxu0 0.0
    %701 = vmatprep.subr.mxu0 0.0
    %702 = vmatpush1.msra.mxu0 0.0
    %703 = vmatprep.subr.mxu0 0.0
    %704 = vmatpush1.msra.mxu0 0.0
    %705 = vmatprep.subr.mxu0 0.0
    %706 = vmatpush1.msra.mxu0 0.0
    %707 = vmatprep.subr.mxu0 0.0
    %708 = vmatpush1.msra.mxu0 0.0
    %709 = vmatprep.subr.mxu0 0.0
    %710 = vmatpush1.msra.mxu0 0.0
    %711 = vmatprep.subr.mxu0 0.0
    %712 = vmatpush1.msra.mxu0 0.0
    %713 = vmatprep.subr.mxu0 0.0
    %714 = vmatpush1.msra.mxu0 0.0
    %715 = vmatprep.subr.mxu0 0.0
    %716 = vmatpush1.msra.mxu0 0.0
    %717 = vmatprep.subr.mxu0 0.0
    %718 = vmatpush1.msra.mxu0 0.0
    %719 = vmatprep.subr.mxu0 0.0
    %720 = vmatpush1.msra.mxu0 0.0
    %721 = vmatprep.subr.mxu0 0.0
    %722 = vmatpush1.msra.mxu0 0.0
    %723 = vmatprep.subr.mxu0 0.0
    %724 = vmatpush1.msra.mxu0 0.0
    %725 = vmatprep.subr.mxu0 0.0
    %726 = vmatpush1.msra.mxu0 0.0
    %727 = vmatprep.subr.mxu0 0.0
    %728 = vmatpush1.msra.mxu0 0.0
    %729 = vmatprep.subr.mxu0 0.0
    %730 = vmatpush1.msra.mxu0 0.0
    %731 = vmatprep.subr.mxu0 0.0
    %732 = vmatpush1.msra.mxu0 0.0
    %733 = vmatprep.subr.mxu0 0.0
    %734 = vmatpush1.msra.mxu0 0.0
    %735 = vmatprep.subr.mxu0 0.0
    %736 = vmatpush1.msra.mxu0 0.0
    %737 = vmatprep.subr.mxu0 0.0
    %738 = vmatpush1.msra.mxu0 0.0
    %739 = vmatprep.subr.mxu0 0.0
    %740 = vmatpush1.msra.mxu0 0.0
    %741 = vmatprep.mubr.f32.mxu0 0.0
    %742 = vmatmul.mubr.f32.gmra.mrb[0].mxu0 %v675
    %v743 = vpop.f32.mrb[0].mxu0
    %v744 = vadd.f32 0.0, %v743
    %v745 = vpop.f32.mrb[0].mxu0
    %746 = vdwg.mxu0
    %747 = vrot.lane.b32.xlu0 %v154, 60
    %v748 = vpop.permute.xlu0 %747
    %v751 = vsel %vm314, %v670, 0
    %753 = vmatprep.subr.mxu0 0.0
    %754 = vmatpush1.msra.mxu0 %v748
    %755 = vmatprep.subr.mxu0 0.0
    %756 = vmatpush1.msra.mxu0 0.0
    %757 = vmatprep.subr.mxu0 0.0
    %758 = vmatpush1.msra.mxu0 0.0
    %759 = vmatprep.subr.mxu0 0.0
    %760 = vmatpush1.msra.mxu0 0.0
    %761 = vmatprep.subr.mxu0 0.0
    %762 = vmatpush1.msra.mxu0 0.0
    %763 = vmatprep.subr.mxu0 0.0
    %764 = vmatpush1.msra.mxu0 0.0
    %765 = vmatprep.subr.mxu0 0.0
    %766 = vmatpush1.msra.mxu0 0.0
    %767 = vmatprep.subr.mxu0 0.0
    %768 = vmatpush1.msra.mxu0 0.0
    %769 = vmatprep.subr.mxu0 0.0
    %770 = vmatpush1.msra.mxu0 0.0
    %771 = vmatprep.subr.mxu0 0.0
    %772 = vmatpush1.msra.mxu0 0.0
    %773 = vmatprep.subr.mxu0 0.0
    %774 = vmatpush1.msra.mxu0 0.0
    %775 = vmatprep.subr.mxu0 0.0
    %776 = vmatpush1.msra.mxu0 0.0
    %777 = vmatprep.subr.mxu0 0.0
    %778 = vmatpush1.msra.mxu0 0.0
    %779 = vmatprep.subr.mxu0 0.0
    %780 = vmatpush1.msra.mxu0 0.0
    %781 = vmatprep.subr.mxu0 0.0
    %782 = vmatpush1.msra.mxu0 0.0
    %783 = vmatprep.subr.mxu0 0.0
    %784 = vmatpush1.msra.mxu0 0.0
    %785 = vmatprep.subr.mxu0 0.0
    %786 = vmatpush1.msra.mxu0 0.0
    %787 = vmatprep.subr.mxu0 0.0
    %788 = vmatpush1.msra.mxu0 0.0
    %789 = vmatprep.subr.mxu0 0.0
    %790 = vmatpush1.msra.mxu0 0.0
    %791 = vmatprep.subr.mxu0 0.0
    %792 = vmatpush1.msra.mxu0 0.0
    %793 = vmatprep.subr.mxu0 0.0
    %794 = vmatpush1.msra.mxu0 0.0
    %795 = vmatprep.subr.mxu0 0.0
    %796 = vmatpush1.msra.mxu0 0.0
    %797 = vmatprep.subr.mxu0 0.0
    %798 = vmatpush1.msra.mxu0 0.0
    %799 = vmatprep.subr.mxu0 0.0
    %800 = vmatpush1.msra.mxu0 0.0
    %801 = vmatprep.subr.mxu0 0.0
    %802 = vmatpush1.msra.mxu0 0.0
    %803 = vmatprep.subr.mxu0 0.0
    %804 = vmatpush1.msra.mxu0 0.0
    %805 = vmatprep.subr.mxu0 0.0
    %806 = vmatpush1.msra.mxu0 0.0
    %807 = vmatprep.subr.mxu0 0.0
    %808 = vmatpush1.msra.mxu0 0.0
    %809 = vmatprep.subr.mxu0 0.0
    %810 = vmatpush1.msra.mxu0 0.0
    %811 = vmatprep.subr.mxu0 0.0
    %812 = vmatpush1.msra.mxu0 0.0
    %813 = vmatprep.subr.mxu0 0.0
    %814 = vmatpush1.msra.mxu0 0.0
    %815 = vmatprep.subr.mxu0 0.0
    %816 = vmatpush1.msra.mxu0 0.0
    %817 = vmatprep.mubr.f32.mxu0 0.0
    %818 = vmatmul.mubr.f32.gmra.mrb[0].mxu0 %v751
    %v819 = vpop.f32.mrb[0].mxu0
    %v820 = vadd.f32 0.0, %v819
    %v821 = vpop.f32.mrb[0].mxu0
    %822 = vdwg.mxu0
    %825 = vrot.lane.b32.xlu0 %v744, 4
    %v826 = vpop.permute.xlu0 %825
    %827 = vrot.lane.b32.xlu0 %v820, 4
    %v828 = vpop.permute.xlu0 %827
    %vm831 = vcmask 64544
    %832 = vst.msk [vmem:[#allocation2] sm:$0xff] %vm831, %v826
    %833 = vst.msk [vmem:[#allocation2 + $0x8] sm:$0xff] %vm831, %v828
    %834 = vrot.lane.b32.xlu0 %v149, 120
    %v835 = vpop.permute.xlu0 %834
    %836 = vrot.lane.b32.xlu0 %v149, 88
    %v837 = vpop.permute.xlu0 %836
    %v838 = vsel %vm160, %v835, 0
    %v840 = vsel %vm160, %v837, 0
    %842 = vmatprep.subr.mxu0 0.0
    %843 = vmatpush1.xpose.msra.mxu0 %v840
    %844 = vmatprep.subr.mxu0 0.0
    %845 = vmatpush1.xpose.msra.mxu0 0.0
    %846 = vmatprep.subr.mxu0 0.0
    %847 = vmatpush1.xpose.msra.mxu0 0.0
    %848 = vmatprep.subr.mxu0 0.0
    %849 = vmatpush1.xpose.msra.mxu0 0.0
    %850 = vmatprep.subr.mxu0 0.0
    %851 = vmatpush1.xpose.msra.mxu0 0.0
    %852 = vmatprep.subr.mxu0 0.0
    %853 = vmatpush1.xpose.msra.mxu0 0.0
    %854 = vmatprep.subr.mxu0 0.0
    %855 = vmatpush1.xpose.msra.mxu0 0.0
    %856 = vmatprep.subr.mxu0 0.0
    %857 = vmatpush1.xpose.msra.mxu0 0.0
    %858 = vmatprep.subr.mxu0 0.0
    %859 = vmatpush1.xpose.msra.mxu0 0.0
    %860 = vmatprep.subr.mxu0 0.0
    %861 = vmatpush1.xpose.msra.mxu0 0.0
    %862 = vmatprep.subr.mxu0 0.0
    %863 = vmatpush1.xpose.msra.mxu0 0.0
    %864 = vmatprep.subr.mxu0 0.0
    %865 = vmatpush1.xpose.msra.mxu0 0.0
    %866 = vmatprep.subr.mxu0 0.0
    %867 = vmatpush1.xpose.msra.mxu0 0.0
    %868 = vmatprep.subr.mxu0 0.0
    %869 = vmatpush1.xpose.msra.mxu0 0.0
    %870 = vmatprep.subr.mxu0 0.0
    %871 = vmatpush1.xpose.msra.mxu0 0.0
    %872 = vmatprep.subr.mxu0 0.0
    %873 = vmatpush1.xpose.msra.mxu0 0.0
    %874 = vmatprep.subr.mxu0 0.0
    %875 = vmatpush1.xpose.msra.mxu0 0.0
    %876 = vmatprep.subr.mxu0 0.0
    %877 = vmatpush1.xpose.msra.mxu0 0.0
    %878 = vmatprep.subr.mxu0 0.0
    %879 = vmatpush1.xpose.msra.mxu0 0.0
    %880 = vmatprep.subr.mxu0 0.0
    %881 = vmatpush1.xpose.msra.mxu0 0.0
    %882 = vmatprep.subr.mxu0 0.0
    %883 = vmatpush1.xpose.msra.mxu0 0.0
    %884 = vmatprep.subr.mxu0 0.0
    %885 = vmatpush1.xpose.msra.mxu0 0.0
    %886 = vmatprep.subr.mxu0 0.0
    %887 = vmatpush1.xpose.msra.mxu0 0.0
    %888 = vmatprep.subr.mxu0 0.0
    %889 = vmatpush1.xpose.msra.mxu0 0.0
    %890 = vmatprep.subr.mxu0 0.0
    %891 = vmatpush1.xpose.msra.mxu0 0.0
    %892 = vmatprep.subr.mxu0 0.0
    %893 = vmatpush1.xpose.msra.mxu0 0.0
    %894 = vmatprep.subr.mxu0 0.0
    %895 = vmatpush1.xpose.msra.mxu0 0.0
    %896 = vmatprep.subr.mxu0 0.0
    %897 = vmatpush1.xpose.msra.mxu0 0.0
    %898 = vmatprep.subr.mxu0 0.0
    %899 = vmatpush1.xpose.msra.mxu0 0.0
    %900 = vmatprep.subr.mxu0 0.0
    %901 = vmatpush1.xpose.msra.mxu0 0.0
    %902 = vmatprep.subr.mxu0 0.0
    %903 = vmatpush1.xpose.msra.mxu0 0.0
    %904 = vmatprep.subr.mxu0 0.0
    %905 = vmatpush1.xpose.msra.mxu0 0.0
    %906 = vmatprep.mubr.f32.mxu0 0.0
    %907 = vmatmul.mubr.f32.gmra.mrb[0].mxu0 %v838
    %v908 = vpop.f32.mrb[0].mxu0
    %v909 = vadd.f32 0.0, %v908
    %v910 = vpop.f32.mrb[0].mxu0
    %911 = vdwg.mxu0
    %912 = vrot.lane.b32.xlu0 %v154, 120
    %v913 = vpop.permute.xlu0 %912
    %914 = vrot.lane.b32.xlu0 %v154, 88
    %v915 = vpop.permute.xlu0 %914
    %v916 = vsel %vm160, %v913, 0
    %v918 = vsel %vm160, %v915, 0
    %920 = vmatprep.subr.mxu0 0.0
    %921 = vmatpush1.xpose.msra.mxu0 %v918
    %922 = vmatprep.subr.mxu0 0.0
    %923 = vmatpush1.xpose.msra.mxu0 0.0
    %924 = vmatprep.subr.mxu0 0.0
    %925 = vmatpush1.xpose.msra.mxu0 0.0
    %926 = vmatprep.subr.mxu0 0.0
    %927 = vmatpush1.xpose.msra.mxu0 0.0
    %928 = vmatprep.subr.mxu0 0.0
    %929 = vmatpush1.xpose.msra.mxu0 0.0
    %930 = vmatprep.subr.mxu0 0.0
    %931 = vmatpush1.xpose.msra.mxu0 0.0
    %932 = vmatprep.subr.mxu0 0.0
    %933 = vmatpush1.xpose.msra.mxu0 0.0
    %934 = vmatprep.subr.mxu0 0.0
    %935 = vmatpush1.xpose.msra.mxu0 0.0
    %936 = vmatprep.subr.mxu0 0.0
    %937 = vmatpush1.xpose.msra.mxu0 0.0
    %938 = vmatprep.subr.mxu0 0.0
    %939 = vmatpush1.xpose.msra.mxu0 0.0
    %940 = vmatprep.subr.mxu0 0.0
    %941 = vmatpush1.xpose.msra.mxu0 0.0
    %942 = vmatprep.subr.mxu0 0.0
    %943 = vmatpush1.xpose.msra.mxu0 0.0
    %944 = vmatprep.subr.mxu0 0.0
    %945 = vmatpush1.xpose.msra.mxu0 0.0
    %946 = vmatprep.subr.mxu0 0.0
    %947 = vmatpush1.xpose.msra.mxu0 0.0
    %948 = vmatprep.subr.mxu0 0.0
    %949 = vmatpush1.xpose.msra.mxu0 0.0
    %950 = vmatprep.subr.mxu0 0.0
    %951 = vmatpush1.xpose.msra.mxu0 0.0
    %952 = vmatprep.subr.mxu0 0.0
    %953 = vmatpush1.xpose.msra.mxu0 0.0
    %954 = vmatprep.subr.mxu0 0.0
    %955 = vmatpush1.xpose.msra.mxu0 0.0
    %956 = vmatprep.subr.mxu0 0.0
    %957 = vmatpush1.xpose.msra.mxu0 0.0
    %958 = vmatprep.subr.mxu0 0.0
    %959 = vmatpush1.xpose.msra.mxu0 0.0
    %960 = vmatprep.subr.mxu0 0.0
    %961 = vmatpush1.xpose.msra.mxu0 0.0
    %962 = vmatprep.subr.mxu0 0.0
    %963 = vmatpush1.xpose.msra.mxu0 0.0
    %964 = vmatprep.subr.mxu0 0.0
    %965 = vmatpush1.xpose.msra.mxu0 0.0
    %966 = vmatprep.subr.mxu0 0.0
    %967 = vmatpush1.xpose.msra.mxu0 0.0
    %968 = vmatprep.subr.mxu0 0.0
    %969 = vmatpush1.xpose.msra.mxu0 0.0
    %970 = vmatprep.subr.mxu0 0.0
    %971 = vmatpush1.xpose.msra.mxu0 0.0
    %972 = vmatprep.subr.mxu0 0.0
    %973 = vmatpush1.xpose.msra.mxu0 0.0
    %974 = vmatprep.subr.mxu0 0.0
    %975 = vmatpush1.xpose.msra.mxu0 0.0
    %976 = vmatprep.subr.mxu0 0.0
    %977 = vmatpush1.xpose.msra.mxu0 0.0
    %978 = vmatprep.subr.mxu0 0.0
    %979 = vmatpush1.xpose.msra.mxu0 0.0
    %980 = vmatprep.subr.mxu0 0.0
    %981 = vmatpush1.xpose.msra.mxu0 0.0
    %982 = vmatprep.subr.mxu0 0.0
    %983 = vmatpush1.xpose.msra.mxu0 0.0
    %984 = vmatprep.mubr.f32.mxu0 0.0
    %985 = vmatmul.mubr.f32.gmra.mrb[0].mxu0 %v916
    %v986 = vpop.f32.mrb[0].mxu0
    %v987 = vadd.f32 0.0, %v986
    %v988 = vpop.f32.mrb[0].mxu0
    %989 = vdwg.mxu0
    %v990 = vmul.f32 %v909, 0.5
    %v991 = vmul.f32 %v987, 0.5
    %v992 = vsel %vm314, %v990, -inf
    %993 = vmax.xlane.f32.xlu0 %v992
    %v994 = vpop.xlane.xlu0 %993
    %v995 = vsel %vm314, %v991, -inf
    %996 = vmax.xlane.f32.xlu0 %v995
    %v997 = vpop.xlane.xlu0 %996
    %v998 = vsub.f32 %v990, %v994
    %v999 = vsub.f32 %v991, %v997
    %v1000 = vmul.f32 %v998, 1.442695
    %v1001 = vpow.pop %v1000
    %v1002 = vmul.f32 %v999, 1.442695
    %v1003 = vpow.pop %v1002
    %v1004 = vsel %vm314, %v1001, 0.0
    %1005 = vadd.xlane.f32.xlu0 %v1004
    %v1006 = vpop.xlane.xlu0 %1005
    %v1007 = vsel %vm314, %v1003, 0.0
    %1008 = vadd.xlane.f32.xlu0 %v1007
    %v1009 = vpop.xlane.xlu0 %1008
    %v1010 = vrcp.pop %v1006
    %v1011 = vrcp.pop %v1009
    %v1012 = vmul.f32 %v1001, %v1010
    %v1013 = vmul.f32 %v1003, %v1011
    %1014 = vrot.lane.b32.xlu0 %v149, 56
    %v1015 = vpop.permute.xlu0 %1014
    %v1018 = vsel %vm314, %v1012, 0
    %1020 = vmatprep.subr.mxu0 0.0
    %1021 = vmatpush1.msra.mxu0 %v1015
    %1022 = vmatprep.subr.mxu0 0.0
    %1023 = vmatpush1.msra.mxu0 0.0
    %1024 = vmatprep.subr.mxu0 0.0
    %1025 = vmatpush1.msra.mxu0 0.0
    %1026 = vmatprep.subr.mxu0 0.0
    %1027 = vmatpush1.msra.mxu0 0.0
    %1028 = vmatprep.subr.mxu0 0.0
    %1029 = vmatpush1.msra.mxu0 0.0
    %1030 = vmatprep.subr.mxu0 0.0
    %1031 = vmatpush1.msra.mxu0 0.0
    %1032 = vmatprep.subr.mxu0 0.0
    %1033 = vmatpush1.msra.mxu0 0.0
    %1034 = vmatprep.subr.mxu0 0.0
    %1035 = vmatpush1.msra.mxu0 0.0
    %1036 = vmatprep.subr.mxu0 0.0
    %1037 = vmatpush1.msra.mxu0 0.0
    %1038 = vmatprep.subr.mxu0 0.0
    %1039 = vmatpush1.msra.mxu0 0.0
    %1040 = vmatprep.subr.mxu0 0.0
    %1041 = vmatpush1.msra.mxu0 0.0
    %1042 = vmatprep.subr.mxu0 0.0
    %1043 = vmatpush1.msra.mxu0 0.0
    %1044 = vmatprep.subr.mxu0 0.0
    %1045 = vmatpush1.msra.mxu0 0.0
    %1046 = vmatprep.subr.mxu0 0.0
    %1047 = vmatpush1.msra.mxu0 0.0
    %1048 = vmatprep.subr.mxu0 0.0
    %1049 = vmatpush1.msra.mxu0 0.0
    %1050 = vmatprep.subr.mxu0 0.0
    %1051 = vmatpush1.msra.mxu0 0.0
    %1052 = vmatprep.subr.mxu0 0.0
    %1053 = vmatpush1.msra.mxu0 0.0
    %1054 = vmatprep.subr.mxu0 0.0
    %1055 = vmatpush1.msra.mxu0 0.0
    %1056 = vmatprep.subr.mxu0 0.0
    %1057 = vmatpush1.msra.mxu0 0.0
    %1058 = vmatprep.subr.mxu0 0.0
    %1059 = vmatpush1.msra.mxu0 0.0
    %1060 = vmatprep.subr.mxu0 0.0
    %1061 = vmatpush1.msra.mxu0 0.0
    %1062 = vmatprep.subr.mxu0 0.0
    %1063 = vmatpush1.msra.mxu0 0.0
    %1064 = vmatprep.subr.mxu0 0.0
    %1065 = vmatpush1.msra.mxu0 0.0
    %1066 = vmatprep.subr.mxu0 0.0
    %1067 = vmatpush1.msra.mxu0 0.0
    %1068 = vmatprep.subr.mxu0 0.0
    %1069 = vmatpush1.msra.mxu0 0.0
    %1070 = vmatprep.subr.mxu0 0.0
    %1071 = vmatpush1.msra.mxu0 0.0
    %1072 = vmatprep.subr.mxu0 0.0
    %1073 = vmatpush1.msra.mxu0 0.0
    %1074 = vmatprep.subr.mxu0 0.0
    %1075 = vmatpush1.msra.mxu0 0.0
    %1076 = vmatprep.subr.mxu0 0.0
    %1077 = vmatpush1.msra.mxu0 0.0
    %1078 = vmatprep.subr.mxu0 0.0
    %1079 = vmatpush1.msra.mxu0 0.0
    %1080 = vmatprep.subr.mxu0 0.0
    %1081 = vmatpush1.msra.mxu0 0.0
    %1082 = vmatprep.subr.mxu0 0.0
    %1083 = vmatpush1.msra.mxu0 0.0
    %1084 = vmatprep.mubr.f32.mxu0 0.0
    %1085 = vmatmul.mubr.f32.gmra.mrb[0].mxu0 %v1018
    %v1086 = vpop.f32.mrb[0].mxu0
    %v1087 = vadd.f32 0.0, %v1086
    %v1088 = vpop.f32.mrb[0].mxu0
    %1089 = vdwg.mxu0
    %1090 = vrot.lane.b32.xlu0 %v154, 56
    %v1091 = vpop.permute.xlu0 %1090
    %v1094 = vsel %vm314, %v1013, 0
    %1096 = vmatprep.subr.mxu0 0.0
    %1097 = vmatpush1.msra.mxu0 %v1091
    %1098 = vmatprep.subr.mxu0 0.0
    %1099 = vmatpush1.msra.mxu0 0.0
    %1100 = vmatprep.subr.mxu0 0.0
    %1101 = vmatpush1.msra.mxu0 0.0
    %1102 = vmatprep.subr.mxu0 0.0
    %1103 = vmatpush1.msra.mxu0 0.0
    %1104 = vmatprep.subr.mxu0 0.0
    %1105 = vmatpush1.msra.mxu0 0.0
    %1106 = vmatprep.subr.mxu0 0.0
    %1107 = vmatpush1.msra.mxu0 0.0
    %1108 = vmatprep.subr.mxu0 0.0
    %1109 = vmatpush1.msra.mxu0 0.0
    %1110 = vmatprep.subr.mxu0 0.0
    %1111 = vmatpush1.msra.mxu0 0.0
    %1112 = vmatprep.subr.mxu0 0.0
    %1113 = vmatpush1.msra.mxu0 0.0
    %1114 = vmatprep.subr.mxu0 0.0
    %1115 = vmatpush1.msra.mxu0 0.0
    %1116 = vmatprep.subr.mxu0 0.0
    %1117 = vmatpush1.msra.mxu0 0.0
    %1118 = vmatprep.subr.mxu0 0.0
    %1119 = vmatpush1.msra.mxu0 0.0
    %1120 = vmatprep.subr.mxu0 0.0
    %1121 = vmatpush1.msra.mxu0 0.0
    %1122 = vmatprep.subr.mxu0 0.0
    %1123 = vmatpush1.msra.mxu0 0.0
    %1124 = vmatprep.subr.mxu0 0.0
    %1125 = vmatpush1.msra.mxu0 0.0
    %1126 = vmatprep.subr.mxu0 0.0
    %1127 = vmatpush1.msra.mxu0 0.0
    %1128 = vmatprep.subr.mxu0 0.0
    %1129 = vmatpush1.msra.mxu0 0.0
    %1130 = vmatprep.subr.mxu0 0.0
    %1131 = vmatpush1.msra.mxu0 0.0
    %1132 = vmatprep.subr.mxu0 0.0
    %1133 = vmatpush1.msra.mxu0 0.0
    %1134 = vmatprep.subr.mxu0 0.0
    %1135 = vmatpush1.msra.mxu0 0.0
    %1136 = vmatprep.subr.mxu0 0.0
    %1137 = vmatpush1.msra.mxu0 0.0
    %1138 = vmatprep.subr.mxu0 0.0
    %1139 = vmatpush1.msra.mxu0 0.0
    %1140 = vmatprep.subr.mxu0 0.0
    %1141 = vmatpush1.msra.mxu0 0.0
    %1142 = vmatprep.subr.mxu0 0.0
    %1143 = vmatpush1.msra.mxu0 0.0
    %1144 = vmatprep.subr.mxu0 0.0
    %1145 = vmatpush1.msra.mxu0 0.0
    %1146 = vmatprep.subr.mxu0 0.0
    %1147 = vmatpush1.msra.mxu0 0.0
    %1148 = vmatprep.subr.mxu0 0.0
    %1149 = vmatpush1.msra.mxu0 0.0
    %1150 = vmatprep.subr.mxu0 0.0
    %1151 = vmatpush1.msra.mxu0 0.0
    %1152 = vmatprep.subr.mxu0 0.0
    %1153 = vmatpush1.msra.mxu0 0.0
    %1154 = vmatprep.subr.mxu0 0.0
    %1155 = vmatpush1.msra.mxu0 0.0
    %1156 = vmatprep.subr.mxu0 0.0
    %1157 = vmatpush1.msra.mxu0 0.0
    %1158 = vmatprep.subr.mxu0 0.0
    %1159 = vmatpush1.msra.mxu0 0.0
    %1160 = vmatprep.mubr.f32.mxu0 0.0
    %1161 = vmatmul.mubr.f32.gmra.mrb[0].mxu0 %v1094
    %v1162 = vpop.f32.mrb[0].mxu0
    %v1163 = vadd.f32 0.0, %v1162
    %v1164 = vpop.f32.mrb[0].mxu0
    %1165 = vdwg.mxu0
    %1168 = vrot.lane.b32.xlu0 %v1087, 8
    %v1169 = vpop.permute.xlu0 %1168
    %1170 = vrot.lane.b32.xlu0 %v1163, 8
    %v1171 = vpop.permute.xlu0 %1170
    %vm1174 = vcmask 97344
    %1175 = vst.msk [vmem:[#allocation2] sm:$0xff] %vm1174, %v1169
    %1176 = vst.msk [vmem:[#allocation2 + $0x8] sm:$0xff] %vm1174, %v1171
    %1177 = vrot.lane.b32.xlu0 %v149, 116
    %v1178 = vpop.permute.xlu0 %1177
    %1179 = vrot.lane.b32.xlu0 %v149, 84
    %v1180 = vpop.permute.xlu0 %1179
    %v1181 = vsel %vm160, %v1178, 0
    %v1183 = vsel %vm160, %v1180, 0
    %1185 = vmatprep.subr.mxu0 0.0
    %1186 = vmatpush1.xpose.msra.mxu0 %v1183
    %1187 = vmatprep.subr.mxu0 0.0
    %1188 = vmatpush1.xpose.msra.mxu0 0.0
    %1189 = vmatprep.subr.mxu0 0.0
    %1190 = vmatpush1.xpose.msra.mxu0 0.0
    %1191 = vmatprep.subr.mxu0 0.0
    %1192 = vmatpush1.xpose.msra.mxu0 0.0
    %1193 = vmatprep.subr.mxu0 0.0
    %1194 = vmatpush1.xpose.msra.mxu0 0.0
    %1195 = vmatprep.subr.mxu0 0.0
    %1196 = vmatpush1.xpose.msra.mxu0 0.0
    %1197 = vmatprep.subr.mxu0 0.0
    %1198 = vmatpush1.xpose.msra.mxu0 0.0
    %1199 = vmatprep.subr.mxu0 0.0
    %1200 = vmatpush1.xpose.msra.mxu0 0.0
    %1201 = vmatprep.subr.mxu0 0.0
    %1202 = vmatpush1.xpose.msra.mxu0 0.0
    %1203 = vmatprep.subr.mxu0 0.0
    %1204 = vmatpush1.xpose.msra.mxu0 0.0
    %1205 = vmatprep.subr.mxu0 0.0
    %1206 = vmatpush1.xpose.msra.mxu0 0.0
    %1207 = vmatprep.subr.mxu0 0.0
    %1208 = vmatpush1.xpose.msra.mxu0 0.0
    %1209 = vmatprep.subr.mxu0 0.0
    %1210 = vmatpush1.xpose.msra.mxu0 0.0
    %1211 = vmatprep.subr.mxu0 0.0
    %1212 = vmatpush1.xpose.msra.mxu0 0.0
    %1213 = vmatprep.subr.mxu0 0.0
    %1214 = vmatpush1.xpose.msra.mxu0 0.0
    %1215 = vmatprep.subr.mxu0 0.0
    %1216 = vmatpush1.xpose.msra.mxu0 0.0
    %1217 = vmatprep.subr.mxu0 0.0
    %1218 = vmatpush1.xpose.msra.mxu0 0.0
    %1219 = vmatprep.subr.mxu0 0.0
    %1220 = vmatpush1.xpose.msra.mxu0 0.0
    %1221 = vmatprep.subr.mxu0 0.0
    %1222 = vmatpush1.xpose.msra.mxu0 0.0
    %1223 = vmatprep.subr.mxu0 0.0
    %1224 = vmatpush1.xpose.msra.mxu0 0.0
    %1225 = vmatprep.subr.mxu0 0.0
    %1226 = vmatpush1.xpose.msra.mxu0 0.0
    %1227 = vmatprep.subr.mxu0 0.0
    %1228 = vmatpush1.xpose.msra.mxu0 0.0
    %1229 = vmatprep.subr.mxu0 0.0
    %1230 = vmatpush1.xpose.msra.mxu0 0.0
    %1231 = vmatprep.subr.mxu0 0.0
    %1232 = vmatpush1.xpose.msra.mxu0 0.0
    %1233 = vmatprep.subr.mxu0 0.0
    %1234 = vmatpush1.xpose.msra.mxu0 0.0
    %1235 = vmatprep.subr.mxu0 0.0
    %1236 = vmatpush1.xpose.msra.mxu0 0.0
    %1237 = vmatprep.subr.mxu0 0.0
    %1238 = vmatpush1.xpose.msra.mxu0 0.0
    %1239 = vmatprep.subr.mxu0 0.0
    %1240 = vmatpush1.xpose.msra.mxu0 0.0
    %1241 = vmatprep.subr.mxu0 0.0
    %1242 = vmatpush1.xpose.msra.mxu0 0.0
    %1243 = vmatprep.subr.mxu0 0.0
    %1244 = vmatpush1.xpose.msra.mxu0 0.0
    %1245 = vmatprep.subr.mxu0 0.0
    %1246 = vmatpush1.xpose.msra.mxu0 0.0
    %1247 = vmatprep.subr.mxu0 0.0
    %1248 = vmatpush1.xpose.msra.mxu0 0.0
    %1249 = vmatprep.mubr.f32.mxu0 0.0
    %1250 = vmatmul.mubr.f32.gmra.mrb[0].mxu0 %v1181
    %v1251 = vpop.f32.mrb[0].mxu0
    %v1252 = vadd.f32 0.0, %v1251
    %v1253 = vpop.f32.mrb[0].mxu0
    %1254 = vdwg.mxu0
    %1255 = vrot.lane.b32.xlu0 %v154, 116
    %v1256 = vpop.permute.xlu0 %1255
    %1257 = vrot.lane.b32.xlu0 %v154, 84
    %v1258 = vpop.permute.xlu0 %1257
    %v1259 = vsel %vm160, %v1256, 0
    %v1261 = vsel %vm160, %v1258, 0
    %1263 = vmatprep.subr.mxu0 0.0
    %1264 = vmatpush1.xpose.msra.mxu0 %v1261
    %1265 = vmatprep.subr.mxu0 0.0
    %1266 = vmatpush1.xpose.msra.mxu0 0.0
    %1267 = vmatprep.subr.mxu0 0.0
    %1268 = vmatpush1.xpose.msra.mxu0 0.0
    %1269 = vmatprep.subr.mxu0 0.0
    %1270 = vmatpush1.xpose.msra.mxu0 0.0
    %1271 = vmatprep.subr.mxu0 0.0
    %1272 = vmatpush1.xpose.msra.mxu0 0.0
    %1273 = vmatprep.subr.mxu0 0.0
    %1274 = vmatpush1.xpose.msra.mxu0 0.0
    %1275 = vmatprep.subr.mxu0 0.0
    %1276 = vmatpush1.xpose.msra.mxu0 0.0
    %1277 = vmatprep.subr.mxu0 0.0
    %1278 = vmatpush1.xpose.msra.mxu0 0.0
    %1279 = vmatprep.subr.mxu0 0.0
    %1280 = vmatpush1.xpose.msra.mxu0 0.0
    %1281 = vmatprep.subr.mxu0 0.0
    %1282 = vmatpush1.xpose.msra.mxu0 0.0
    %1283 = vmatprep.subr.mxu0 0.0
    %1284 = vmatpush1.xpose.msra.mxu0 0.0
    %1285 = vmatprep.subr.mxu0 0.0
    %1286 = vmatpush1.xpose.msra.mxu0 0.0
    %1287 = vmatprep.subr.mxu0 0.0
    %1288 = vmatpush1.xpose.msra.mxu0 0.0
    %1289 = vmatprep.subr.mxu0 0.0
    %1290 = vmatpush1.xpose.msra.mxu0 0.0
    %1291 = vmatprep.subr.mxu0 0.0
    %1292 = vmatpush1.xpose.msra.mxu0 0.0
    %1293 = vmatprep.subr.mxu0 0.0
    %1294 = vmatpush1.xpose.msra.mxu0 0.0
    %1295 = vmatprep.subr.mxu0 0.0
    %1296 = vmatpush1.xpose.msra.mxu0 0.0
    %1297 = vmatprep.subr.mxu0 0.0
    %1298 = vmatpush1.xpose.msra.mxu0 0.0
    %1299 = vmatprep.subr.mxu0 0.0
    %1300 = vmatpush1.xpose.msra.mxu0 0.0
    %1301 = vmatprep.subr.mxu0 0.0
    %1302 = vmatpush1.xpose.msra.mxu0 0.0
    %1303 = vmatprep.subr.mxu0 0.0
    %1304 = vmatpush1.xpose.msra.mxu0 0.0
    %1305 = vmatprep.subr.mxu0 0.0
    %1306 = vmatpush1.xpose.msra.mxu0 0.0
    %1307 = vmatprep.subr.mxu0 0.0
    %1308 = vmatpush1.xpose.msra.mxu0 0.0
    %1309 = vmatprep.subr.mxu0 0.0
    %1310 = vmatpush1.xpose.msra.mxu0 0.0
    %1311 = vmatprep.subr.mxu0 0.0
    %1312 = vmatpush1.xpose.msra.mxu0 0.0
    %1313 = vmatprep.subr.mxu0 0.0
    %1314 = vmatpush1.xpose.msra.mxu0 0.0
    %1315 = vmatprep.subr.mxu0 0.0
    %1316 = vmatpush1.xpose.msra.mxu0 0.0
    %1317 = vmatprep.subr.mxu0 0.0
    %1318 = vmatpush1.xpose.msra.mxu0 0.0
    %1319 = vmatprep.subr.mxu0 0.0
    %1320 = vmatpush1.xpose.msra.mxu0 0.0
    %1321 = vmatprep.subr.mxu0 0.0
    %1322 = vmatpush1.xpose.msra.mxu0 0.0
    %1323 = vmatprep.subr.mxu0 0.0
    %1324 = vmatpush1.xpose.msra.mxu0 0.0
    %1325 = vmatprep.subr.mxu0 0.0
    %1326 = vmatpush1.xpose.msra.mxu0 0.0
    %1327 = vmatprep.mubr.f32.mxu0 0.0
    %1328 = vmatmul.mubr.f32.gmra.mrb[0].mxu0 %v1259
    %v1329 = vpop.f32.mrb[0].mxu0
    %v1330 = vadd.f32 0.0, %v1329
    %v1331 = vpop.f32.mrb[0].mxu0
    %1332 = vdwg.mxu0
    %v1333 = vmul.f32 %v1252, 0.5
    %v1334 = vmul.f32 %v1330, 0.5
    %v1335 = vsel %vm314, %v1333, -inf
    %1336 = vmax.xlane.f32.xlu0 %v1335
    %v1337 = vpop.xlane.xlu0 %1336
    %v1338 = vsel %vm314, %v1334, -inf
    %1339 = vmax.xlane.f32.xlu0 %v1338
    %v1340 = vpop.xlane.xlu0 %1339
    %v1341 = vsub.f32 %v1333, %v1337
    %v1342 = vsub.f32 %v1334, %v1340
    %v1343 = vmul.f32 %v1341, 1.442695
    %v1344 = vpow.pop %v1343
    %v1345 = vmul.f32 %v1342, 1.442695
    %v1346 = vpow.pop %v1345
    %v1347 = vsel %vm314, %v1344, 0.0
    %1348 = vadd.xlane.f32.xlu0 %v1347
    %v1349 = vpop.xlane.xlu0 %1348
    %v1350 = vsel %vm314, %v1346, 0.0
    %1351 = vadd.xlane.f32.xlu0 %v1350
    %v1352 = vpop.xlane.xlu0 %1351
    %v1353 = vrcp.pop %v1349
    %v1354 = vrcp.pop %v1352
    %v1355 = vmul.f32 %v1344, %v1353
    %v1356 = vmul.f32 %v1346, %v1354
    %1357 = vrot.lane.b32.xlu0 %v149, 52
    %v1358 = vpop.permute.xlu0 %1357
    %v1361 = vsel %vm314, %v1355, 0
    %1363 = vmatprep.subr.mxu0 0.0
    %1364 = vmatpush1.msra.mxu0 %v1358
    %1365 = vmatprep.subr.mxu0 0.0
    %1366 = vmatpush1.msra.mxu0 0.0
    %1367 = vmatprep.subr.mxu0 0.0
    %1368 = vmatpush1.msra.mxu0 0.0
    %1369 = vmatprep.subr.mxu0 0.0
    %1370 = vmatpush1.msra.mxu0 0.0
    %1371 = vmatprep.subr.mxu0 0.0
    %1372 = vmatpush1.msra.mxu0 0.0
    %1373 = vmatprep.subr.mxu0 0.0
    %1374 = vmatpush1.msra.mxu0 0.0
    %1375 = vmatprep.subr.mxu0 0.0
    %1376 = vmatpush1.msra.mxu0 0.0
    %1377 = vmatprep.subr.mxu0 0.0
    %1378 = vmatpush1.msra.mxu0 0.0
    %1379 = vmatprep.subr.mxu0 0.0
    %1380 = vmatpush1.msra.mxu0 0.0
    %1381 = vmatprep.subr.mxu0 0.0
    %1382 = vmatpush1.msra.mxu0 0.0
    %1383 = vmatprep.subr.mxu0 0.0
    %1384 = vmatpush1.msra.mxu0 0.0
    %1385 = vmatprep.subr.mxu0 0.0
    %1386 = vmatpush1.msra.mxu0 0.0
    %1387 = vmatprep.subr.mxu0 0.0
    %1388 = vmatpush1.msra.mxu0 0.0
    %1389 = vmatprep.subr.mxu0 0.0
    %1390 = vmatpush1.msra.mxu0 0.0
    %1391 = vmatprep.subr.mxu0 0.0
    %1392 = vmatpush1.msra.mxu0 0.0
    %1393 = vmatprep.subr.mxu0 0.0
    %1394 = vmatpush1.msra.mxu0 0.0
    %1395 = vmatprep.subr.mxu0 0.0
    %1396 = vmatpush1.msra.mxu0 0.0
    %1397 = vmatprep.subr.mxu0 0.0
    %1398 = vmatpush1.msra.mxu0 0.0
    %1399 = vmatprep.subr.mxu0 0.0
    %1400 = vmatpush1.msra.mxu0 0.0
    %1401 = vmatprep.subr.mxu0 0.0
    %1402 = vmatpush1.msra.mxu0 0.0
    %1403 = vmatprep.subr.mxu0 0.0
    %1404 = vmatpush1.msra.mxu0 0.0
    %1405 = vmatprep.subr.mxu0 0.0
    %1406 = vmatpush1.msra.mxu0 0.0
    %1407 = vmatprep.subr.mxu0 0.0
    %1408 = vmatpush1.msra.mxu0 0.0
    %1409 = vmatprep.subr.mxu0 0.0
    %1410 = vmatpush1.msra.mxu0 0.0
    %1411 = vmatprep.subr.mxu0 0.0
    %1412 = vmatpush1.msra.mxu0 0.0
    %1413 = vmatprep.subr.mxu0 0.0
    %1414 = vmatpush1.msra.mxu0 0.0
    %1415 = vmatprep.subr.mxu0 0.0
    %1416 = vmatpush1.msra.mxu0 0.0
    %1417 = vmatprep.subr.mxu0 0.0
    %1418 = vmatpush1.msra.mxu0 0.0
    %1419 = vmatprep.subr.mxu0 0.0
    %1420 = vmatpush1.msra.mxu0 0.0
    %1421 = vmatprep.subr.mxu0 0.0
    %1422 = vmatpush1.msra.mxu0 0.0
    %1423 = vmatprep.subr.mxu0 0.0
    %1424 = vmatpush1.msra.mxu0 0.0
    %1425 = vmatprep.subr.mxu0 0.0
    %1426 = vmatpush1.msra.mxu0 0.0
    %1427 = vmatprep.mubr.f32.mxu0 0.0
    %1428 = vmatmul.mubr.f32.gmra.mrb[0].mxu0 %v1361
    %v1429 = vpop.f32.mrb[0].mxu0
    %v1430 = vadd.f32 0.0, %v1429
    %v1431 = vpop.f32.mrb[0].mxu0
    %1432 = vdwg.mxu0
    %1433 = vrot.lane.b32.xlu0 %v154, 52
    %v1434 = vpop.permute.xlu0 %1433
    %v1437 = vsel %vm314, %v1356, 0
    %1439 = vmatprep.subr.mxu0 0.0
    %1440 = vmatpush1.msra.mxu0 %v1434
    %1441 = vmatprep.subr.mxu0 0.0
    %1442 = vmatpush1.msra.mxu0 0.0
    %1443 = vmatprep.subr.mxu0 0.0
    %1444 = vmatpush1.msra.mxu0 0.0
    %1445 = vmatprep.subr.mxu0 0.0
    %1446 = vmatpush1.msra.mxu0 0.0
    %1447 = vmatprep.subr.mxu0 0.0
    %1448 = vmatpush1.msra.mxu0 0.0
    %1449 = vmatprep.subr.mxu0 0.0
    %1450 = vmatpush1.msra.mxu0 0.0
    %1451 = vmatprep.subr.mxu0 0.0
    %1452 = vmatpush1.msra.mxu0 0.0
    %1453 = vmatprep.subr.mxu0 0.0
    %1454 = vmatpush1.msra.mxu0 0.0
    %1455 = vmatprep.subr.mxu0 0.0
    %1456 = vmatpush1.msra.mxu0 0.0
    %1457 = vmatprep.subr.mxu0 0.0
    %1458 = vmatpush1.msra.mxu0 0.0
    %1459 = vmatprep.subr.mxu0 0.0
    %1460 = vmatpush1.msra.mxu0 0.0
    %1461 = vmatprep.subr.mxu0 0.0
    %1462 = vmatpush1.msra.mxu0 0.0
    %1463 = vmatprep.subr.mxu0 0.0
    %1464 = vmatpush1.msra.mxu0 0.0
    %1465 = vmatprep.subr.mxu0 0.0
    %1466 = vmatpush1.msra.mxu0 0.0
    %1467 = vmatprep.subr.mxu0 0.0
    %1468 = vmatpush1.msra.mxu0 0.0
    %1469 = vmatprep.subr.mxu0 0.0
    %1470 = vmatpush1.msra.mxu0 0.0
    %1471 = vmatprep.subr.mxu0 0.0
    %1472 = vmatpush1.msra.mxu0 0.0
    %1473 = vmatprep.subr.mxu0 0.0
    %1474 = vmatpush1.msra.mxu0 0.0
    %1475 = vmatprep.subr.mxu0 0.0
    %1476 = vmatpush1.msra.mxu0 0.0
    %1477 = vmatprep.subr.mxu0 0.0
    %1478 = vmatpush1.msra.mxu0 0.0
    %1479 = vmatprep.subr.mxu0 0.0
    %1480 = vmatpush1.msra.mxu0 0.0
    %1481 = vmatprep.subr.mxu0 0.0
    %1482 = vmatpush1.msra.mxu0 0.0
    %1483 = vmatprep.subr.mxu0 0.0
    %1484 = vmatpush1.msra.mxu0 0.0
    %1485 = vmatprep.subr.mxu0 0.0
    %1486 = vmatpush1.msra.mxu0 0.0
    %1487 = vmatprep.subr.mxu0 0.0
    %1488 = vmatpush1.msra.mxu0 0.0
    %1489 = vmatprep.subr.mxu0 0.0
    %1490 = vmatpush1.msra.mxu0 0.0
    %1491 = vmatprep.subr.mxu0 0.0
    %1492 = vmatpush1.msra.mxu0 0.0
    %1493 = vmatprep.subr.mxu0 0.0
    %1494 = vmatpush1.msra.mxu0 0.0
    %1495 = vmatprep.subr.mxu0 0.0
    %1496 = vmatpush1.msra.mxu0 0.0
    %1497 = vmatprep.subr.mxu0 0.0
    %1498 = vmatpush1.msra.mxu0 0.0
    %1499 = vmatprep.subr.mxu0 0.0
    %1500 = vmatpush1.msra.mxu0 0.0
    %1501 = vmatprep.subr.mxu0 0.0
    %1502 = vmatpush1.msra.mxu0 0.0
    %1503 = vmatprep.mubr.f32.mxu0 0.0
    %1504 = vmatmul.mubr.f32.gmra.mrb[0].mxu0 %v1437
    %v1505 = vpop.f32.mrb[0].mxu0
    %v1506 = vadd.f32 0.0, %v1505
    %v1507 = vpop.f32.mrb[0].mxu0
    %1508 = vdwg.mxu0
    %1511 = vrot.lane.b32.xlu0 %v1430, 12
    %v1512 = vpop.permute.xlu0 %1511
    %1513 = vrot.lane.b32.xlu0 %v1506, 12
    %v1514 = vpop.permute.xlu0 %1513
    %vm1517 = vcmask 130144
    %1518 = vst.msk [vmem:[#allocation2] sm:$0xff] %vm1517, %v1512
    %1519 = vst.msk [vmem:[#allocation2 + $0x8] sm:$0xff] %vm1517, %v1514
    %1520 = vrot.lane.b32.xlu0 %v149, 112
    %v1521 = vpop.permute.xlu0 %1520
    %1522 = vrot.lane.b32.xlu0 %v149, 80
    %v1523 = vpop.permute.xlu0 %1522
    %v1524 = vsel %vm160, %v1521, 0
    %v1526 = vsel %vm160, %v1523, 0
    %1528 = vmatprep.subr.mxu0 0.0
    %1529 = vmatpush1.xpose.msra.mxu0 %v1526
    %1530 = vmatprep.subr.mxu0 0.0
    %1531 = vmatpush1.xpose.msra.mxu0 0.0
    %1532 = vmatprep.subr.mxu0 0.0
    %1533 = vmatpush1.xpose.msra.mxu0 0.0
    %1534 = vmatprep.subr.mxu0 0.0
    %1535 = vmatpush1.xpose.msra.mxu0 0.0
    %1536 = vmatprep.subr.mxu0 0.0
    %1537 = vmatpush1.xpose.msra.mxu0 0.0
    %1538 = vmatprep.subr.mxu0 0.0
    %1539 = vmatpush1.xpose.msra.mxu0 0.0
    %1540 = vmatprep.subr.mxu0 0.0
    %1541 = vmatpush1.xpose.msra.mxu0 0.0
    %1542 = vmatprep.subr.mxu0 0.0
    %1543 = vmatpush1.xpose.msra.mxu0 0.0
    %1544 = vmatprep.subr.mxu0 0.0
    %1545 = vmatpush1.xpose.msra.mxu0 0.0
    %1546 = vmatprep.subr.mxu0 0.0
    %1547 = vmatpush1.xpose.msra.mxu0 0.0
    %1548 = vmatprep.subr.mxu0 0.0
    %1549 = vmatpush1.xpose.msra.mxu0 0.0
    %1550 = vmatprep.subr.mxu0 0.0
    %1551 = vmatpush1.xpose.msra.mxu0 0.0
    %1552 = vmatprep.subr.mxu0 0.0
    %1553 = vmatpush1.xpose.msra.mxu0 0.0
    %1554 = vmatprep.subr.mxu0 0.0
    %1555 = vmatpush1.xpose.msra.mxu0 0.0
    %1556 = vmatprep.subr.mxu0 0.0
    %1557 = vmatpush1.xpose.msra.mxu0 0.0
    %1558 = vmatprep.subr.mxu0 0.0
    %1559 = vmatpush1.xpose.msra.mxu0 0.0
    %1560 = vmatprep.subr.mxu0 0.0
    %1561 = vmatpush1.xpose.msra.mxu0 0.0
    %1562 = vmatprep.subr.mxu0 0.0
    %1563 = vmatpush1.xpose.msra.mxu0 0.0
    %1564 = vmatprep.subr.mxu0 0.0
    %1565 = vmatpush1.xpose.msra.mxu0 0.0
    %1566 = vmatprep.subr.mxu0 0.0
    %1567 = vmatpush1.xpose.msra.mxu0 0.0
    %1568 = vmatprep.subr.mxu0 0.0
    %1569 = vmatpush1.xpose.msra.mxu0 0.0
    %1570 = vmatprep.subr.mxu0 0.0
    %1571 = vmatpush1.xpose.msra.mxu0 0.0
    %1572 = vmatprep.subr.mxu0 0.0
    %1573 = vmatpush1.xpose.msra.mxu0 0.0
    %1574 = vmatprep.subr.mxu0 0.0
    %1575 = vmatpush1.xpose.msra.mxu0 0.0
    %1576 = vmatprep.subr.mxu0 0.0
    %1577 = vmatpush1.xpose.msra.mxu0 0.0
    %1578 = vmatprep.subr.mxu0 0.0
    %1579 = vmatpush1.xpose.msra.mxu0 0.0
    %1580 = vmatprep.subr.mxu0 0.0
    %1581 = vmatpush1.xpose.msra.mxu0 0.0
    %1582 = vmatprep.subr.mxu0 0.0
    %1583 = vmatpush1.xpose.msra.mxu0 0.0
    %1584 = vmatprep.subr.mxu0 0.0
    %1585 = vmatpush1.xpose.msra.mxu0 0.0
    %1586 = vmatprep.subr.mxu0 0.0
    %1587 = vmatpush1.xpose.msra.mxu0 0.0
    %1588 = vmatprep.subr.mxu0 0.0
    %1589 = vmatpush1.xpose.msra.mxu0 0.0
    %1590 = vmatprep.subr.mxu0 0.0
    %1591 = vmatpush1.xpose.msra.mxu0 0.0
    %1592 = vmatprep.mubr.f32.mxu0 0.0
    %1593 = vmatmul.mubr.f32.gmra.mrb[0].mxu0 %v1524
    %v1594 = vpop.f32.mrb[0].mxu0
    %v1595 = vadd.f32 0.0, %v1594
    %v1596 = vpop.f32.mrb[0].mxu0
    %1597 = vdwg.mxu0
    %1598 = vrot.lane.b32.xlu0 %v154, 112
    %v1599 = vpop.permute.xlu0 %1598
    %1600 = vrot.lane.b32.xlu0 %v154, 80
    %v1601 = vpop.permute.xlu0 %1600
    %v1602 = vsel %vm160, %v1599, 0
    %v1604 = vsel %vm160, %v1601, 0
    %1606 = vmatprep.subr.mxu0 0.0
    %1607 = vmatpush1.xpose.msra.mxu0 %v1604
    %1608 = vmatprep.subr.mxu0 0.0
    %1609 = vmatpush1.xpose.msra.mxu0 0.0
    %1610 = vmatprep.subr.mxu0 0.0
    %1611 = vmatpush1.xpose.msra.mxu0 0.0
    %1612 = vmatprep.subr.mxu0 0.0
    %1613 = vmatpush1.xpose.msra.mxu0 0.0
    %1614 = vmatprep.subr.mxu0 0.0
    %1615 = vmatpush1.xpose.msra.mxu0 0.0
    %1616 = vmatprep.subr.mxu0 0.0
    %1617 = vmatpush1.xpose.msra.mxu0 0.0
    %1618 = vmatprep.subr.mxu0 0.0
    %1619 = vmatpush1.xpose.msra.mxu0 0.0
    %1620 = vmatprep.subr.mxu0 0.0
    %1621 = vmatpush1.xpose.msra.mxu0 0.0
    %1622 = vmatprep.subr.mxu0 0.0
    %1623 = vmatpush1.xpose.msra.mxu0 0.0
    %1624 = vmatprep.subr.mxu0 0.0
    %1625 = vmatpush1.xpose.msra.mxu0 0.0
    %1626 = vmatprep.subr.mxu0 0.0
    %1627 = vmatpush1.xpose.msra.mxu0 0.0
    %1628 = vmatprep.subr.mxu0 0.0
    %1629 = vmatpush1.xpose.msra.mxu0 0.0
    %1630 = vmatprep.subr.mxu0 0.0
    %1631 = vmatpush1.xpose.msra.mxu0 0.0
    %1632 = vmatprep.subr.mxu0 0.0
    %1633 = vmatpush1.xpose.msra.mxu0 0.0
    %1634 = vmatprep.subr.mxu0 0.0
    %1635 = vmatpush1.xpose.msra.mxu0 0.0
    %1636 = vmatprep.subr.mxu0 0.0
    %1637 = vmatpush1.xpose.msra.mxu0 0.0
    %1638 = vmatprep.subr.mxu0 0.0
    %1639 = vmatpush1.xpose.msra.mxu0 0.0
    %1640 = vmatprep.subr.mxu0 0.0
    %1641 = vmatpush1.xpose.msra.mxu0 0.0
    %1642 = vmatprep.subr.mxu0 0.0
    %1643 = vmatpush1.xpose.msra.mxu0 0.0
    %1644 = vmatprep.subr.mxu0 0.0
    %1645 = vmatpush1.xpose.msra.mxu0 0.0
    %1646 = vmatprep.subr.mxu0 0.0
    %1647 = vmatpush1.xpose.msra.mxu0 0.0
    %1648 = vmatprep.subr.mxu0 0.0
    %1649 = vmatpush1.xpose.msra.mxu0 0.0
    %1650 = vmatprep.subr.mxu0 0.0
    %1651 = vmatpush1.xpose.msra.mxu0 0.0
    %1652 = vmatprep.subr.mxu0 0.0
    %1653 = vmatpush1.xpose.msra.mxu0 0.0
    %1654 = vmatprep.subr.mxu0 0.0
    %1655 = vmatpush1.xpose.msra.mxu0 0.0
    %1656 = vmatprep.subr.mxu0 0.0
    %1657 = vmatpush1.xpose.msra.mxu0 0.0
    %1658 = vmatprep.subr.mxu0 0.0
    %1659 = vmatpush1.xpose.msra.mxu0 0.0
    %1660 = vmatprep.subr.mxu0 0.0
    %1661 = vmatpush1.xpose.msra.mxu0 0.0
    %1662 = vmatprep.subr.mxu0 0.0
    %1663 = vmatpush1.xpose.msra.mxu0 0.0
    %1664 = vmatprep.subr.mxu0 0.0
    %1665 = vmatpush1.xpose.msra.mxu0 0.0
    %1666 = vmatprep.subr.mxu0 0.0
    %1667 = vmatpush1.xpose.msra.mxu0 0.0
    %1668 = vmatprep.subr.mxu0 0.0
    %1669 = vmatpush1.xpose.msra.mxu0 0.0
    %1670 = vmatprep.mubr.f32.mxu0 0.0
    %1671 = vmatmul.mubr.f32.gmra.mrb[0].mxu0 %v1602
    %v1672 = vpop.f32.mrb[0].mxu0
    %v1673 = vadd.f32 0.0, %v1672
    %v1674 = vpop.f32.mrb[0].mxu0
    %1675 = vdwg.mxu0
    %v1676 = vmul.f32 %v1595, 0.5
    %v1677 = vmul.f32 %v1673, 0.5
    %v1678 = vsel %vm314, %v1676, -inf
    %1679 = vmax.xlane.f32.xlu0 %v1678
    %v1680 = vpop.xlane.xlu0 %1679
    %v1681 = vsel %vm314, %v1677, -inf
    %1682 = vmax.xlane.f32.xlu0 %v1681
    %v1683 = vpop.xlane.xlu0 %1682
    %v1684 = vsub.f32 %v1676, %v1680
    %v1685 = vsub.f32 %v1677, %v1683
    %v1686 = vmul.f32 %v1684, 1.442695
    %v1687 = vpow.pop %v1686
    %v1688 = vmul.f32 %v1685, 1.442695
    %v1689 = vpow.pop %v1688
    %v1690 = vsel %vm314, %v1687, 0.0
    %1691 = vadd.xlane.f32.xlu0 %v1690
    %v1692 = vpop.xlane.xlu0 %1691
    %v1693 = vsel %vm314, %v1689, 0.0
    %1694 = vadd.xlane.f32.xlu0 %v1693
    %v1695 = vpop.xlane.xlu0 %1694
    %v1696 = vrcp.pop %v1692
    %v1697 = vrcp.pop %v1695
    %v1698 = vmul.f32 %v1687, %v1696
    %v1699 = vmul.f32 %v1689, %v1697
    %1700 = vrot.lane.b32.xlu0 %v149, 48
    %v1701 = vpop.permute.xlu0 %1700
    %v1704 = vsel %vm314, %v1698, 0
    %1706 = vmatprep.subr.mxu0 0.0
    %1707 = vmatpush1.msra.mxu0 %v1701
    %1708 = vmatprep.subr.mxu0 0.0
    %1709 = vmatpush1.msra.mxu0 0.0
    %1710 = vmatprep.subr.mxu0 0.0
    %1711 = vmatpush1.msra.mxu0 0.0
    %1712 = vmatprep.subr.mxu0 0.0
    %1713 = vmatpush1.msra.mxu0 0.0
    %1714 = vmatprep.subr.mxu0 0.0
    %1715 = vmatpush1.msra.mxu0 0.0
    %1716 = vmatprep.subr.mxu0 0.0
    %1717 = vmatpush1.msra.mxu0 0.0
    %1718 = vmatprep.subr.mxu0 0.0
    %1719 = vmatpush1.msra.mxu0 0.0
    %1720 = vmatprep.subr.mxu0 0.0
    %1721 = vmatpush1.msra.mxu0 0.0
    %1722 = vmatprep.subr.mxu0 0.0
    %1723 = vmatpush1.msra.mxu0 0.0
    %1724 = vmatprep.subr.mxu0 0.0
    %1725 = vmatpush1.msra.mxu0 0.0
    %1726 = vmatprep.subr.mxu0 0.0
    %1727 = vmatpush1.msra.mxu0 0.0
    %1728 = vmatprep.subr.mxu0 0.0
    %1729 = vmatpush1.msra.mxu0 0.0
    %1730 = vmatprep.subr.mxu0 0.0
    %1731 = vmatpush1.msra.mxu0 0.0
    %1732 = vmatprep.subr.mxu0 0.0
    %1733 = vmatpush1.msra.mxu0 0.0
    %1734 = vmatprep.subr.mxu0 0.0
    %1735 = vmatpush1.msra.mxu0 0.0
    %1736 = vmatprep.subr.mxu0 0.0
    %1737 = vmatpush1.msra.mxu0 0.0
    %1738 = vmatprep.subr.mxu0 0.0
    %1739 = vmatpush1.msra.mxu0 0.0
    %1740 = vmatprep.subr.mxu0 0.0
    %1741 = vmatpush1.msra.mxu0 0.0
    %1742 = vmatprep.subr.mxu0 0.0
    %1743 = vmatpush1.msra.mxu0 0.0
    %1744 = vmatprep.subr.mxu0 0.0
    %1745 = vmatpush1.msra.mxu0 0.0
    %1746 = vmatprep.subr.mxu0 0.0
    %1747 = vmatpush1.msra.mxu0 0.0
    %1748 = vmatprep.subr.mxu0 0.0
    %1749 = vmatpush1.msra.mxu0 0.0
    %1750 = vmatprep.subr.mxu0 0.0
    %1751 = vmatpush1.msra.mxu0 0.0
    %1752 = vmatprep.subr.mxu0 0.0
    %1753 = vmatpush1.msra.mxu0 0.0
    %1754 = vmatprep.subr.mxu0 0.0
    %1755 = vmatpush1.msra.mxu0 0.0
    %1756 = vmatprep.subr.mxu0 0.0
    %1757 = vmatpush1.msra.mxu0 0.0
    %1758 = vmatprep.subr.mxu0 0.0
    %1759 = vmatpush1.msra.mxu0 0.0
    %1760 = vmatprep.subr.mxu0 0.0
    %1761 = vmatpush1.msra.mxu0 0.0
    %1762 = vmatprep.subr.mxu0 0.0
    %1763 = vmatpush1.msra.mxu0 0.0
    %1764 = vmatprep.subr.mxu0 0.0
    %1765 = vmatpush1.msra.mxu0 0.0
    %1766 = vmatprep.subr.mxu0 0.0
    %1767 = vmatpush1.msra.mxu0 0.0
    %1768 = vmatprep.subr.mxu0 0.0
    %1769 = vmatpush1.msra.mxu0 0.0
    %1770 = vmatprep.mubr.f32.mxu0 0.0
    %1771 = vmatmul.mubr.f32.gmra.mrb[0].mxu0 %v1704
    %v1772 = vpop.f32.mrb[0].mxu0
    %v1773 = vadd.f32 0.0, %v1772
    %v1774 = vpop.f32.mrb[0].mxu0
    %1775 = vdwg.mxu0
    %1776 = vrot.lane.b32.xlu0 %v154, 48
    %v1777 = vpop.permute.xlu0 %1776
    %v1780 = vsel %vm314, %v1699, 0
    %1782 = vmatprep.subr.mxu0 0.0
    %1783 = vmatpush1.msra.mxu0 %v1777
    %1784 = vmatprep.subr.mxu0 0.0
    %1785 = vmatpush1.msra.mxu0 0.0
    %1786 = vmatprep.subr.mxu0 0.0
    %1787 = vmatpush1.msra.mxu0 0.0
    %1788 = vmatprep.subr.mxu0 0.0
    %1789 = vmatpush1.msra.mxu0 0.0
    %1790 = vmatprep.subr.mxu0 0.0
    %1791 = vmatpush1.msra.mxu0 0.0
    %1792 = vmatprep.subr.mxu0 0.0
    %1793 = vmatpush1.msra.mxu0 0.0
    %1794 = vmatprep.subr.mxu0 0.0
    %1795 = vmatpush1.msra.mxu0 0.0
    %1796 = vmatprep.subr.mxu0 0.0
    %1797 = vmatpush1.msra.mxu0 0.0
    %1798 = vmatprep.subr.mxu0 0.0
    %1799 = vmatpush1.msra.mxu0 0.0
    %1800 = vmatprep.subr.mxu0 0.0
    %1801 = vmatpush1.msra.mxu0 0.0
    %1802 = vmatprep.subr.mxu0 0.0
    %1803 = vmatpush1.msra.mxu0 0.0
    %1804 = vmatprep.subr.mxu0 0.0
    %1805 = vmatpush1.msra.mxu0 0.0
    %1806 = vmatprep.subr.mxu0 0.0
    %1807 = vmatpush1.msra.mxu0 0.0
    %1808 = vmatprep.subr.mxu0 0.0
    %1809 = vmatpush1.msra.mxu0 0.0
    %1810 = vmatprep.subr.mxu0 0.0
    %1811 = vmatpush1.msra.mxu0 0.0
    %1812 = vmatprep.subr.mxu0 0.0
    %1813 = vmatpush1.msra.mxu0 0.0
    %1814 = vmatprep.subr.mxu0 0.0
    %1815 = vmatpush1.msra.mxu0 0.0
    %1816 = vmatprep.subr.mxu0 0.0
    %1817 = vmatpush1.msra.mxu0 0.0
    %1818 = vmatprep.subr.mxu0 0.0
    %1819 = vmatpush1.msra.mxu0 0.0
    %1820 = vmatprep.subr.mxu0 0.0
    %1821 = vmatpush1.msra.mxu0 0.0
    %1822 = vmatprep.subr.mxu0 0.0
    %1823 = vmatpush1.msra.mxu0 0.0
    %1824 = vmatprep.subr.mxu0 0.0
    %1825 = vmatpush1.msra.mxu0 0.0
    %1826 = vmatprep.subr.mxu0 0.0
    %1827 = vmatpush1.msra.mxu0 0.0
    %1828 = vmatprep.subr.mxu0 0.0
    %1829 = vmatpush1.msra.mxu0 0.0
    %1830 = vmatprep.subr.mxu0 0.0
    %1831 = vmatpush1.msra.mxu0 0.0
    %1832 = vmatprep.subr.mxu0 0.0
    %1833 = vmatpush1.msra.mxu0 0.0
    %1834 = vmatprep.subr.mxu0 0.0
    %1835 = vmatpush1.msra.mxu0 0.0
    %1836 = vmatprep.subr.mxu0 0.0
    %1837 = vmatpush1.msra.mxu0 0.0
    %1838 = vmatprep.subr.mxu0 0.0
    %1839 = vmatpush1.msra.mxu0 0.0
    %1840 = vmatprep.subr.mxu0 0.0
    %1841 = vmatpush1.msra.mxu0 0.0
    %1842 = vmatprep.subr.mxu0 0.0
    %1843 = vmatpush1.msra.mxu0 0.0
    %1844 = vmatprep.subr.mxu0 0.0
    %1845 = vmatpush1.msra.mxu0 0.0
    %1846 = vmatprep.mubr.f32.mxu0 0.0
    %1847 = vmatmul.mubr.f32.gmra.mrb[0].mxu0 %v1780
    %v1848 = vpop.f32.mrb[0].mxu0
    %v1849 = vadd.f32 0.0, %v1848
    %v1850 = vpop.f32.mrb[0].mxu0
    %1851 = vdwg.mxu0
    %1854 = vrot.lane.b32.xlu0 %v1773, 16
    %v1855 = vpop.permute.xlu0 %1854
    %1856 = vrot.lane.b32.xlu0 %v1849, 16
    %v1857 = vpop.permute.xlu0 %1856
    %vm1860 = vcmask 162944
    %1861 = vst.msk [vmem:[#allocation2] sm:$0xff] %vm1860, %v1855
    %1862 = vst.msk [vmem:[#allocation2 + $0x8] sm:$0xff] %vm1860, %v1857
    %1863 = vrot.lane.b32.xlu0 %v149, 108
    %v1864 = vpop.permute.xlu0 %1863
    %1865 = vrot.lane.b32.xlu0 %v149, 76
    %v1866 = vpop.permute.xlu0 %1865
    %v1867 = vsel %vm160, %v1864, 0
    %v1869 = vsel %vm160, %v1866, 0
    %1871 = vmatprep.subr.mxu0 0.0
    %1872 = vmatpush1.xpose.msra.mxu0 %v1869
    %1873 = vmatprep.subr.mxu0 0.0
    %1874 = vmatpush1.xpose.msra.mxu0 0.0
    %1875 = vmatprep.subr.mxu0 0.0
    %1876 = vmatpush1.xpose.msra.mxu0 0.0
    %1877 = vmatprep.subr.mxu0 0.0
    %1878 = vmatpush1.xpose.msra.mxu0 0.0
    %1879 = vmatprep.subr.mxu0 0.0
    %1880 = vmatpush1.xpose.msra.mxu0 0.0
    %1881 = vmatprep.subr.mxu0 0.0
    %1882 = vmatpush1.xpose.msra.mxu0 0.0
    %1883 = vmatprep.subr.mxu0 0.0
    %1884 = vmatpush1.xpose.msra.mxu0 0.0
    %1885 = vmatprep.subr.mxu0 0.0
    %1886 = vmatpush1.xpose.msra.mxu0 0.0
    %1887 = vmatprep.subr.mxu0 0.0
    %1888 = vmatpush1.xpose.msra.mxu0 0.0
    %1889 = vmatprep.subr.mxu0 0.0
    %1890 = vmatpush1.xpose.msra.mxu0 0.0
    %1891 = vmatprep.subr.mxu0 0.0
    %1892 = vmatpush1.xpose.msra.mxu0 0.0
    %1893 = vmatprep.subr.mxu0 0.0
    %1894 = vmatpush1.xpose.msra.mxu0 0.0
    %1895 = vmatprep.subr.mxu0 0.0
    %1896 = vmatpush1.xpose.msra.mxu0 0.0
    %1897 = vmatprep.subr.mxu0 0.0
    %1898 = vmatpush1.xpose.msra.mxu0 0.0
    %1899 = vmatprep.subr.mxu0 0.0
    %1900 = vmatpush1.xpose.msra.mxu0 0.0
    %1901 = vmatprep.subr.mxu0 0.0
    %1902 = vmatpush1.xpose.msra.mxu0 0.0
    %1903 = vmatprep.subr.mxu0 0.0
    %1904 = vmatpush1.xpose.msra.mxu0 0.0
    %1905 = vmatprep.subr.mxu0 0.0
    %1906 = vmatpush1.xpose.msra.mxu0 0.0
    %1907 = vmatprep.subr.mxu0 0.0
    %1908 = vmatpush1.xpose.msra.mxu0 0.0
    %1909 = vmatprep.subr.mxu0 0.0
    %1910 = vmatpush1.xpose.msra.mxu0 0.0
    %1911 = vmatprep.subr.mxu0 0.0
    %1912 = vmatpush1.xpose.msra.mxu0 0.0
    %1913 = vmatprep.subr.mxu0 0.0
    %1914 = vmatpush1.xpose.msra.mxu0 0.0
    %1915 = vmatprep.subr.mxu0 0.0
    %1916 = vmatpush1.xpose.msra.mxu0 0.0
    %1917 = vmatprep.subr.mxu0 0.0
    %1918 = vmatpush1.xpose.msra.mxu0 0.0
    %1919 = vmatprep.subr.mxu0 0.0
    %1920 = vmatpush1.xpose.msra.mxu0 0.0
    %1921 = vmatprep.subr.mxu0 0.0
    %1922 = vmatpush1.xpose.msra.mxu0 0.0
    %1923 = vmatprep.subr.mxu0 0.0
    %1924 = vmatpush1.xpose.msra.mxu0 0.0
    %1925 = vmatprep.subr.mxu0 0.0
    %1926 = vmatpush1.xpose.msra.mxu0 0.0
    %1927 = vmatprep.subr.mxu0 0.0
    %1928 = vmatpush1.xpose.msra.mxu0 0.0
    %1929 = vmatprep.subr.mxu0 0.0
    %1930 = vmatpush1.xpose.msra.mxu0 0.0
    %1931 = vmatprep.subr.mxu0 0.0
    %1932 = vmatpush1.xpose.msra.mxu0 0.0
    %1933 = vmatprep.subr.mxu0 0.0
    %1934 = vmatpush1.xpose.msra.mxu0 0.0
    %1935 = vmatprep.mubr.f32.mxu0 0.0
    %1936 = vmatmul.mubr.f32.gmra.mrb[0].mxu0 %v1867
    %v1937 = vpop.f32.mrb[0].mxu0
    %v1938 = vadd.f32 0.0, %v1937
    %v1939 = vpop.f32.mrb[0].mxu0
    %1940 = vdwg.mxu0
    %1941 = vrot.lane.b32.xlu0 %v154, 108
    %v1942 = vpop.permute.xlu0 %1941
    %1943 = vrot.lane.b32.xlu0 %v154, 76
    %v1944 = vpop.permute.xlu0 %1943
    %v1945 = vsel %vm160, %v1942, 0
    %v1947 = vsel %vm160, %v1944, 0
    %1949 = vmatprep.subr.mxu0 0.0
    %1950 = vmatpush1.xpose.msra.mxu0 %v1947
    %1951 = vmatprep.subr.mxu0 0.0
    %1952 = vmatpush1.xpose.msra.mxu0 0.0
    %1953 = vmatprep.subr.mxu0 0.0
    %1954 = vmatpush1.xpose.msra.mxu0 0.0
    %1955 = vmatprep.subr.mxu0 0.0
    %1956 = vmatpush1.xpose.msra.mxu0 0.0
    %1957 = vmatprep.subr.mxu0 0.0
    %1958 = vmatpush1.xpose.msra.mxu0 0.0
    %1959 = vmatprep.subr.mxu0 0.0
    %1960 = vmatpush1.xpose.msra.mxu0 0.0
    %1961 = vmatprep.subr.mxu0 0.0
    %1962 = vmatpush1.xpose.msra.mxu0 0.0
    %1963 = vmatprep.subr.mxu0 0.0
    %1964 = vmatpush1.xpose.msra.mxu0 0.0
    %1965 = vmatprep.subr.mxu0 0.0
    %1966 = vmatpush1.xpose.msra.mxu0 0.0
    %1967 = vmatprep.subr.mxu0 0.0
    %1968 = vmatpush1.xpose.msra.mxu0 0.0
    %1969 = vmatprep.subr.mxu0 0.0
    %1970 = vmatpush1.xpose.msra.mxu0 0.0
    %1971 = vmatprep.subr.mxu0 0.0
    %1972 = vmatpush1.xpose.msra.mxu0 0.0
    %1973 = vmatprep.subr.mxu0 0.0
    %1974 = vmatpush1.xpose.msra.mxu0 0.0
    %1975 = vmatprep.subr.mxu0 0.0
    %1976 = vmatpush1.xpose.msra.mxu0 0.0
    %1977 = vmatprep.subr.mxu0 0.0
    %1978 = vmatpush1.xpose.msra.mxu0 0.0
    %1979 = vmatprep.subr.mxu0 0.0
    %1980 = vmatpush1.xpose.msra.mxu0 0.0
    %1981 = vmatprep.subr.mxu0 0.0
    %1982 = vmatpush1.xpose.msra.mxu0 0.0
    %1983 = vmatprep.subr.mxu0 0.0
    %1984 = vmatpush1.xpose.msra.mxu0 0.0
    %1985 = vmatprep.subr.mxu0 0.0
    %1986 = vmatpush1.xpose.msra.mxu0 0.0
    %1987 = vmatprep.subr.mxu0 0.0
    %1988 = vmatpush1.xpose.msra.mxu0 0.0
    %1989 = vmatprep.subr.mxu0 0.0
    %1990 = vmatpush1.xpose.msra.mxu0 0.0
    %1991 = vmatprep.subr.mxu0 0.0
    %1992 = vmatpush1.xpose.msra.mxu0 0.0
    %1993 = vmatprep.subr.mxu0 0.0
    %1994 = vmatpush1.xpose.msra.mxu0 0.0
    %1995 = vmatprep.subr.mxu0 0.0
    %1996 = vmatpush1.xpose.msra.mxu0 0.0
    %1997 = vmatprep.subr.mxu0 0.0
    %1998 = vmatpush1.xpose.msra.mxu0 0.0
    %1999 = vmatprep.subr.mxu0 0.0
    %2000 = vmatpush1.xpose.msra.mxu0 0.0
    %2001 = vmatprep.subr.mxu0 0.0
    %2002 = vmatpush1.xpose.msra.mxu0 0.0
    %2003 = vmatprep.subr.mxu0 0.0
    %2004 = vmatpush1.xpose.msra.mxu0 0.0
    %2005 = vmatprep.subr.mxu0 0.0
    %2006 = vmatpush1.xpose.msra.mxu0 0.0
    %2007 = vmatprep.subr.mxu0 0.0
    %2008 = vmatpush1.xpose.msra.mxu0 0.0
    %2009 = vmatprep.subr.mxu0 0.0
    %2010 = vmatpush1.xpose.msra.mxu0 0.0
    %2011 = vmatprep.subr.mxu0 0.0
    %2012 = vmatpush1.xpose.msra.mxu0 0.0
    %2013 = vmatprep.mubr.f32.mxu0 0.0
    %2014 = vmatmul.mubr.f32.gmra.mrb[0].mxu0 %v1945
    %v2015 = vpop.f32.mrb[0].mxu0
    %v2016 = vadd.f32 0.0, %v2015
    %v2017 = vpop.f32.mrb[0].mxu0
    %2018 = vdwg.mxu0
    %v2019 = vmul.f32 %v1938, 0.5
    %v2020 = vmul.f32 %v2016, 0.5
    %v2021 = vsel %vm314, %v2019, -inf
    %2022 = vmax.xlane.f32.xlu0 %v2021
    %v2023 = vpop.xlane.xlu0 %2022
    %v2024 = vsel %vm314, %v2020, -inf
    %2025 = vmax.xlane.f32.xlu0 %v2024
    %v2026 = vpop.xlane.xlu0 %2025
    %v2027 = vsub.f32 %v2019, %v2023
    %v2028 = vsub.f32 %v2020, %v2026
    %v2029 = vmul.f32 %v2027, 1.442695
    %v2030 = vpow.pop %v2029
    %v2031 = vmul.f32 %v2028, 1.442695
    %v2032 = vpow.pop %v2031
    %v2033 = vsel %vm314, %v2030, 0.0
    %2034 = vadd.xlane.f32.xlu0 %v2033
    %v2035 = vpop.xlane.xlu0 %2034
    %v2036 = vsel %vm314, %v2032, 0.0
    %2037 = vadd.xlane.f32.xlu0 %v2036
    %v2038 = vpop.xlane.xlu0 %2037
    %v2039 = vrcp.pop %v2035
    %v2040 = vrcp.pop %v2038
    %v2041 = vmul.f32 %v2030, %v2039
    %v2042 = vmul.f32 %v2032, %v2040
    %2043 = vrot.lane.b32.xlu0 %v149, 44
    %v2044 = vpop.permute.xlu0 %2043
    %v2047 = vsel %vm314, %v2041, 0
    %2049 = vmatprep.subr.mxu0 0.0
    %2050 = vmatpush1.msra.mxu0 %v2044
    %2051 = vmatprep.subr.mxu0 0.0
    %2052 = vmatpush1.msra.mxu0 0.0
    %2053 = vmatprep.subr.mxu0 0.0
    %2054 = vmatpush1.msra.mxu0 0.0
    %2055 = vmatprep.subr.mxu0 0.0
    %2056 = vmatpush1.msra.mxu0 0.0
    %2057 = vmatprep.subr.mxu0 0.0
    %2058 = vmatpush1.msra.mxu0 0.0
    %2059 = vmatprep.subr.mxu0 0.0
    %2060 = vmatpush1.msra.mxu0 0.0
    %2061 = vmatprep.subr.mxu0 0.0
    %2062 = vmatpush1.msra.mxu0 0.0
    %2063 = vmatprep.subr.mxu0 0.0
    %2064 = vmatpush1.msra.mxu0 0.0
    %2065 = vmatprep.subr.mxu0 0.0
    %2066 = vmatpush1.msra.mxu0 0.0
    %2067 = vmatprep.subr.mxu0 0.0
    %2068 = vmatpush1.msra.mxu0 0.0
    %2069 = vmatprep.subr.mxu0 0.0
    %2070 = vmatpush1.msra.mxu0 0.0
    %2071 = vmatprep.subr.mxu0 0.0
    %2072 = vmatpush1.msra.mxu0 0.0
    %2073 = vmatprep.subr.mxu0 0.0
    %2074 = vmatpush1.msra.mxu0 0.0
    %2075 = vmatprep.subr.mxu0 0.0
    %2076 = vmatpush1.msra.mxu0 0.0
    %2077 = vmatprep.subr.mxu0 0.0
    %2078 = vmatpush1.msra.mxu0 0.0
    %2079 = vmatprep.subr.mxu0 0.0
    %2080 = vmatpush1.msra.mxu0 0.0
    %2081 = vmatprep.subr.mxu0 0.0
    %2082 = vmatpush1.msra.mxu0 0.0
    %2083 = vmatprep.subr.mxu0 0.0
    %2084 = vmatpush1.msra.mxu0 0.0
    %2085 = vmatprep.subr.mxu0 0.0
    %2086 = vmatpush1.msra.mxu0 0.0
    %2087 = vmatprep.subr.mxu0 0.0
    %2088 = vmatpush1.msra.mxu0 0.0
    %2089 = vmatprep.subr.mxu0 0.0
    %2090 = vmatpush1.msra.mxu0 0.0
    %2091 = vmatprep.subr.mxu0 0.0
    %2092 = vmatpush1.msra.mxu0 0.0
    %2093 = vmatprep.subr.mxu0 0.0
    %2094 = vmatpush1.msra.mxu0 0.0
    %2095 = vmatprep.subr.mxu0 0.0
    %2096 = vmatpush1.msra.mxu0 0.0
    %2097 = vmatprep.subr.mxu0 0.0
    %2098 = vmatpush1.msra.mxu0 0.0
    %2099 = vmatprep.subr.mxu0 0.0
    %2100 = vmatpush1.msra.mxu0 0.0
    %2101 = vmatprep.subr.mxu0 0.0
    %2102 = vmatpush1.msra.mxu0 0.0
    %2103 = vmatprep.subr.mxu0 0.0
    %2104 = vmatpush1.msra.mxu0 0.0
    %2105 = vmatprep.subr.mxu0 0.0
    %2106 = vmatpush1.msra.mxu0 0.0
    %2107 = vmatprep.subr.mxu0 0.0
    %2108 = vmatpush1.msra.mxu0 0.0
    %2109 = vmatprep.subr.mxu0 0.0
    %2110 = vmatpush1.msra.mxu0 0.0
    %2111 = vmatprep.subr.mxu0 0.0
    %2112 = vmatpush1.msra.mxu0 0.0
    %2113 = vmatprep.mubr.f32.mxu0 0.0
    %2114 = vmatmul.mubr.f32.gmra.mrb[0].mxu0 %v2047
    %v2115 = vpop.f32.mrb[0].mxu0
    %v2116 = vadd.f32 0.0, %v2115
    %v2117 = vpop.f32.mrb[0].mxu0
    %2118 = vdwg.mxu0
    %2119 = vrot.lane.b32.xlu0 %v154, 44
    %v2120 = vpop.permute.xlu0 %2119
    %v2123 = vsel %vm314, %v2042, 0
    %2125 = vmatprep.subr.mxu0 0.0
    %2126 = vmatpush1.msra.mxu0 %v2120
    %2127 = vmatprep.subr.mxu0 0.0
    %2128 = vmatpush1.msra.mxu0 0.0
    %2129 = vmatprep.subr.mxu0 0.0
    %2130 = vmatpush1.msra.mxu0 0.0
    %2131 = vmatprep.subr.mxu0 0.0
    %2132 = vmatpush1.msra.mxu0 0.0
    %2133 = vmatprep.subr.mxu0 0.0
    %2134 = vmatpush1.msra.mxu0 0.0
    %2135 = vmatprep.subr.mxu0 0.0
    %2136 = vmatpush1.msra.mxu0 0.0
    %2137 = vmatprep.subr.mxu0 0.0
    %2138 = vmatpush1.msra.mxu0 0.0
    %2139 = vmatprep.subr.mxu0 0.0
    %2140 = vmatpush1.msra.mxu0 0.0
    %2141 = vmatprep.subr.mxu0 0.0
    %2142 = vmatpush1.msra.mxu0 0.0
    %2143 = vmatprep.subr.mxu0 0.0
    %2144 = vmatpush1.msra.mxu0 0.0
    %2145 = vmatprep.subr.mxu0 0.0
    %2146 = vmatpush1.msra.mxu0 0.0
    %2147 = vmatprep.subr.mxu0 0.0
    %2148 = vmatpush1.msra.mxu0 0.0
    %2149 = vmatprep.subr.mxu0 0.0
    %2150 = vmatpush1.msra.mxu0 0.0
    %2151 = vmatprep.subr.mxu0 0.0
    %2152 = vmatpush1.msra.mxu0 0.0
    %2153 = vmatprep.subr.mxu0 0.0
    %2154 = vmatpush1.msra.mxu0 0.0
    %2155 = vmatprep.subr.mxu0 0.0
    %2156 = vmatpush1.msra.mxu0 0.0
    %2157 = vmatprep.subr.mxu0 0.0
    %2158 = vmatpush1.msra.mxu0 0.0
    %2159 = vmatprep.subr.mxu0 0.0
    %2160 = vmatpush1.msra.mxu0 0.0
    %2161 = vmatprep.subr.mxu0 0.0
    %2162 = vmatpush1.msra.mxu0 0.0
    %2163 = vmatprep.subr.mxu0 0.0
    %2164 = vmatpush1.msra.mxu0 0.0
    %2165 = vmatprep.subr.mxu0 0.0
    %2166 = vmatpush1.msra.mxu0 0.0
    %2167 = vmatprep.subr.mxu0 0.0
    %2168 = vmatpush1.msra.mxu0 0.0
    %2169 = vmatprep.subr.mxu0 0.0
    %2170 = vmatpush1.msra.mxu0 0.0
    %2171 = vmatprep.subr.mxu0 0.0
    %2172 = vmatpush1.msra.mxu0 0.0
    %2173 = vmatprep.subr.mxu0 0.0
    %2174 = vmatpush1.msra.mxu0 0.0
    %2175 = vmatprep.subr.mxu0 0.0
    %2176 = vmatpush1.msra.mxu0 0.0
    %2177 = vmatprep.subr.mxu0 0.0
    %2178 = vmatpush1.msra.mxu0 0.0
    %2179 = vmatprep.subr.mxu0 0.0
    %2180 = vmatpush1.msra.mxu0 0.0
    %2181 = vmatprep.subr.mxu0 0.0
    %2182 = vmatpush1.msra.mxu0 0.0
    %2183 = vmatprep.subr.mxu0 0.0
    %2184 = vmatpush1.msra.mxu0 0.0
    %2185 = vmatprep.subr.mxu0 0.0
    %2186 = vmatpush1.msra.mxu0 0.0
    %2187 = vmatprep.subr.mxu0 0.0
    %2188 = vmatpush1.msra.mxu0 0.0
    %2189 = vmatprep.mubr.f32.mxu0 0.0
    %2190 = vmatmul.mubr.f32.gmra.mrb[0].mxu0 %v2123
    %v2191 = vpop.f32.mrb[0].mxu0
    %v2192 = vadd.f32 0.0, %v2191
    %v2193 = vpop.f32.mrb[0].mxu0
    %2194 = vdwg.mxu0
    %2197 = vrot.lane.b32.xlu0 %v2116, 20
    %v2198 = vpop.permute.xlu0 %2197
    %2199 = vrot.lane.b32.xlu0 %v2192, 20
    %v2200 = vpop.permute.xlu0 %2199
    %vm2203 = vcmask 195744
    %2204 = vst.msk [vmem:[#allocation2] sm:$0xff] %vm2203, %v2198
    %2205 = vst.msk [vmem:[#allocation2 + $0x8] sm:$0xff] %vm2203, %v2200
    %2206 = vrot.lane.b32.xlu0 %v149, 104
    %v2207 = vpop.permute.xlu0 %2206
    %2208 = vrot.lane.b32.xlu0 %v149, 72
    %v2209 = vpop.permute.xlu0 %2208
    %v2210 = vsel %vm160, %v2207, 0
    %v2212 = vsel %vm160, %v2209, 0
    %2214 = vmatprep.subr.mxu0 0.0
    %2215 = vmatpush1.xpose.msra.mxu0 %v2212
    %2216 = vmatprep.subr.mxu0 0.0
    %2217 = vmatpush1.xpose.msra.mxu0 0.0
    %2218 = vmatprep.subr.mxu0 0.0
    %2219 = vmatpush1.xpose.msra.mxu0 0.0
    %2220 = vmatprep.subr.mxu0 0.0
    %2221 = vmatpush1.xpose.msra.mxu0 0.0
    %2222 = vmatprep.subr.mxu0 0.0
    %2223 = vmatpush1.xpose.msra.mxu0 0.0
    %2224 = vmatprep.subr.mxu0 0.0
    %2225 = vmatpush1.xpose.msra.mxu0 0.0
    %2226 = vmatprep.subr.mxu0 0.0
    %2227 = vmatpush1.xpose.msra.mxu0 0.0
    %2228 = vmatprep.subr.mxu0 0.0
    %2229 = vmatpush1.xpose.msra.mxu0 0.0
    %2230 = vmatprep.subr.mxu0 0.0
    %2231 = vmatpush1.xpose.msra.mxu0 0.0
    %2232 = vmatprep.subr.mxu0 0.0
    %2233 = vmatpush1.xpose.msra.mxu0 0.0
    %2234 = vmatprep.subr.mxu0 0.0
    %2235 = vmatpush1.xpose.msra.mxu0 0.0
    %2236 = vmatprep.subr.mxu0 0.0
    %2237 = vmatpush1.xpose.msra.mxu0 0.0
    %2238 = vmatprep.subr.mxu0 0.0
    %2239 = vmatpush1.xpose.msra.mxu0 0.0
    %2240 = vmatprep.subr.mxu0 0.0
    %2241 = vmatpush1.xpose.msra.mxu0 0.0
    %2242 = vmatprep.subr.mxu0 0.0
    %2243 = vmatpush1.xpose.msra.mxu0 0.0
    %2244 = vmatprep.subr.mxu0 0.0
    %2245 = vmatpush1.xpose.msra.mxu0 0.0
    %2246 = vmatprep.subr.mxu0 0.0
    %2247 = vmatpush1.xpose.msra.mxu0 0.0
    %2248 = vmatprep.subr.mxu0 0.0
    %2249 = vmatpush1.xpose.msra.mxu0 0.0
    %2250 = vmatprep.subr.mxu0 0.0
    %2251 = vmatpush1.xpose.msra.mxu0 0.0
    %2252 = vmatprep.subr.mxu0 0.0
    %2253 = vmatpush1.xpose.msra.mxu0 0.0
    %2254 = vmatprep.subr.mxu0 0.0
    %2255 = vmatpush1.xpose.msra.mxu0 0.0
    %2256 = vmatprep.subr.mxu0 0.0
    %2257 = vmatpush1.xpose.msra.mxu0 0.0
    %2258 = vmatprep.subr.mxu0 0.0
    %2259 = vmatpush1.xpose.msra.mxu0 0.0
    %2260 = vmatprep.subr.mxu0 0.0
    %2261 = vmatpush1.xpose.msra.mxu0 0.0
    %2262 = vmatprep.subr.mxu0 0.0
    %2263 = vmatpush1.xpose.msra.mxu0 0.0
    %2264 = vmatprep.subr.mxu0 0.0
    %2265 = vmatpush1.xpose.msra.mxu0 0.0
    %2266 = vmatprep.subr.mxu0 0.0
    %2267 = vmatpush1.xpose.msra.mxu0 0.0
    %2268 = vmatprep.subr.mxu0 0.0
    %2269 = vmatpush1.xpose.msra.mxu0 0.0
    %2270 = vmatprep.subr.mxu0 0.0
    %2271 = vmatpush1.xpose.msra.mxu0 0.0
    %2272 = vmatprep.subr.mxu0 0.0
    %2273 = vmatpush1.xpose.msra.mxu0 0.0
    %2274 = vmatprep.subr.mxu0 0.0
    %2275 = vmatpush1.xpose.msra.mxu0 0.0
    %2276 = vmatprep.subr.mxu0 0.0
    %2277 = vmatpush1.xpose.msra.mxu0 0.0
    %2278 = vmatprep.mubr.f32.mxu0 0.0
    %2279 = vmatmul.mubr.f32.gmra.mrb[0].mxu0 %v2210
    %v2280 = vpop.f32.mrb[0].mxu0
    %v2281 = vadd.f32 0.0, %v2280
    %v2282 = vpop.f32.mrb[0].mxu0
    %2283 = vdwg.mxu0
    %2284 = vrot.lane.b32.xlu0 %v154, 104
    %v2285 = vpop.permute.xlu0 %2284
    %2286 = vrot.lane.b32.xlu0 %v154, 72
    %v2287 = vpop.permute.xlu0 %2286
    %v2288 = vsel %vm160, %v2285, 0
    %v2290 = vsel %vm160, %v2287, 0
    %2292 = vmatprep.subr.mxu0 0.0
    %2293 = vmatpush1.xpose.msra.mxu0 %v2290
    %2294 = vmatprep.subr.mxu0 0.0
    %2295 = vmatpush1.xpose.msra.mxu0 0.0
    %2296 = vmatprep.subr.mxu0 0.0
    %2297 = vmatpush1.xpose.msra.mxu0 0.0
    %2298 = vmatprep.subr.mxu0 0.0
    %2299 = vmatpush1.xpose.msra.mxu0 0.0
    %2300 = vmatprep.subr.mxu0 0.0
    %2301 = vmatpush1.xpose.msra.mxu0 0.0
    %2302 = vmatprep.subr.mxu0 0.0
    %2303 = vmatpush1.xpose.msra.mxu0 0.0
    %2304 = vmatprep.subr.mxu0 0.0
    %2305 = vmatpush1.xpose.msra.mxu0 0.0
    %2306 = vmatprep.subr.mxu0 0.0
    %2307 = vmatpush1.xpose.msra.mxu0 0.0
    %2308 = vmatprep.subr.mxu0 0.0
    %2309 = vmatpush1.xpose.msra.mxu0 0.0
    %2310 = vmatprep.subr.mxu0 0.0
    %2311 = vmatpush1.xpose.msra.mxu0 0.0
    %2312 = vmatprep.subr.mxu0 0.0
    %2313 = vmatpush1.xpose.msra.mxu0 0.0
    %2314 = vmatprep.subr.mxu0 0.0
    %2315 = vmatpush1.xpose.msra.mxu0 0.0
    %2316 = vmatprep.subr.mxu0 0.0
    %2317 = vmatpush1.xpose.msra.mxu0 0.0
    %2318 = vmatprep.subr.mxu0 0.0
    %2319 = vmatpush1.xpose.msra.mxu0 0.0
    %2320 = vmatprep.subr.mxu0 0.0
    %2321 = vmatpush1.xpose.msra.mxu0 0.0
    %2322 = vmatprep.subr.mxu0 0.0
    %2323 = vmatpush1.xpose.msra.mxu0 0.0
    %2324 = vmatprep.subr.mxu0 0.0
    %2325 = vmatpush1.xpose.msra.mxu0 0.0
    %2326 = vmatprep.subr.mxu0 0.0
    %2327 = vmatpush1.xpose.msra.mxu0 0.0
    %2328 = vmatprep.subr.mxu0 0.0
    %2329 = vmatpush1.xpose.msra.mxu0 0.0
    %2330 = vmatprep.subr.mxu0 0.0
    %2331 = vmatpush1.xpose.msra.mxu0 0.0
    %2332 = vmatprep.subr.mxu0 0.0
    %2333 = vmatpush1.xpose.msra.mxu0 0.0
    %2334 = vmatprep.subr.mxu0 0.0
    %2335 = vmatpush1.xpose.msra.mxu0 0.0
    %2336 = vmatprep.subr.mxu0 0.0
    %2337 = vmatpush1.xpose.msra.mxu0 0.0
    %2338 = vmatprep.subr.mxu0 0.0
    %2339 = vmatpush1.xpose.msra.mxu0 0.0
    %2340 = vmatprep.subr.mxu0 0.0
    %2341 = vmatpush1.xpose.msra.mxu0 0.0
    %2342 = vmatprep.subr.mxu0 0.0
    %2343 = vmatpush1.xpose.msra.mxu0 0.0
    %2344 = vmatprep.subr.mxu0 0.0
    %2345 = vmatpush1.xpose.msra.mxu0 0.0
    %2346 = vmatprep.subr.mxu0 0.0
    %2347 = vmatpush1.xpose.msra.mxu0 0.0
    %2348 = vmatprep.subr.mxu0 0.0
    %2349 = vmatpush1.xpose.msra.mxu0 0.0
    %2350 = vmatprep.subr.mxu0 0.0
    %2351 = vmatpush1.xpose.msra.mxu0 0.0
    %2352 = vmatprep.subr.mxu0 0.0
    %2353 = vmatpush1.xpose.msra.mxu0 0.0
    %2354 = vmatprep.subr.mxu0 0.0
    %2355 = vmatpush1.xpose.msra.mxu0 0.0
    %2356 = vmatprep.mubr.f32.mxu0 0.0
    %2357 = vmatmul.mubr.f32.gmra.mrb[0].mxu0 %v2288
    %v2358 = vpop.f32.mrb[0].mxu0
    %v2359 = vadd.f32 0.0, %v2358
    %v2360 = vpop.f32.mrb[0].mxu0
    %2361 = vdwg.mxu0
    %v2362 = vmul.f32 %v2281, 0.5
    %v2363 = vmul.f32 %v2359, 0.5
    %v2364 = vsel %vm314, %v2362, -inf
    %2365 = vmax.xlane.f32.xlu0 %v2364
    %v2366 = vpop.xlane.xlu0 %2365
    %v2367 = vsel %vm314, %v2363, -inf
    %2368 = vmax.xlane.f32.xlu0 %v2367
    %v2369 = vpop.xlane.xlu0 %2368
    %v2370 = vsub.f32 %v2362, %v2366
    %v2371 = vsub.f32 %v2363, %v2369
    %v2372 = vmul.f32 %v2370, 1.442695
    %v2373 = vpow.pop %v2372
    %v2374 = vmul.f32 %v2371, 1.442695
    %v2375 = vpow.pop %v2374
    %v2376 = vsel %vm314, %v2373, 0.0
    %2377 = vadd.xlane.f32.xlu0 %v2376
    %v2378 = vpop.xlane.xlu0 %2377
    %v2379 = vsel %vm314, %v2375, 0.0
    %2380 = vadd.xlane.f32.xlu0 %v2379
    %v2381 = vpop.xlane.xlu0 %2380
    %v2382 = vrcp.pop %v2378
    %v2383 = vrcp.pop %v2381
    %v2384 = vmul.f32 %v2373, %v2382
    %v2385 = vmul.f32 %v2375, %v2383
    %2386 = vrot.lane.b32.xlu0 %v149, 40
    %v2387 = vpop.permute.xlu0 %2386
    %v2390 = vsel %vm314, %v2384, 0
    %2392 = vmatprep.subr.mxu0 0.0
    %2393 = vmatpush1.msra.mxu0 %v2387
    %2394 = vmatprep.subr.mxu0 0.0
    %2395 = vmatpush1.msra.mxu0 0.0
    %2396 = vmatprep.subr.mxu0 0.0
    %2397 = vmatpush1.msra.mxu0 0.0
    %2398 = vmatprep.subr.mxu0 0.0
    %2399 = vmatpush1.msra.mxu0 0.0
    %2400 = vmatprep.subr.mxu0 0.0
    %2401 = vmatpush1.msra.mxu0 0.0
    %2402 = vmatprep.subr.mxu0 0.0
    %2403 = vmatpush1.msra.mxu0 0.0
    %2404 = vmatprep.subr.mxu0 0.0
    %2405 = vmatpush1.msra.mxu0 0.0
    %2406 = vmatprep.subr.mxu0 0.0
    %2407 = vmatpush1.msra.mxu0 0.0
    %2408 = vmatprep.subr.mxu0 0.0
    %2409 = vmatpush1.msra.mxu0 0.0
    %2410 = vmatprep.subr.mxu0 0.0
    %2411 = vmatpush1.msra.mxu0 0.0
    %2412 = vmatprep.subr.mxu0 0.0
    %2413 = vmatpush1.msra.mxu0 0.0
    %2414 = vmatprep.subr.mxu0 0.0
    %2415 = vmatpush1.msra.mxu0 0.0
    %2416 = vmatprep.subr.mxu0 0.0
    %2417 = vmatpush1.msra.mxu0 0.0
    %2418 = vmatprep.subr.mxu0 0.0
    %2419 = vmatpush1.msra.mxu0 0.0
    %2420 = vmatprep.subr.mxu0 0.0
    %2421 = vmatpush1.msra.mxu0 0.0
    %2422 = vmatprep.subr.mxu0 0.0
    %2423 = vmatpush1.msra.mxu0 0.0
    %2424 = vmatprep.subr.mxu0 0.0
    %2425 = vmatpush1.msra.mxu0 0.0
    %2426 = vmatprep.subr.mxu0 0.0
    %2427 = vmatpush1.msra.mxu0 0.0
    %2428 = vmatprep.subr.mxu0 0.0
    %2429 = vmatpush1.msra.mxu0 0.0
    %2430 = vmatprep.subr.mxu0 0.0
    %2431 = vmatpush1.msra.mxu0 0.0
    %2432 = vmatprep.subr.mxu0 0.0
    %2433 = vmatpush1.msra.mxu0 0.0
    %2434 = vmatprep.subr.mxu0 0.0
    %2435 = vmatpush1.msra.mxu0 0.0
    %2436 = vmatprep.subr.mxu0 0.0
    %2437 = vmatpush1.msra.mxu0 0.0
    %2438 = vmatprep.subr.mxu0 0.0
    %2439 = vmatpush1.msra.mxu0 0.0
    %2440 = vmatprep.subr.mxu0 0.0
    %2441 = vmatpush1.msra.mxu0 0.0
    %2442 = vmatprep.subr.mxu0 0.0
    %2443 = vmatpush1.msra.mxu0 0.0
    %2444 = vmatprep.subr.mxu0 0.0
    %2445 = vmatpush1.msra.mxu0 0.0
    %2446 = vmatprep.subr.mxu0 0.0
    %2447 = vmatpush1.msra.mxu0 0.0
    %2448 = vmatprep.subr.mxu0 0.0
    %2449 = vmatpush1.msra.mxu0 0.0
    %2450 = vmatprep.subr.mxu0 0.0
    %2451 = vmatpush1.msra.mxu0 0.0
    %2452 = vmatprep.subr.mxu0 0.0
    %2453 = vmatpush1.msra.mxu0 0.0
    %2454 = vmatprep.subr.mxu0 0.0
    %2455 = vmatpush1.msra.mxu0 0.0
    %2456 = vmatprep.mubr.f32.mxu0 0.0
    %2457 = vmatmul.mubr.f32.gmra.mrb[0].mxu0 %v2390
    %v2458 = vpop.f32.mrb[0].mxu0
    %v2459 = vadd.f32 0.0, %v2458
    %v2460 = vpop.f32.mrb[0].mxu0
    %2461 = vdwg.mxu0
    %2462 = vrot.lane.b32.xlu0 %v154, 40
    %v2463 = vpop.permute.xlu0 %2462
    %v2466 = vsel %vm314, %v2385, 0
    %2468 = vmatprep.subr.mxu0 0.0
    %2469 = vmatpush1.msra.mxu0 %v2463
    %2470 = vmatprep.subr.mxu0 0.0
    %2471 = vmatpush1.msra.mxu0 0.0
    %2472 = vmatprep.subr.mxu0 0.0
    %2473 = vmatpush1.msra.mxu0 0.0
    %2474 = vmatprep.subr.mxu0 0.0
    %2475 = vmatpush1.msra.mxu0 0.0
    %2476 = vmatprep.subr.mxu0 0.0
    %2477 = vmatpush1.msra.mxu0 0.0
    %2478 = vmatprep.subr.mxu0 0.0
    %2479 = vmatpush1.msra.mxu0 0.0
    %2480 = vmatprep.subr.mxu0 0.0
    %2481 = vmatpush1.msra.mxu0 0.0
    %2482 = vmatprep.subr.mxu0 0.0
    %2483 = vmatpush1.msra.mxu0 0.0
    %2484 = vmatprep.subr.mxu0 0.0
    %2485 = vmatpush1.msra.mxu0 0.0
    %2486 = vmatprep.subr.mxu0 0.0
    %2487 = vmatpush1.msra.mxu0 0.0
    %2488 = vmatprep.subr.mxu0 0.0
    %2489 = vmatpush1.msra.mxu0 0.0
    %2490 = vmatprep.subr.mxu0 0.0
    %2491 = vmatpush1.msra.mxu0 0.0
    %2492 = vmatprep.subr.mxu0 0.0
    %2493 = vmatpush1.msra.mxu0 0.0
    %2494 = vmatprep.subr.mxu0 0.0
    %2495 = vmatpush1.msra.mxu0 0.0
    %2496 = vmatprep.subr.mxu0 0.0
    %2497 = vmatpush1.msra.mxu0 0.0
    %2498 = vmatprep.subr.mxu0 0.0
    %2499 = vmatpush1.msra.mxu0 0.0
    %2500 = vmatprep.subr.mxu0 0.0
    %2501 = vmatpush1.msra.mxu0 0.0
    %2502 = vmatprep.subr.mxu0 0.0
    %2503 = vmatpush1.msra.mxu0 0.0
    %2504 = vmatprep.subr.mxu0 0.0
    %2505 = vmatpush1.msra.mxu0 0.0
    %2506 = vmatprep.subr.mxu0 0.0
    %2507 = vmatpush1.msra.mxu0 0.0
    %2508 = vmatprep.subr.mxu0 0.0
    %2509 = vmatpush1.msra.mxu0 0.0
    %2510 = vmatprep.subr.mxu0 0.0
    %2511 = vmatpush1.msra.mxu0 0.0
    %2512 = vmatprep.subr.mxu0 0.0
    %2513 = vmatpush1.msra.mxu0 0.0
    %2514 = vmatprep.subr.mxu0 0.0
    %2515 = vmatpush1.msra.mxu0 0.0
    %2516 = vmatprep.subr.mxu0 0.0
    %2517 = vmatpush1.msra.mxu0 0.0
    %2518 = vmatprep.subr.mxu0 0.0
    %2519 = vmatpush1.msra.mxu0 0.0
    %2520 = vmatprep.subr.mxu0 0.0
    %2521 = vmatpush1.msra.mxu0 0.0
    %2522 = vmatprep.subr.mxu0 0.0
    %2523 = vmatpush1.msra.mxu0 0.0
    %2524 = vmatprep.subr.mxu0 0.0
    %2525 = vmatpush1.msra.mxu0 0.0
    %2526 = vmatprep.subr.mxu0 0.0
    %2527 = vmatpush1.msra.mxu0 0.0
    %2528 = vmatprep.subr.mxu0 0.0
    %2529 = vmatpush1.msra.mxu0 0.0
    %2530 = vmatprep.subr.mxu0 0.0
    %2531 = vmatpush1.msra.mxu0 0.0
    %2532 = vmatprep.mubr.f32.mxu0 0.0
    %2533 = vmatmul.mubr.f32.gmra.mrb[0].mxu0 %v2466
    %v2534 = vpop.f32.mrb[0].mxu0
    %v2535 = vadd.f32 0.0, %v2534
    %v2536 = vpop.f32.mrb[0].mxu0
    %2537 = vdwg.mxu0
    %2540 = vrot.lane.b32.xlu0 %v2459, 24
    %v2541 = vpop.permute.xlu0 %2540
    %2542 = vrot.lane.b32.xlu0 %v2535, 24
    %v2543 = vpop.permute.xlu0 %2542
    %vm2546 = vcmask 228544
    %2547 = vst.msk [vmem:[#allocation2] sm:$0xff] %vm2546, %v2541
    %2548 = vst.msk [vmem:[#allocation2 + $0x8] sm:$0xff] %vm2546, %v2543
    %2549 = vrot.lane.b32.xlu0 %v149, 100
    %v2550 = vpop.permute.xlu0 %2549
    %2551 = vrot.lane.b32.xlu0 %v149, 68
    %v2552 = vpop.permute.xlu0 %2551
    %v2553 = vsel %vm160, %v2550, 0
    %v2555 = vsel %vm160, %v2552, 0
    %2557 = vmatprep.subr.mxu0 0.0
    %2558 = vmatpush1.xpose.msra.mxu0 %v2555
    %2559 = vmatprep.subr.mxu0 0.0
    %2560 = vmatpush1.xpose.msra.mxu0 0.0
    %2561 = vmatprep.subr.mxu0 0.0
    %2562 = vmatpush1.xpose.msra.mxu0 0.0
    %2563 = vmatprep.subr.mxu0 0.0
    %2564 = vmatpush1.xpose.msra.mxu0 0.0
    %2565 = vmatprep.subr.mxu0 0.0
    %2566 = vmatpush1.xpose.msra.mxu0 0.0
    %2567 = vmatprep.subr.mxu0 0.0
    %2568 = vmatpush1.xpose.msra.mxu0 0.0
    %2569 = vmatprep.subr.mxu0 0.0
    %2570 = vmatpush1.xpose.msra.mxu0 0.0
    %2571 = vmatprep.subr.mxu0 0.0
    %2572 = vmatpush1.xpose.msra.mxu0 0.0
    %2573 = vmatprep.subr.mxu0 0.0
    %2574 = vmatpush1.xpose.msra.mxu0 0.0
    %2575 = vmatprep.subr.mxu0 0.0
    %2576 = vmatpush1.xpose.msra.mxu0 0.0
    %2577 = vmatprep.subr.mxu0 0.0
    %2578 = vmatpush1.xpose.msra.mxu0 0.0
    %2579 = vmatprep.subr.mxu0 0.0
    %2580 = vmatpush1.xpose.msra.mxu0 0.0
    %2581 = vmatprep.subr.mxu0 0.0
    %2582 = vmatpush1.xpose.msra.mxu0 0.0
    %2583 = vmatprep.subr.mxu0 0.0
    %2584 = vmatpush1.xpose.msra.mxu0 0.0
    %2585 = vmatprep.subr.mxu0 0.0
    %2586 = vmatpush1.xpose.msra.mxu0 0.0
    %2587 = vmatprep.subr.mxu0 0.0
    %2588 = vmatpush1.xpose.msra.mxu0 0.0
    %2589 = vmatprep.subr.mxu0 0.0
    %2590 = vmatpush1.xpose.msra.mxu0 0.0
    %2591 = vmatprep.subr.mxu0 0.0
    %2592 = vmatpush1.xpose.msra.mxu0 0.0
    %2593 = vmatprep.subr.mxu0 0.0
    %2594 = vmatpush1.xpose.msra.mxu0 0.0
    %2595 = vmatprep.subr.mxu0 0.0
    %2596 = vmatpush1.xpose.msra.mxu0 0.0
    %2597 = vmatprep.subr.mxu0 0.0
    %2598 = vmatpush1.xpose.msra.mxu0 0.0
    %2599 = vmatprep.subr.mxu0 0.0
    %2600 = vmatpush1.xpose.msra.mxu0 0.0
    %2601 = vmatprep.subr.mxu0 0.0
    %2602 = vmatpush1.xpose.msra.mxu0 0.0
    %2603 = vmatprep.subr.mxu0 0.0
    %2604 = vmatpush1.xpose.msra.mxu0 0.0
    %2605 = vmatprep.subr.mxu0 0.0
    %2606 = vmatpush1.xpose.msra.mxu0 0.0
    %2607 = vmatprep.subr.mxu0 0.0
    %2608 = vmatpush1.xpose.msra.mxu0 0.0
    %2609 = vmatprep.subr.mxu0 0.0
    %2610 = vmatpush1.xpose.msra.mxu0 0.0
    %2611 = vmatprep.subr.mxu0 0.0
    %2612 = vmatpush1.xpose.msra.mxu0 0.0
    %2613 = vmatprep.subr.mxu0 0.0
    %2614 = vmatpush1.xpose.msra.mxu0 0.0
    %2615 = vmatprep.subr.mxu0 0.0
    %2616 = vmatpush1.xpose.msra.mxu0 0.0
    %2617 = vmatprep.subr.mxu0 0.0
    %2618 = vmatpush1.xpose.msra.mxu0 0.0
    %2619 = vmatprep.subr.mxu0 0.0
    %2620 = vmatpush1.xpose.msra.mxu0 0.0
    %2621 = vmatprep.mubr.f32.mxu0 0.0
    %2622 = vmatmul.mubr.f32.gmra.mrb[0].mxu0 %v2553
    %v2623 = vpop.f32.mrb[0].mxu0
    %v2624 = vadd.f32 0.0, %v2623
    %v2625 = vpop.f32.mrb[0].mxu0
    %2626 = vdwg.mxu0
    %2627 = vrot.lane.b32.xlu0 %v154, 100
    %v2628 = vpop.permute.xlu0 %2627
    %2629 = vrot.lane.b32.xlu0 %v154, 68
    %v2630 = vpop.permute.xlu0 %2629
    %v2631 = vsel %vm160, %v2628, 0
    %v2633 = vsel %vm160, %v2630, 0
    %2635 = vmatprep.subr.mxu0 0.0
    %2636 = vmatpush1.xpose.msra.mxu0 %v2633
    %2637 = vmatprep.subr.mxu0 0.0
    %2638 = vmatpush1.xpose.msra.mxu0 0.0
    %2639 = vmatprep.subr.mxu0 0.0
    %2640 = vmatpush1.xpose.msra.mxu0 0.0
    %2641 = vmatprep.subr.mxu0 0.0
    %2642 = vmatpush1.xpose.msra.mxu0 0.0
    %2643 = vmatprep.subr.mxu0 0.0
    %2644 = vmatpush1.xpose.msra.mxu0 0.0
    %2645 = vmatprep.subr.mxu0 0.0
    %2646 = vmatpush1.xpose.msra.mxu0 0.0
    %2647 = vmatprep.subr.mxu0 0.0
    %2648 = vmatpush1.xpose.msra.mxu0 0.0
    %2649 = vmatprep.subr.mxu0 0.0
    %2650 = vmatpush1.xpose.msra.mxu0 0.0
    %2651 = vmatprep.subr.mxu0 0.0
    %2652 = vmatpush1.xpose.msra.mxu0 0.0
    %2653 = vmatprep.subr.mxu0 0.0
    %2654 = vmatpush1.xpose.msra.mxu0 0.0
    %2655 = vmatprep.subr.mxu0 0.0
    %2656 = vmatpush1.xpose.msra.mxu0 0.0
    %2657 = vmatprep.subr.mxu0 0.0
    %2658 = vmatpush1.xpose.msra.mxu0 0.0
    %2659 = vmatprep.subr.mxu0 0.0
    %2660 = vmatpush1.xpose.msra.mxu0 0.0
    %2661 = vmatprep.subr.mxu0 0.0
    %2662 = vmatpush1.xpose.msra.mxu0 0.0
    %2663 = vmatprep.subr.mxu0 0.0
    %2664 = vmatpush1.xpose.msra.mxu0 0.0
    %2665 = vmatprep.subr.mxu0 0.0
    %2666 = vmatpush1.xpose.msra.mxu0 0.0
    %2667 = vmatprep.subr.mxu0 0.0
    %2668 = vmatpush1.xpose.msra.mxu0 0.0
    %2669 = vmatprep.subr.mxu0 0.0
    %2670 = vmatpush1.xpose.msra.mxu0 0.0
    %2671 = vmatprep.subr.mxu0 0.0
    %2672 = vmatpush1.xpose.msra.mxu0 0.0
    %2673 = vmatprep.subr.mxu0 0.0
    %2674 = vmatpush1.xpose.msra.mxu0 0.0
    %2675 = vmatprep.subr.mxu0 0.0
    %2676 = vmatpush1.xpose.msra.mxu0 0.0
    %2677 = vmatprep.subr.mxu0 0.0
    %2678 = vmatpush1.xpose.msra.mxu0 0.0
    %2679 = vmatprep.subr.mxu0 0.0
    %2680 = vmatpush1.xpose.msra.mxu0 0.0
    %2681 = vmatprep.subr.mxu0 0.0
    %2682 = vmatpush1.xpose.msra.mxu0 0.0
    %2683 = vmatprep.subr.mxu0 0.0
    %2684 = vmatpush1.xpose.msra.mxu0 0.0
    %2685 = vmatprep.subr.mxu0 0.0
    %2686 = vmatpush1.xpose.msra.mxu0 0.0
    %2687 = vmatprep.subr.mxu0 0.0
    %2688 = vmatpush1.xpose.msra.mxu0 0.0
    %2689 = vmatprep.subr.mxu0 0.0
    %2690 = vmatpush1.xpose.msra.mxu0 0.0
    %2691 = vmatprep.subr.mxu0 0.0
    %2692 = vmatpush1.xpose.msra.mxu0 0.0
    %2693 = vmatprep.subr.mxu0 0.0
    %2694 = vmatpush1.xpose.msra.mxu0 0.0
    %2695 = vmatprep.subr.mxu0 0.0
    %2696 = vmatpush1.xpose.msra.mxu0 0.0
    %2697 = vmatprep.subr.mxu0 0.0
    %2698 = vmatpush1.xpose.msra.mxu0 0.0
    %2699 = vmatprep.mubr.f32.mxu0 0.0
    %2700 = vmatmul.mubr.f32.gmra.mrb[0].mxu0 %v2631
    %v2701 = vpop.f32.mrb[0].mxu0
    %v2702 = vadd.f32 0.0, %v2701
    %v2703 = vpop.f32.mrb[0].mxu0
    %2704 = vdwg.mxu0
    %v2705 = vmul.f32 %v2624, 0.5
    %v2706 = vmul.f32 %v2702, 0.5
    %v2707 = vsel %vm314, %v2705, -inf
    %2708 = vmax.xlane.f32.xlu0 %v2707
    %v2709 = vpop.xlane.xlu0 %2708
    %v2710 = vsel %vm314, %v2706, -inf
    %2711 = vmax.xlane.f32.xlu0 %v2710
    %v2712 = vpop.xlane.xlu0 %2711
    %v2713 = vsub.f32 %v2705, %v2709
    %v2714 = vsub.f32 %v2706, %v2712
    %v2715 = vmul.f32 %v2713, 1.442695
    %v2716 = vpow.pop %v2715
    %v2717 = vmul.f32 %v2714, 1.442695
    %v2718 = vpow.pop %v2717
    %v2719 = vsel %vm314, %v2716, 0.0
    %2720 = vadd.xlane.f32.xlu0 %v2719
    %v2721 = vpop.xlane.xlu0 %2720
    %v2722 = vsel %vm314, %v2718, 0.0
    %2723 = vadd.xlane.f32.xlu0 %v2722
    %v2724 = vpop.xlane.xlu0 %2723
    %v2725 = vrcp.pop %v2721
    %v2726 = vrcp.pop %v2724
    %v2727 = vmul.f32 %v2716, %v2725
    %v2728 = vmul.f32 %v2718, %v2726
    %2729 = vrot.lane.b32.xlu0 %v149, 36
    %v2730 = vpop.permute.xlu0 %2729
    %v2733 = vsel %vm314, %v2727, 0
    %2735 = vmatprep.subr.mxu0 0.0
    %2736 = vmatpush1.msra.mxu0 %v2730
    %2737 = vmatprep.subr.mxu0 0.0
    %2738 = vmatpush1.msra.mxu0 0.0
    %2739 = vmatprep.subr.mxu0 0.0
    %2740 = vmatpush1.msra.mxu0 0.0
    %2741 = vmatprep.subr.mxu0 0.0
    %2742 = vmatpush1.msra.mxu0 0.0
    %2743 = vmatprep.subr.mxu0 0.0
    %2744 = vmatpush1.msra.mxu0 0.0
    %2745 = vmatprep.subr.mxu0 0.0
    %2746 = vmatpush1.msra.mxu0 0.0
    %2747 = vmatprep.subr.mxu0 0.0
    %2748 = vmatpush1.msra.mxu0 0.0
    %2749 = vmatprep.subr.mxu0 0.0
    %2750 = vmatpush1.msra.mxu0 0.0
    %2751 = vmatprep.subr.mxu0 0.0
    %2752 = vmatpush1.msra.mxu0 0.0
    %2753 = vmatprep.subr.mxu0 0.0
    %2754 = vmatpush1.msra.mxu0 0.0
    %2755 = vmatprep.subr.mxu0 0.0
    %2756 = vmatpush1.msra.mxu0 0.0
    %2757 = vmatprep.subr.mxu0 0.0
    %2758 = vmatpush1.msra.mxu0 0.0
    %2759 = vmatprep.subr.mxu0 0.0
    %2760 = vmatpush1.msra.mxu0 0.0
    %2761 = vmatprep.subr.mxu0 0.0
    %2762 = vmatpush1.msra.mxu0 0.0
    %2763 = vmatprep.subr.mxu0 0.0
    %2764 = vmatpush1.msra.mxu0 0.0
    %2765 = vmatprep.subr.mxu0 0.0
    %2766 = vmatpush1.msra.mxu0 0.0
    %2767 = vmatprep.subr.mxu0 0.0
    %2768 = vmatpush1.msra.mxu0 0.0
    %2769 = vmatprep.subr.mxu0 0.0
    %2770 = vmatpush1.msra.mxu0 0.0
    %2771 = vmatprep.subr.mxu0 0.0
    %2772 = vmatpush1.msra.mxu0 0.0
    %2773 = vmatprep.subr.mxu0 0.0
    %2774 = vmatpush1.msra.mxu0 0.0
    %2775 = vmatprep.subr.mxu0 0.0
    %2776 = vmatpush1.msra.mxu0 0.0
    %2777 = vmatprep.subr.mxu0 0.0
    %2778 = vmatpush1.msra.mxu0 0.0
    %2779 = vmatprep.subr.mxu0 0.0
    %2780 = vmatpush1.msra.mxu0 0.0
    %2781 = vmatprep.subr.mxu0 0.0
    %2782 = vmatpush1.msra.mxu0 0.0
    %2783 = vmatprep.subr.mxu0 0.0
    %2784 = vmatpush1.msra.mxu0 0.0
    %2785 = vmatprep.subr.mxu0 0.0
    %2786 = vmatpush1.msra.mxu0 0.0
    %2787 = vmatprep.subr.mxu0 0.0
    %2788 = vmatpush1.msra.mxu0 0.0
    %2789 = vmatprep.subr.mxu0 0.0
    %2790 = vmatpush1.msra.mxu0 0.0
    %2791 = vmatprep.subr.mxu0 0.0
    %2792 = vmatpush1.msra.mxu0 0.0
    %2793 = vmatprep.subr.mxu0 0.0
    %2794 = vmatpush1.msra.mxu0 0.0
    %2795 = vmatprep.subr.mxu0 0.0
    %2796 = vmatpush1.msra.mxu0 0.0
    %2797 = vmatprep.subr.mxu0 0.0
    %2798 = vmatpush1.msra.mxu0 0.0
    %2799 = vmatprep.mubr.f32.mxu0 0.0
    %2800 = vmatmul.mubr.f32.gmra.mrb[0].mxu0 %v2733
    %v2801 = vpop.f32.mrb[0].mxu0
    %v2802 = vadd.f32 0.0, %v2801
    %v2803 = vpop.f32.mrb[0].mxu0
    %2804 = vdwg.mxu0
    %2805 = vrot.lane.b32.xlu0 %v154, 36
    %v2806 = vpop.permute.xlu0 %2805
    %v2809 = vsel %vm314, %v2728, 0
    %2811 = vmatprep.subr.mxu0 0.0
    %2812 = vmatpush1.msra.mxu0 %v2806
    %2813 = vmatprep.subr.mxu0 0.0
    %2814 = vmatpush1.msra.mxu0 0.0
    %2815 = vmatprep.subr.mxu0 0.0
    %2816 = vmatpush1.msra.mxu0 0.0
    %2817 = vmatprep.subr.mxu0 0.0
    %2818 = vmatpush1.msra.mxu0 0.0
    %2819 = vmatprep.subr.mxu0 0.0
    %2820 = vmatpush1.msra.mxu0 0.0
    %2821 = vmatprep.subr.mxu0 0.0
    %2822 = vmatpush1.msra.mxu0 0.0
    %2823 = vmatprep.subr.mxu0 0.0
    %2824 = vmatpush1.msra.mxu0 0.0
    %2825 = vmatprep.subr.mxu0 0.0
    %2826 = vmatpush1.msra.mxu0 0.0
    %2827 = vmatprep.subr.mxu0 0.0
    %2828 = vmatpush1.msra.mxu0 0.0
    %2829 = vmatprep.subr.mxu0 0.0
    %2830 = vmatpush1.msra.mxu0 0.0
    %2831 = vmatprep.subr.mxu0 0.0
    %2832 = vmatpush1.msra.mxu0 0.0
    %2833 = vmatprep.subr.mxu0 0.0
    %2834 = vmatpush1.msra.mxu0 0.0
    %2835 = vmatprep.subr.mxu0 0.0
    %2836 = vmatpush1.msra.mxu0 0.0
    %2837 = vmatprep.subr.mxu0 0.0
    %2838 = vmatpush1.msra.mxu0 0.0
    %2839 = vmatprep.subr.mxu0 0.0
    %2840 = vmatpush1.msra.mxu0 0.0
    %2841 = vmatprep.subr.mxu0 0.0
    %2842 = vmatpush1.msra.mxu0 0.0
    %2843 = vmatprep.subr.mxu0 0.0
    %2844 = vmatpush1.msra.mxu0 0.0
    %2845 = vmatprep.subr.mxu0 0.0
    %2846 = vmatpush1.msra.mxu0 0.0
    %2847 = vmatprep.subr.mxu0 0.0
    %2848 = vmatpush1.msra.mxu0 0.0
    %2849 = vmatprep.subr.mxu0 0.0
    %2850 = vmatpush1.msra.mxu0 0.0
    %2851 = vmatprep.subr.mxu0 0.0
    %2852 = vmatpush1.msra.mxu0 0.0
    %2853 = vmatprep.subr.mxu0 0.0
    %2854 = vmatpush1.msra.mxu0 0.0
    %2855 = vmatprep.subr.mxu0 0.0
    %2856 = vmatpush1.msra.mxu0 0.0
    %2857 = vmatprep.subr.mxu0 0.0
    %2858 = vmatpush1.msra.mxu0 0.0
    %2859 = vmatprep.subr.mxu0 0.0
    %2860 = vmatpush1.msra.mxu0 0.0
    %2861 = vmatprep.subr.mxu0 0.0
    %2862 = vmatpush1.msra.mxu0 0.0
    %2863 = vmatprep.subr.mxu0 0.0
    %2864 = vmatpush1.msra.mxu0 0.0
    %2865 = vmatprep.subr.mxu0 0.0
    %2866 = vmatpush1.msra.mxu0 0.0
    %2867 = vmatprep.subr.mxu0 0.0
    %2868 = vmatpush1.msra.mxu0 0.0
    %2869 = vmatprep.subr.mxu0 0.0
    %2870 = vmatpush1.msra.mxu0 0.0
    %2871 = vmatprep.subr.mxu0 0.0
    %2872 = vmatpush1.msra.mxu0 0.0
    %2873 = vmatprep.subr.mxu0 0.0
    %2874 = vmatpush1.msra.mxu0 0.0
    %2875 = vmatprep.mubr.f32.mxu0 0.0
    %2876 = vmatmul.mubr.f32.gmra.mrb[0].mxu0 %v2809
    %v2877 = vpop.f32.mrb[0].mxu0
    %v2878 = vadd.f32 0.0, %v2877
    %v2879 = vpop.f32.mrb[0].mxu0
    %2880 = vdwg.mxu0
    %2883 = vrot.lane.b32.xlu0 %v2802, 28
    %v2884 = vpop.permute.xlu0 %2883
    %2885 = vrot.lane.b32.xlu0 %v2878, 28
    %v2886 = vpop.permute.xlu0 %2885
    %vm2889 = vcmask 261344
    %2890 = vst.msk [vmem:[#allocation2] sm:$0xff] %vm2889, %v2884
    %2891 = vst.msk [vmem:[#allocation2 + $0x8] sm:$0xff] %vm2889, %v2886
    %v2892 = vld [vmem:[#allocation2] sm:$0xff]
    %v2893 = vld [vmem:[#allocation2 + $0x8] sm:$0xff]
    %v2894 = vld [vmem:[#allocation8] sm:$0xff]
    %v2895 = vld [vmem:[#allocation8 + $0x8] sm:$0xff]
    %v2896 = vld [vmem:[#allocation8 + $0x10] sm:$0xff]
    %v2897 = vld [vmem:[#allocation8 + $0x18] sm:$0xff]
    %v2898 = vld [vmem:[%s4] sm:$0x1]
    %v2900 = vlaneseq
    %v2901 = vshrl.u32 %v2900, 7
    %v2902 = vsub.s32 0, %v2901
    %v2903 = vrot.slane %v2898, %v2902
    %v2906 = vsel %vm75, %v2892, 0
    %v2909 = vsel %vm75, %v2893, 0
    %2911 = vmatprep.subr.mxu0 0.0
    %2912 = vmatpush1.msra.mxu0 %v2894
    %2913 = vmatprep.subr.mxu0 0.0
    %2914 = vmatpush1.msra.mxu0 %v2895
    %2915 = vmatprep.subr.mxu0 0.0
    %2916 = vmatpush1.msra.mxu0 %v2896
    %2917 = vmatprep.subr.mxu0 0.0
    %2918 = vmatpush1.msra.mxu0 %v2897
    %2919 = vmatprep.subr.mxu0 0.0
    %2920 = vmatpush1.msra.mxu0 0.0
    %2921 = vmatprep.subr.mxu0 0.0
    %2922 = vmatpush1.msra.mxu0 0.0
    %2923 = vmatprep.subr.mxu0 0.0
    %2924 = vmatpush1.msra.mxu0 0.0
    %2925 = vmatprep.subr.mxu0 0.0
    %2926 = vmatpush1.msra.mxu0 0.0
    %2927 = vmatprep.subr.mxu0 0.0
    %2928 = vmatpush1.msra.mxu0 0.0
    %2929 = vmatprep.subr.mxu0 0.0
    %2930 = vmatpush1.msra.mxu0 0.0
    %2931 = vmatprep.subr.mxu0 0.0
    %2932 = vmatpush1.msra.mxu0 0.0
    %2933 = vmatprep.subr.mxu0 0.0
    %2934 = vmatpush1.msra.mxu0 0.0
    %2935 = vmatprep.subr.mxu0 0.0
    %2936 = vmatpush1.msra.mxu0 0.0
    %2937 = vmatprep.subr.mxu0 0.0
    %2938 = vmatpush1.msra.mxu0 0.0
    %2939 = vmatprep.subr.mxu0 0.0
    %2940 = vmatpush1.msra.mxu0 0.0
    %2941 = vmatprep.subr.mxu0 0.0
    %2942 = vmatpush1.msra.mxu0 0.0
    %2943 = vmatprep.subr.mxu0 0.0
    %2944 = vmatpush1.msra.mxu0 0.0
    %2945 = vmatprep.subr.mxu0 0.0
    %2946 = vmatpush1.msra.mxu0 0.0
    %2947 = vmatprep.subr.mxu0 0.0
    %2948 = vmatpush1.msra.mxu0 0.0
    %2949 = vmatprep.subr.mxu0 0.0
    %2950 = vmatpush1.msra.mxu0 0.0
    %2951 = vmatprep.subr.mxu0 0.0
    %2952 = vmatpush1.msra.mxu0 0.0
    %2953 = vmatprep.subr.mxu0 0.0
    %2954 = vmatpush1.msra.mxu0 0.0
    %2955 = vmatprep.subr.mxu0 0.0
    %2956 = vmatpush1.msra.mxu0 0.0
    %2957 = vmatprep.subr.mxu0 0.0
    %2958 = vmatpush1.msra.mxu0 0.0
    %2959 = vmatprep.subr.mxu0 0.0
    %2960 = vmatpush1.msra.mxu0 0.0
    %2961 = vmatprep.subr.mxu0 0.0
    %2962 = vmatpush1.msra.mxu0 0.0
    %2963 = vmatprep.subr.mxu0 0.0
    %2964 = vmatpush1.msra.mxu0 0.0
    %2965 = vmatprep.subr.mxu0 0.0
    %2966 = vmatpush1.msra.mxu0 0.0
    %2967 = vmatprep.subr.mxu0 0.0
    %2968 = vmatpush1.msra.mxu0 0.0
    %2969 = vmatprep.subr.mxu0 0.0
    %2970 = vmatpush1.msra.mxu0 0.0
    %2971 = vmatprep.subr.mxu0 0.0
    %2972 = vmatpush1.msra.mxu0 0.0
    %2973 = vmatprep.subr.mxu0 0.0
    %2974 = vmatpush1.msra.mxu0 0.0
    %2975 = vmatprep.mubr.f32.mxu0 0.0
    %2976 = vmatmul.mubr.f32.gmra.mrb[0].mxu0 %v2906
    %v2977 = vpop.f32.mrb[0].mxu0
    %v2978 = vadd.f32 %v2903, %v2977
    %v2979 = vpop.f32.mrb[0].mxu0
    %2980 = vmatprep.mubr.f32.mxu0 0.0
    %2981 = vmatmul.mubr.f32.gmra.mrb[0].mxu0 %v2909
    %v2982 = vpop.f32.mrb[0].mxu0
    %v2983 = vadd.f32 %v2903, %v2982
    %v2984 = vpop.f32.mrb[0].mxu0
    %2985 = vdwg.mxu0
    %2986 = vst.msk [vmem:[#allocation9] sm:$0xff] %vm75, %v2978
    %2987 = vst.msk [vmem:[#allocation9 + $0x8] sm:$0xff] %vm75, %v2983
    // Predicated region
    $region34: #{tpu_custom_call.1} parent=1 // pred_check
      _
    $region35: #{tpu_custom_call.1} parent=1 // pred_check_branch
      %2989 = sbr.rel (0) target = $region37
    $region36: #{tpu_custom_call.1} parent=1 // pred_region
      %s2991 = ssub.s32 256, 256
      %2992 = vsyncadd [#allocation5], %s2991
      %s2993 = sshll.u32 [#allocation9], 4
      %s2994 = int_to_ptr.vmem [resolvable:$true] %s2993
      %2999 = dma.vmem_to_hbm [thread:$0]  %s2994, 256, %s5, [#allocation5], 128, 128, 8
    $region37: #{tpu_custom_call.1} parent=1 // pred_fallthru
      _
    // Predicated region
    $region38: #{tpu_custom_call.1} parent=1 // pred_check
      _
    $region39: #{tpu_custom_call.1} parent=1 // pred_check_branch
      %3001 = sbr.rel (0) target = $region41
    $region40: #{tpu_custom_call.1} parent=1 // pred_region
      %3002 = dma.done [#allocation5], 256
    $region41: #{tpu_custom_call.1} parent=1 // pred_fallthru
      _
    %3003 = vsyncpa [#allocation4], 1
    %3004 = vsyncpa [#allocation7], 1
    %3005 = vsyncpa [#allocation5], 1

</llo_original>
